<compile_context>
chip_gen: v5e
topology: v5e:2x2
jax: 0.10.0
libtpu: 0.0.40
codegen_flags: <defaults>
</compile_context>

<pallas_src>
import math

import jax
import jax.numpy as jnp
from jax import lax
from jax.experimental import pallas as pl
from jax.experimental.pallas import tpu as pltpu


LANE = 128  # lane-padded classifier width (first 2 lanes are the real logits)


# ----------------------------- Pallas kernel --------------------------------

def _shift_seq(x, o):
    """result[:, t, :] = x[:, t + o, :], zero-padded outside [0, S).
    Pure data movement (static slice + zero concat) — no MXU work."""
    if o == 0:
        return x
    Bt, S, H = x.shape
    z = jnp.zeros((Bt, abs(o), H), x.dtype)
    if o > 0:
        return jnp.concatenate([x[:, o:, :], z], axis=1)
    return jnp.concatenate([z, x[:, :S + o, :]], axis=1)


def _conv_branch(a_flat, w_ref, b_ref, Bt, S, H):
    """torch Conv1d ('same' padding) along the sequence, shift-after-matmul:
    out[t] = sum_k in[t + k - pad] @ W_k  ==  sum_k shift(in @ W_k, k - pad)[t].
    Only per-tap *outputs* are shifted — no shifted input copies or slabs."""
    K = w_ref.shape[0]
    pad = K // 2
    acc = None
    for k in range(K):
        y = jnp.dot(a_flat, w_ref[k], preferred_element_type=jnp.float32)
        y = _shift_seq(y.reshape(Bt, S, H), k - pad)
        acc = y if acc is None else acc + y
    return jnp.maximum(acc.reshape(Bt * S, H) + b_ref[...], 0.0)


def qa_conv_head_kernel(mask_ref, x_ref,
                        wq_ref, bq_ref, wk_ref, bk_ref, wv_ref, bv_ref,
                        wc1_ref, bc1_ref, wc3_ref, bc3_ref, wc5_ref, bc5_ref,
                        wcls1_ref, wcls3_ref, wcls5_ref, bcls_ref,
                        out_ref):
    Bt, S, H = x_ref.shape

    xf = x_ref[...].reshape(Bt * S, H)     # (Bt*S, H) bf16 sequence_output
    qm = mask_ref[...]                     # (Bt, 1, S) f32, 1.0 on question tokens

    # ---- question-restricted scaled dot-product attention -------------------
    # 1/sqrt(H) is pre-folded into wq/bq by prep_head_params.
    q = jnp.dot(xf, wq_ref[...], preferred_element_type=jnp.float32) + bq_ref[...]
    k = jnp.dot(xf, wk_ref[...], preferred_element_type=jnp.float32) + bk_ref[...]
    v = jnp.dot(xf, wv_ref[...], preferred_element_type=jnp.float32) + bv_ref[...]

    q3 = q.reshape(Bt, S, H).astype(jnp.bfloat16)
    k3 = k.reshape(Bt, S, H).astype(jnp.bfloat16)
    v3 = v.reshape(Bt, S, H).astype(jnp.bfloat16)

    # q @ K^T as an explicit batched dot_general (contract last dims of both),
    # so the MXU consumes K^T directly.
    scores = lax.dot_general(q3, k3, (((2,), (2,)), ((0,), (0,))),
                             preferred_element_type=jnp.float32)    # (Bt,S,S)
    scores = jnp.where(qm > 0.0, scores, -1e9)                      # keys = question only
    scores = scores - jnp.max(scores, axis=-1, keepdims=True)
    p = jnp.exp(scores)                                             # f32 (v5e-safe)
    attn = p * pl.reciprocal(jnp.sum(p, axis=-1, keepdims=True), approx=True)
    attended = lax.dot_general(attn.astype(jnp.bfloat16), v3,
                               (((2,), (1,)), ((0,), (0,))),
                               preferred_element_type=jnp.float32)  # (Bt,S,H)

    # ---- Conv1d branches (k = 1, 3, 5, 'same' padding) + ReLU ----------------
    a_flat = attended.reshape(Bt * S, H).astype(jnp.bfloat16)
    f1 = _conv_branch(a_flat, wc1_ref, bc1_ref, Bt, S, H)
    f3 = _conv_branch(a_flat, wc3_ref, bc3_ref, Bt, S, H)
    f5 = _conv_branch(a_flat, wc5_ref, bc5_ref, Bt, S, H)

    # ---- start/end classifier: split weights, accumulate (no lane concat) ----
    logits = (jnp.dot(f1.astype(jnp.bfloat16), wcls1_ref[...],
                      preferred_element_type=jnp.float32)
              + jnp.dot(f3.astype(jnp.bfloat16), wcls3_ref[...],
                        preferred_element_type=jnp.float32)
              + jnp.dot(f5.astype(jnp.bfloat16), wcls5_ref[...],
                        preferred_element_type=jnp.float32)
              + bcls_ref[...])                                      # (Bt*S, LANE) f32

    out_ref[...] = logits.reshape(Bt, S, LANE).astype(out_ref.dtype)  # full-lane store


# ------------------------------ kernel wrapper -------------------------------

def _vmem_capacity_bytes():
    try:
        info = pltpu.get_tpu_info()
        cap = int(getattr(info, "vmem_capacity_bytes", 0))
        return cap if cap > 0 else (64 << 20)
    except Exception:
        return 64 << 20        # conservative (v7x-sized) fallback


def _pick_bt(B, S, H, weight_bytes, budget_bytes):
    """Largest divisor of B whose per-step live set fits the VMEM budget.
    Rough per-row live-set model (bytes): activations ~56*S*H, softmax
    temporaries ~14*S*S, lane-padded output block ~4*S*LANE."""
    def est(bt):
        return bt * S * (56 * H + 14 * S + 4 * LANE)

    fitting = [d for d in range(1, B + 1)
               if B % d == 0 and weight_bytes + est(d) <= budget_bytes]
    if not fitting:
        return 1
    bt = max(fitting)
    # Keep >= 2 grid steps when it costs at most halving the tile, so the
    # "parallel" batch axis can still shard across v7x's two TensorCores.
    multi = [d for d in fitting if B // d >= 2]
    if bt == B and multi and 2 * max(multi) >= B:
        bt = max(multi)
    return bt


def qa_conv_head(x, q_mask, kparams):
    """x: (B, S, H) bf16 sequence_output, q_mask: (B, 1, S) f32 question mask.
    kparams: params produced by prep_head_params()."""
    B, S, H = x.shape

    vmem_cap = _vmem_capacity_bytes()
    # v7x: 64 MiB physical -> ~56 MiB limit; v5e/v6e: 128 MiB -> 96 MiB limit.
    vmem_limit = max(32 << 20, min(vmem_cap - (8 << 20), 96 << 20))
    budget = int(0.7 * vmem_limit)
    weight_bytes = sum(int(a.size) * a.dtype.itemsize for a in kparams)
    bt = _pick_bt(B, S, H, weight_bytes, budget)
    nb = B // bt

    def build(single_buffer_weights):
        def full(a):
            n = a.ndim
            kw = {}
            if single_buffer_weights:
                # constant index_map -> never re-fetched -> no double buffer
                kw["pipeline_mode"] = pl.Buffered(1)
            return pl.BlockSpec(a.shape, lambda b, _n=n: (0,) * _n, **kw)

        in_specs = [
            pl.BlockSpec((bt, 1, S), lambda b: (b, 0, 0)),   # q_mask (f32)
            pl.BlockSpec((bt, S, H), lambda b: (b, 0, 0)),   # x (bf16)
        ] + [full(w) for w in kparams]

        return pl.pallas_call(
            qa_conv_head_kernel,
            out_shape=jax.ShapeDtypeStruct((B, S, LANE), jnp.bfloat16),
            grid=(nb,),
            in_specs=in_specs,
            out_specs=pl.BlockSpec((bt, S, LANE), lambda b: (b, 0, 0)),
            compiler_params=pltpu.CompilerParams(
                dimension_semantics=("parallel",),
                vmem_limit_bytes=vmem_limit),
        )

    # TODO(synk): for S >= 512 add a second grid axis over query tiles (with a
    # +-2 token halo on `attended` for the conv taps) so the (bt,S,S) softmax
    # temporaries stay bounded on v7x's 64 MiB VMEM.
    try:
        out = build(True)(q_mask, x, *kparams)
    except Exception:
        # pipeline_mode/Buffered(1) unsupported on this jax build — fall back
        # to default double-buffered weights (correctness identical).
        out = build(False)(q_mask, x, *kparams)
    return out[..., :2].astype(jnp.float32)                  # (B, S, 2)


# ------------------------------ plain-JAX glue -------------------------------

def prep_head_params(head):
    """Convert torch-layout head params to the kernel layout (call ONCE):
    bf16 weights, 1/sqrt(H) folded into the q projection, conv weights kept
    per-tap as (K, H_in, H_out) (== torch weight permuted (2,1,0)), classifier
    split into three (H, LANE) blocks zero-padded from 2 to LANE columns."""
    (wq, bq, wk, bk, wv, bv,
     w1t, b1, w3t, b3, w5t, b5, wcls, bcls) = head
    H = wq.shape[0]
    scale = 1.0 / math.sqrt(H)
    bf = lambda w: w.astype(jnp.bfloat16)

    wcls_pad = jnp.zeros((3 * H, LANE), jnp.float32).at[:, :2].set(wcls)
    bcls_pad = jnp.zeros((1, LANE), jnp.float32).at[:, :2].set(bcls)

    return (
        bf(wq * scale), bq * scale,            # 1/sqrt(H) folded into q proj
        bf(wk), bk, bf(wv), bv,
        bf(w1t), b1,                           # (1, H, H)
        bf(w3t), b3,                           # (3, H, H)
        bf(w5t), b5,                           # (5, H, H)
        bf(wcls_pad[:H]), bf(wcls_pad[H:2 * H]), bf(wcls_pad[2 * H:]),
        bcls_pad,
    )


def make_token_type_ids(input_ids, sep_token_id):
    # PyTorch: zeros before the first [SEP], ones from the first [SEP] onward.
    is_sep = (input_ids == sep_token_id).astype(jnp.int32)
    first_sep = jnp.argmax(is_sep, axis=-1)                        # (B,)
    pos = jnp.arange(input_ids.shape[-1], dtype=jnp.int32)[None, :]
    return (pos >= first_sep[:, None]).astype(jnp.int32)


def tiny_backbone(input_ids, emb, w_ff, b_ff):
    # TODO(synk): real module uses a pretrained HF transformer (AutoModel); replaced
    # by a deterministic embedding + tanh projection to produce sequence_output.
    h = emb[input_ids]                                             # (B, S, H)
    return jnp.tanh(h @ w_ff + b_ff)


def init_params(key, H, vocab):
    ks = jax.random.split(key, 16)
    s = 0.05
    emb  = s * jax.random.normal(ks[0], (vocab, H), jnp.float32)
    w_ff = s * jax.random.normal(ks[1], (H, H), jnp.float32)
    b_ff = jnp.zeros((H,), jnp.float32)

    def lin(k, i, o):
        return s * jax.random.normal(k, (i, o), jnp.float32)

    head = (
        lin(ks[2], H, H), jnp.zeros((1, H), jnp.float32),          # Wq, bq
        lin(ks[3], H, H), jnp.zeros((1, H), jnp.float32),          # Wk, bk
        lin(ks[4], H, H), jnp.zeros((1, H), jnp.float32),          # Wv, bv
        s * jax.random.normal(ks[5], (1, H, H), jnp.float32),      # conv k=1 (tap,in,out)
        0.01 * jnp.ones((1, H), jnp.float32),
        s * jax.random.normal(ks[6], (3, H, H), jnp.float32),      # conv k=3
        0.01 * jnp.ones((1, H), jnp.float32),
        s * jax.random.normal(ks[7], (5, H, H), jnp.float32),      # conv k=5
        0.01 * jnp.ones((1, H), jnp.float32),
        lin(ks[8], 3 * H, 2), jnp.zeros((1, 2), jnp.float32),      # classifier
    )
    return emb, w_ff, b_ff, head


def qa_conv_model_forward(input_ids, emb, w_ff, b_ff, kparams, sep_token_id):
    sequence_output = tiny_backbone(input_ids, emb, w_ff, b_ff)     # (B, S, H) f32
    token_type_ids = make_token_type_ids(input_ids, sep_token_id)   # (B, S)
    B, S = token_type_ids.shape
    q_mask = (token_type_ids == 0).astype(jnp.float32).reshape(B, 1, S)
    x_bf16 = sequence_output.astype(jnp.bfloat16)   # stream x as bf16 (half DMA/VMEM)
    logits = qa_conv_head(x_bf16, q_mask, kparams)                  # (B, S, 2)
    start_logits = logits[..., 0]
    end_logits = logits[..., 1]
    return start_logits, end_logits


# --------------------------------- main --------------------------------------

if __name__ == "__main__":
    B, S, H, VOCAB = 2, 16, 32, 100
    SEP = 3

    key = jax.random.PRNGKey(0)
    k_ids, k_params = jax.random.split(key)

    input_ids = jax.random.randint(k_ids, (B, S), 4, VOCAB, dtype=jnp.int32)
    # plant a [SEP] token so make_token_type_ids has a split point (not at index 0)
    input_ids = input_ids.at[0, 5].set(SEP)
    input_ids = input_ids.at[1, 7].set(SEP)

    emb, w_ff, b_ff, head_params = init_params(k_params, H, VOCAB)
    kparams = prep_head_params(head_params)        # hoisted: done once, not per call

    start_logits, end_logits = qa_conv_model_forward(
        input_ids, emb, w_ff, b_ff, kparams, SEP)
    jax.block_until_ready((start_logits, end_logits))

    assert start_logits.shape == (B, S) and end_logits.shape == (B, S)
    assert jnp.all(jnp.isfinite(start_logits)) and jnp.all(jnp.isfinite(end_logits))
    print("KERNEL_OK")
</pallas_src>

<mosaic_0001>
module attributes {stable_mosaic.version = 11 : i64} {
  func.func @qa_conv_head_kernel(%arg0: i32, %arg1: memref<1x1x16xf32, #tpu.memory_space<vmem>>, %arg2: memref<1x16x32xbf16, #tpu.memory_space<vmem>>, %arg3: memref<32x32xbf16, #tpu.memory_space<vmem>>, %arg4: memref<1x32xf32, #tpu.memory_space<vmem>>, %arg5: memref<32x32xbf16, #tpu.memory_space<vmem>>, %arg6: memref<1x32xf32, #tpu.memory_space<vmem>>, %arg7: memref<32x32xbf16, #tpu.memory_space<vmem>>, %arg8: memref<1x32xf32, #tpu.memory_space<vmem>>, %arg9: memref<1x32x32xbf16, #tpu.memory_space<vmem>>, %arg10: memref<1x32xf32, #tpu.memory_space<vmem>>, %arg11: memref<3x32x32xbf16, #tpu.memory_space<vmem>>, %arg12: memref<1x32xf32, #tpu.memory_space<vmem>>, %arg13: memref<5x32x32xbf16, #tpu.memory_space<vmem>>, %arg14: memref<1x32xf32, #tpu.memory_space<vmem>>, %arg15: memref<32x128xbf16, #tpu.memory_space<vmem>>, %arg16: memref<32x128xbf16, #tpu.memory_space<vmem>>, %arg17: memref<32x128xbf16, #tpu.memory_space<vmem>>, %arg18: memref<1x128xf32, #tpu.memory_space<vmem>>, %arg19: memref<1x16x128xbf16, #tpu.memory_space<vmem>>) attributes {dimension_semantics = [#tpu.dimension_semantics<parallel>], iteration_bounds = array<i64: 2>, scalar_prefetch = 0 : i64, scratch_operands = 0 : i64, tpu.core_type = #tpu.core_type<tc>, window_params = [{transform_indices = @transform_0, window_bounds = array<i64: 1, 1, 16>}, {transform_indices = @transform_1, window_bounds = array<i64: 1, 16, 32>}, {pipeline_mode = #tpu.pipeline_mode<synchronous>, transform_indices = @transform_2, window_bounds = array<i64: 32, 32>}, {pipeline_mode = #tpu.pipeline_mode<synchronous>, transform_indices = @transform_3, window_bounds = array<i64: 1, 32>}, {pipeline_mode = #tpu.pipeline_mode<synchronous>, transform_indices = @transform_4, window_bounds = array<i64: 32, 32>}, {pipeline_mode = #tpu.pipeline_mode<synchronous>, transform_indices = @transform_5, window_bounds = array<i64: 1, 32>}, {pipeline_mode = #tpu.pipeline_mode<synchronous>, transform_indices = @transform_6, window_bounds = array<i64: 32, 32>}, {pipeline_mode = #tpu.pipeline_mode<synchronous>, transform_indices = @transform_7, window_bounds = array<i64: 1, 32>}, {pipeline_mode = #tpu.pipeline_mode<synchronous>, transform_indices = @transform_8, window_bounds = array<i64: 1, 32, 32>}, {pipeline_mode = #tpu.pipeline_mode<synchronous>, transform_indices = @transform_9, window_bounds = array<i64: 1, 32>}, {pipeline_mode = #tpu.pipeline_mode<synchronous>, transform_indices = @transform_10, window_bounds = array<i64: 3, 32, 32>}, {pipeline_mode = #tpu.pipeline_mode<synchronous>, transform_indices = @transform_11, window_bounds = array<i64: 1, 32>}, {pipeline_mode = #tpu.pipeline_mode<synchronous>, transform_indices = @transform_12, window_bounds = array<i64: 5, 32, 32>}, {pipeline_mode = #tpu.pipeline_mode<synchronous>, transform_indices = @transform_13, window_bounds = array<i64: 1, 32>}, {pipeline_mode = #tpu.pipeline_mode<synchronous>, transform_indices = @transform_14, window_bounds = array<i64: 32, 128>}, {pipeline_mode = #tpu.pipeline_mode<synchronous>, transform_indices = @transform_15, window_bounds = array<i64: 32, 128>}, {pipeline_mode = #tpu.pipeline_mode<synchronous>, transform_indices = @transform_16, window_bounds = array<i64: 32, 128>}, {pipeline_mode = #tpu.pipeline_mode<synchronous>, transform_indices = @transform_17, window_bounds = array<i64: 1, 128>}, {transform_indices = @transform_18, window_bounds = array<i64: 1, 16, 128>}]} {
    %c0 = arith.constant 0 : index
    %c0_0 = arith.constant 0 : index
    %c0_1 = arith.constant 0 : index
    %0 = vector.load %arg2[%c0, %c0_0, %c0_1] : memref<1x16x32xbf16, #tpu.memory_space<vmem>>, vector<1x16x32xbf16>
    %1 = vector.shape_cast %0 : vector<1x16x32xbf16> to vector<16x32xbf16>
    %c0_2 = arith.constant 0 : index
    %c0_3 = arith.constant 0 : index
    %c0_4 = arith.constant 0 : index
    %2 = vector.load %arg1[%c0_2, %c0_3, %c0_4] : memref<1x1x16xf32, #tpu.memory_space<vmem>>, vector<1x1x16xf32>
    %c0_5 = arith.constant 0 : index
    %c0_6 = arith.constant 0 : index
    %3 = vector.load %arg3[%c0_5, %c0_6] : memref<32x32xbf16, #tpu.memory_space<vmem>>, vector<32x32xbf16>
    %cst = arith.constant dense<0.000000e+00> : vector<16x32xf32>
    %4 = tpu.matmul %1, %3, %cst {dimension_numbers = #tpu.dot_dimension_numbers<[1], [0], [0], [1], [0, 0, 1, 1], [], []>} : vector<16x32xbf16>, vector<32x32xbf16>, vector<16x32xf32> -> vector<16x32xf32>
    %c0_7 = arith.constant 0 : index
    %c0_8 = arith.constant 0 : index
    %5 = vector.load %arg4[%c0_7, %c0_8] : memref<1x32xf32, #tpu.memory_space<vmem>>, vector<1x32xf32>
    %6 = vector.broadcast %5 : vector<1x32xf32> to vector<16x32xf32>
    %7 = arith.addf %4, %6 : vector<16x32xf32>
    %c0_9 = arith.constant 0 : index
    %c0_10 = arith.constant 0 : index
    %8 = vector.load %arg5[%c0_9, %c0_10] : memref<32x32xbf16, #tpu.memory_space<vmem>>, vector<32x32xbf16>
    %cst_11 = arith.constant dense<0.000000e+00> : vector<16x32xf32>
    %9 = tpu.matmul %1, %8, %cst_11 {dimension_numbers = #tpu.dot_dimension_numbers<[1], [0], [0], [1], [0, 0, 1, 1], [], []>} : vector<16x32xbf16>, vector<32x32xbf16>, vector<16x32xf32> -> vector<16x32xf32>
    %c0_12 = arith.constant 0 : index
    %c0_13 = arith.constant 0 : index
    %10 = vector.load %arg6[%c0_12, %c0_13] : memref<1x32xf32, #tpu.memory_space<vmem>>, vector<1x32xf32>
    %11 = vector.broadcast %10 : vector<1x32xf32> to vector<16x32xf32>
    %12 = arith.addf %9, %11 : vector<16x32xf32>
    %c0_14 = arith.constant 0 : index
    %c0_15 = arith.constant 0 : index
    %13 = vector.load %arg7[%c0_14, %c0_15] : memref<32x32xbf16, #tpu.memory_space<vmem>>, vector<32x32xbf16>
    %cst_16 = arith.constant dense<0.000000e+00> : vector<16x32xf32>
    %14 = tpu.matmul %1, %13, %cst_16 {dimension_numbers = #tpu.dot_dimension_numbers<[1], [0], [0], [1], [0, 0, 1, 1], [], []>} : vector<16x32xbf16>, vector<32x32xbf16>, vector<16x32xf32> -> vector<16x32xf32>
    %c0_17 = arith.constant 0 : index
    %c0_18 = arith.constant 0 : index
    %15 = vector.load %arg8[%c0_17, %c0_18] : memref<1x32xf32, #tpu.memory_space<vmem>>, vector<1x32xf32>
    %16 = vector.broadcast %15 : vector<1x32xf32> to vector<16x32xf32>
    %17 = arith.addf %14, %16 : vector<16x32xf32>
    %18 = vector.shape_cast %7 : vector<16x32xf32> to vector<1x16x32xf32>
    %19 = arith.truncf %18 : vector<1x16x32xf32> to vector<1x16x32xbf16>
    %20 = vector.shape_cast %12 : vector<16x32xf32> to vector<1x16x32xf32>
    %21 = arith.truncf %20 : vector<1x16x32xf32> to vector<1x16x32xbf16>
    %22 = vector.shape_cast %17 : vector<16x32xf32> to vector<1x16x32xf32>
    %23 = arith.truncf %22 : vector<1x16x32xf32> to vector<1x16x32xbf16>
    %cst_19 = arith.constant dense<0.000000e+00> : vector<1x16x16xf32>
    %24 = tpu.matmul %19, %21, %cst_19 {dimension_numbers = #tpu.dot_dimension_numbers<[2], [2], [1], [1], [0, 0, 0, 1, 1, 1], [0], [0]>} : vector<1x16x32xbf16>, vector<1x16x32xbf16>, vector<1x16x16xf32> -> vector<1x16x16xf32>
    %cst_20 = arith.constant 0.000000e+00 : f32
    %25 = vector.broadcast %cst_20 : f32 to vector<1x1x16xf32>
    %26 = arith.cmpf ogt, %2, %25 : vector<1x1x16xf32>
    %cst_21 = arith.constant -1.000000e+09 : f32
    %27 = vector.shape_cast %26 : vector<1x1x16xi1> to vector<1x1x16xi1>
    %28 = vector.broadcast %27 : vector<1x1x16xi1> to vector<1x16x16xi1>
    %29 = vector.broadcast %cst_21 : f32 to vector<1x16x16xf32>
    %30 = arith.select %28, %24, %29 : vector<1x16x16xi1>, vector<1x16x16xf32>
    %cst_22 = arith.constant dense<0xFF800000> : vector<1x16xf32>
    %31 = vector.multi_reduction <maximumf>, %30, %cst_22 [2] : vector<1x16x16xf32> to vector<1x16xf32>
    %32 = vector.shape_cast %31 : vector<1x16xf32> to vector<1x16x1xf32>
    %33 = vector.broadcast %32 : vector<1x16x1xf32> to vector<1x16x16xf32>
    %34 = arith.subf %30, %33 : vector<1x16x16xf32>
    %35 = math.exp %34 : vector<1x16x16xf32>
    %cst_23 = arith.constant dense<0.000000e+00> : vector<1x16xf32>
    %36 = vector.multi_reduction <add>, %35, %cst_23 [2] : vector<1x16x16xf32> to vector<1x16xf32>
    %37 = vector.shape_cast %36 : vector<1x16xf32> to vector<1x16x1xf32>
    %38 = tpu.reciprocal %37 {approx = true} : vector<1x16x1xf32> -> vector<1x16x1xf32>
    %39 = vector.broadcast %38 : vector<1x16x1xf32> to vector<1x16x16xf32>
    %40 = arith.mulf %35, %39 : vector<1x16x16xf32>
    %41 = arith.truncf %40 : vector<1x16x16xf32> to vector<1x16x16xbf16>
    %cst_24 = arith.constant dense<0.000000e+00> : vector<1x16x32xf32>
    %42 = tpu.matmul %41, %23, %cst_24 {dimension_numbers = #tpu.dot_dimension_numbers<[2], [1], [1], [2], [0, 0, 0, 1, 1, 2], [0], [0]>} : vector<1x16x16xbf16>, vector<1x16x32xbf16>, vector<1x16x32xf32> -> vector<1x16x32xf32>
    %43 = vector.shape_cast %42 : vector<1x16x32xf32> to vector<16x32xf32>
    %44 = arith.truncf %43 : vector<16x32xf32> to vector<16x32xbf16>
    %c0_25 = arith.constant 0 : index
    %c0_26 = arith.constant 0 : index
    %c0_27 = arith.constant 0 : index
    %45 = vector.load %arg9[%c0_25, %c0_26, %c0_27] : memref<1x32x32xbf16, #tpu.memory_space<vmem>>, vector<1x32x32xbf16>
    %46 = vector.shape_cast %45 : vector<1x32x32xbf16> to vector<32x32xbf16>
    %cst_28 = arith.constant dense<0.000000e+00> : vector<16x32xf32>
    %47 = tpu.matmul %44, %46, %cst_28 {dimension_numbers = #tpu.dot_dimension_numbers<[1], [0], [0], [1], [0, 0, 1, 1], [], []>} : vector<16x32xbf16>, vector<32x32xbf16>, vector<16x32xf32> -> vector<16x32xf32>
    %48 = vector.shape_cast %47 : vector<16x32xf32> to vector<1x16x32xf32>
    %49 = vector.shape_cast %48 : vector<1x16x32xf32> to vector<16x32xf32>
    %c0_29 = arith.constant 0 : index
    %c0_30 = arith.constant 0 : index
    %50 = vector.load %arg10[%c0_29, %c0_30] : memref<1x32xf32, #tpu.memory_space<vmem>>, vector<1x32xf32>
    %51 = vector.broadcast %50 : vector<1x32xf32> to vector<16x32xf32>
    %52 = arith.addf %49, %51 : vector<16x32xf32>
    %cst_31 = arith.constant 0.000000e+00 : f32
    %53 = vector.broadcast %cst_31 : f32 to vector<16x32xf32>
    %54 = arith.maximumf %52, %53 : vector<16x32xf32>
    %c0_32 = arith.constant 0 : index
    %c0_33 = arith.constant 0 : index
    %c0_34 = arith.constant 0 : index
    %55 = vector.load %arg11[%c0_32, %c0_33, %c0_34] : memref<3x32x32xbf16, #tpu.memory_space<vmem>>, vector<1x32x32xbf16>
    %56 = vector.shape_cast %55 : vector<1x32x32xbf16> to vector<32x32xbf16>
    %cst_35 = arith.constant dense<0.000000e+00> : vector<16x32xf32>
    %57 = tpu.matmul %44, %56, %cst_35 {dimension_numbers = #tpu.dot_dimension_numbers<[1], [0], [0], [1], [0, 0, 1, 1], [], []>} : vector<16x32xbf16>, vector<32x32xbf16>, vector<16x32xf32> -> vector<16x32xf32>
    %58 = vector.shape_cast %57 : vector<16x32xf32> to vector<1x16x32xf32>
    %cst_36 = arith.constant 0.000000e+00 : f32
    %59 = vector.broadcast %cst_36 : f32 to vector<1x1x32xf32>
    %60 = vector.extract_strided_slice %58 {offsets = [0, 0, 0], sizes = [1, 15, 32], strides = [1, 1, 1]} : vector<1x16x32xf32> to vector<1x15x32xf32>
    %61 = tpu.concatenate %59, %60 in 1 : vector<1x1x32xf32>, vector<1x15x32xf32> -> vector<1x16x32xf32>
    %c1 = arith.constant 1 : index
    %c0_37 = arith.constant 0 : index
    %c0_38 = arith.constant 0 : index
    %62 = vector.load %arg11[%c1, %c0_37, %c0_38] : memref<3x32x32xbf16, #tpu.memory_space<vmem>>, vector<1x32x32xbf16>
    %63 = vector.shape_cast %62 : vector<1x32x32xbf16> to vector<32x32xbf16>
    %cst_39 = arith.constant dense<0.000000e+00> : vector<16x32xf32>
    %64 = tpu.matmul %44, %63, %cst_39 {dimension_numbers = #tpu.dot_dimension_numbers<[1], [0], [0], [1], [0, 0, 1, 1], [], []>} : vector<16x32xbf16>, vector<32x32xbf16>, vector<16x32xf32> -> vector<16x32xf32>
    %65 = vector.shape_cast %64 : vector<16x32xf32> to vector<1x16x32xf32>
    %66 = arith.addf %61, %65 : vector<1x16x32xf32>
    %c2 = arith.constant 2 : index
    %c0_40 = arith.constant 0 : index
    %c0_41 = arith.constant 0 : index
    %67 = vector.load %arg11[%c2, %c0_40, %c0_41] : memref<3x32x32xbf16, #tpu.memory_space<vmem>>, vector<1x32x32xbf16>
    %68 = vector.shape_cast %67 : vector<1x32x32xbf16> to vector<32x32xbf16>
    %cst_42 = arith.constant dense<0.000000e+00> : vector<16x32xf32>
    %69 = tpu.matmul %44, %68, %cst_42 {dimension_numbers = #tpu.dot_dimension_numbers<[1], [0], [0], [1], [0, 0, 1, 1], [], []>} : vector<16x32xbf16>, vector<32x32xbf16>, vector<16x32xf32> -> vector<16x32xf32>
    %70 = vector.shape_cast %69 : vector<16x32xf32> to vector<1x16x32xf32>
    %cst_43 = arith.constant 0.000000e+00 : f32
    %71 = vector.broadcast %cst_43 : f32 to vector<1x1x32xf32>
    %72 = vector.extract_strided_slice %70 {offsets = [0, 1, 0], sizes = [1, 15, 32], strides = [1, 1, 1]} : vector<1x16x32xf32> to vector<1x15x32xf32>
    %73 = tpu.concatenate %72, %71 in 1 : vector<1x15x32xf32>, vector<1x1x32xf32> -> vector<1x16x32xf32>
    %74 = arith.addf %66, %73 : vector<1x16x32xf32>
    %75 = vector.shape_cast %74 : vector<1x16x32xf32> to vector<16x32xf32>
    %c0_44 = arith.constant 0 : index
    %c0_45 = arith.constant 0 : index
    %76 = vector.load %arg12[%c0_44, %c0_45] : memref<1x32xf32, #tpu.memory_space<vmem>>, vector<1x32xf32>
    %77 = vector.broadcast %76 : vector<1x32xf32> to vector<16x32xf32>
    %78 = arith.addf %75, %77 : vector<16x32xf32>
    %cst_46 = arith.constant 0.000000e+00 : f32
    %79 = vector.broadcast %cst_46 : f32 to vector<16x32xf32>
    %80 = arith.maximumf %78, %79 : vector<16x32xf32>
    %c0_47 = arith.constant 0 : index
    %c0_48 = arith.constant 0 : index
    %c0_49 = arith.constant 0 : index
    %81 = vector.load %arg13[%c0_47, %c0_48, %c0_49] : memref<5x32x32xbf16, #tpu.memory_space<vmem>>, vector<1x32x32xbf16>
    %82 = vector.shape_cast %81 : vector<1x32x32xbf16> to vector<32x32xbf16>
    %cst_50 = arith.constant dense<0.000000e+00> : vector<16x32xf32>
    %83 = tpu.matmul %44, %82, %cst_50 {dimension_numbers = #tpu.dot_dimension_numbers<[1], [0], [0], [1], [0, 0, 1, 1], [], []>} : vector<16x32xbf16>, vector<32x32xbf16>, vector<16x32xf32> -> vector<16x32xf32>
    %84 = vector.shape_cast %83 : vector<16x32xf32> to vector<1x16x32xf32>
    %cst_51 = arith.constant 0.000000e+00 : f32
    %85 = vector.broadcast %cst_51 : f32 to vector<1x2x32xf32>
    %86 = vector.extract_strided_slice %84 {offsets = [0, 0, 0], sizes = [1, 14, 32], strides = [1, 1, 1]} : vector<1x16x32xf32> to vector<1x14x32xf32>
    %87 = tpu.concatenate %85, %86 in 1 : vector<1x2x32xf32>, vector<1x14x32xf32> -> vector<1x16x32xf32>
    %c1_52 = arith.constant 1 : index
    %c0_53 = arith.constant 0 : index
    %c0_54 = arith.constant 0 : index
    %88 = vector.load %arg13[%c1_52, %c0_53, %c0_54] : memref<5x32x32xbf16, #tpu.memory_space<vmem>>, vector<1x32x32xbf16>
    %89 = vector.shape_cast %88 : vector<1x32x32xbf16> to vector<32x32xbf16>
    %cst_55 = arith.constant dense<0.000000e+00> : vector<16x32xf32>
    %90 = tpu.matmul %44, %89, %cst_55 {dimension_numbers = #tpu.dot_dimension_numbers<[1], [0], [0], [1], [0, 0, 1, 1], [], []>} : vector<16x32xbf16>, vector<32x32xbf16>, vector<16x32xf32> -> vector<16x32xf32>
    %91 = vector.shape_cast %90 : vector<16x32xf32> to vector<1x16x32xf32>
    %cst_56 = arith.constant 0.000000e+00 : f32
    %92 = vector.broadcast %cst_56 : f32 to vector<1x1x32xf32>
    %93 = vector.extract_strided_slice %91 {offsets = [0, 0, 0], sizes = [1, 15, 32], strides = [1, 1, 1]} : vector<1x16x32xf32> to vector<1x15x32xf32>
    %94 = tpu.concatenate %92, %93 in 1 : vector<1x1x32xf32>, vector<1x15x32xf32> -> vector<1x16x32xf32>
    %95 = arith.addf %87, %94 : vector<1x16x32xf32>
    %c2_57 = arith.constant 2 : index
    %c0_58 = arith.constant 0 : index
    %c0_59 = arith.constant 0 : index
    %96 = vector.load %arg13[%c2_57, %c0_58, %c0_59] : memref<5x32x32xbf16, #tpu.memory_space<vmem>>, vector<1x32x32xbf16>
    %97 = vector.shape_cast %96 : vector<1x32x32xbf16> to vector<32x32xbf16>
    %cst_60 = arith.constant dense<0.000000e+00> : vector<16x32xf32>
    %98 = tpu.matmul %44, %97, %cst_60 {dimension_numbers = #tpu.dot_dimension_numbers<[1], [0], [0], [1], [0, 0, 1, 1], [], []>} : vector<16x32xbf16>, vector<32x32xbf16>, vector<16x32xf32> -> vector<16x32xf32>
    %99 = vector.shape_cast %98 : vector<16x32xf32> to vector<1x16x32xf32>
    %100 = arith.addf %95, %99 : vector<1x16x32xf32>
    %c3 = arith.constant 3 : index
    %c0_61 = arith.constant 0 : index
    %c0_62 = arith.constant 0 : index
    %101 = vector.load %arg13[%c3, %c0_61, %c0_62] : memref<5x32x32xbf16, #tpu.memory_space<vmem>>, vector<1x32x32xbf16>
    %102 = vector.shape_cast %101 : vector<1x32x32xbf16> to vector<32x32xbf16>
    %cst_63 = arith.constant dense<0.000000e+00> : vector<16x32xf32>
    %103 = tpu.matmul %44, %102, %cst_63 {dimension_numbers = #tpu.dot_dimension_numbers<[1], [0], [0], [1], [0, 0, 1, 1], [], []>} : vector<16x32xbf16>, vector<32x32xbf16>, vector<16x32xf32> -> vector<16x32xf32>
    %104 = vector.shape_cast %103 : vector<16x32xf32> to vector<1x16x32xf32>
    %cst_64 = arith.constant 0.000000e+00 : f32
    %105 = vector.broadcast %cst_64 : f32 to vector<1x1x32xf32>
    %106 = vector.extract_strided_slice %104 {offsets = [0, 1, 0], sizes = [1, 15, 32], strides = [1, 1, 1]} : vector<1x16x32xf32> to vector<1x15x32xf32>
    %107 = tpu.concatenate %106, %105 in 1 : vector<1x15x32xf32>, vector<1x1x32xf32> -> vector<1x16x32xf32>
    %108 = arith.addf %100, %107 : vector<1x16x32xf32>
    %c4 = arith.constant 4 : index
    %c0_65 = arith.constant 0 : index
    %c0_66 = arith.constant 0 : index
    %109 = vector.load %arg13[%c4, %c0_65, %c0_66] : memref<5x32x32xbf16, #tpu.memory_space<vmem>>, vector<1x32x32xbf16>
    %110 = vector.shape_cast %109 : vector<1x32x32xbf16> to vector<32x32xbf16>
    %cst_67 = arith.constant dense<0.000000e+00> : vector<16x32xf32>
    %111 = tpu.matmul %44, %110, %cst_67 {dimension_numbers = #tpu.dot_dimension_numbers<[1], [0], [0], [1], [0, 0, 1, 1], [], []>} : vector<16x32xbf16>, vector<32x32xbf16>, vector<16x32xf32> -> vector<16x32xf32>
    %112 = vector.shape_cast %111 : vector<16x32xf32> to vector<1x16x32xf32>
    %cst_68 = arith.constant 0.000000e+00 : f32
    %113 = vector.broadcast %cst_68 : f32 to vector<1x2x32xf32>
    %114 = vector.extract_strided_slice %112 {offsets = [0, 2, 0], sizes = [1, 14, 32], strides = [1, 1, 1]} : vector<1x16x32xf32> to vector<1x14x32xf32>
    %115 = tpu.concatenate %114, %113 in 1 : vector<1x14x32xf32>, vector<1x2x32xf32> -> vector<1x16x32xf32>
    %116 = arith.addf %108, %115 : vector<1x16x32xf32>
    %117 = vector.shape_cast %116 : vector<1x16x32xf32> to vector<16x32xf32>
    %c0_69 = arith.constant 0 : index
    %c0_70 = arith.constant 0 : index
    %118 = vector.load %arg14[%c0_69, %c0_70] : memref<1x32xf32, #tpu.memory_space<vmem>>, vector<1x32xf32>
    %119 = vector.broadcast %118 : vector<1x32xf32> to vector<16x32xf32>
    %120 = arith.addf %117, %119 : vector<16x32xf32>
    %cst_71 = arith.constant 0.000000e+00 : f32
    %121 = vector.broadcast %cst_71 : f32 to vector<16x32xf32>
    %122 = arith.maximumf %120, %121 : vector<16x32xf32>
    %123 = arith.truncf %54 : vector<16x32xf32> to vector<16x32xbf16>
    %c0_72 = arith.constant 0 : index
    %c0_73 = arith.constant 0 : index
    %124 = vector.load %arg15[%c0_72, %c0_73] : memref<32x128xbf16, #tpu.memory_space<vmem>>, vector<32x128xbf16>
    %cst_74 = arith.constant dense<0.000000e+00> : vector<16x128xf32>
    %125 = tpu.matmul %123, %124, %cst_74 {dimension_numbers = #tpu.dot_dimension_numbers<[1], [0], [0], [1], [0, 0, 1, 1], [], []>} : vector<16x32xbf16>, vector<32x128xbf16>, vector<16x128xf32> -> vector<16x128xf32>
    %126 = arith.truncf %80 : vector<16x32xf32> to vector<16x32xbf16>
    %c0_75 = arith.constant 0 : index
    %c0_76 = arith.constant 0 : index
    %127 = vector.load %arg16[%c0_75, %c0_76] : memref<32x128xbf16, #tpu.memory_space<vmem>>, vector<32x128xbf16>
    %cst_77 = arith.constant dense<0.000000e+00> : vector<16x128xf32>
    %128 = tpu.matmul %126, %127, %cst_77 {dimension_numbers = #tpu.dot_dimension_numbers<[1], [0], [0], [1], [0, 0, 1, 1], [], []>} : vector<16x32xbf16>, vector<32x128xbf16>, vector<16x128xf32> -> vector<16x128xf32>
    %129 = arith.addf %125, %128 : vector<16x128xf32>
    %130 = arith.truncf %122 : vector<16x32xf32> to vector<16x32xbf16>
    %c0_78 = arith.constant 0 : index
    %c0_79 = arith.constant 0 : index
    %131 = vector.load %arg17[%c0_78, %c0_79] : memref<32x128xbf16, #tpu.memory_space<vmem>>, vector<32x128xbf16>
    %cst_80 = arith.constant dense<0.000000e+00> : vector<16x128xf32>
    %132 = tpu.matmul %130, %131, %cst_80 {dimension_numbers = #tpu.dot_dimension_numbers<[1], [0], [0], [1], [0, 0, 1, 1], [], []>} : vector<16x32xbf16>, vector<32x128xbf16>, vector<16x128xf32> -> vector<16x128xf32>
    %133 = arith.addf %129, %132 : vector<16x128xf32>
    %c0_81 = arith.constant 0 : index
    %c0_82 = arith.constant 0 : index
    %134 = vector.load %arg18[%c0_81, %c0_82] : memref<1x128xf32, #tpu.memory_space<vmem>>, vector<1x128xf32>
    %135 = vector.broadcast %134 : vector<1x128xf32> to vector<16x128xf32>
    %136 = arith.addf %133, %135 : vector<16x128xf32>
    %137 = vector.shape_cast %136 : vector<16x128xf32> to vector<1x16x128xf32>
    %138 = arith.truncf %137 : vector<1x16x128xf32> to vector<1x16x128xbf16>
    %c0_83 = arith.constant 0 : index
    %c0_84 = arith.constant 0 : index
    %c0_85 = arith.constant 0 : index
    %139 = vector.load %arg19[%c0_83, %c0_84, %c0_85] : memref<1x16x128xbf16, #tpu.memory_space<vmem>>, vector<1x16x128xbf16>
    tpu.vector_store %arg19[%c0_83, %c0_84, %c0_85], %138 {strides = array<i32>} : memref<1x16x128xbf16, #tpu.memory_space<vmem>>, vector<1x16x128xbf16>,
    return
  }
  func.func @transform_0(%arg0: i32) -> (i32, i32, i32) {
    %c0_i32 = arith.constant 0 : i32
    %c0_i32_0 = arith.constant 0 : i32
    %c0_i32_1 = arith.constant 0 : i32
    return %arg0, %c0_i32, %c0_i32_0 : i32, i32, i32
  }
  func.func @transform_1(%arg0: i32) -> (i32, i32, i32) {
    %c0_i32 = arith.constant 0 : i32
    %c0_i32_0 = arith.constant 0 : i32
    %c0_i32_1 = arith.constant 0 : i32
    return %arg0, %c0_i32, %c0_i32_0 : i32, i32, i32
  }
  func.func @transform_2(%arg0: i32) -> (i32, i32) {
    %c0_i32 = arith.constant 0 : i32
    %c0_i32_0 = arith.constant 0 : i32
    %c0_i32_1 = arith.constant 0 : i32
    return %c0_i32, %c0_i32_0 : i32, i32
  }
  func.func @transform_3(%arg0: i32) -> (i32, i32) {
    %c0_i32 = arith.constant 0 : i32
    %c0_i32_0 = arith.constant 0 : i32
    %c0_i32_1 = arith.constant 0 : i32
    return %c0_i32, %c0_i32_0 : i32, i32
  }
  func.func @transform_4(%arg0: i32) -> (i32, i32) {
    %c0_i32 = arith.constant 0 : i32
    %c0_i32_0 = arith.constant 0 : i32
    %c0_i32_1 = arith.constant 0 : i32
    return %c0_i32, %c0_i32_0 : i32, i32
  }
  func.func @transform_5(%arg0: i32) -> (i32, i32) {
    %c0_i32 = arith.constant 0 : i32
    %c0_i32_0 = arith.constant 0 : i32
    %c0_i32_1 = arith.constant 0 : i32
    return %c0_i32, %c0_i32_0 : i32, i32
  }
  func.func @transform_6(%arg0: i32) -> (i32, i32) {
    %c0_i32 = arith.constant 0 : i32
    %c0_i32_0 = arith.constant 0 : i32
    %c0_i32_1 = arith.constant 0 : i32
    return %c0_i32, %c0_i32_0 : i32, i32
  }
  func.func @transform_7(%arg0: i32) -> (i32, i32) {
    %c0_i32 = arith.constant 0 : i32
    %c0_i32_0 = arith.constant 0 : i32
    %c0_i32_1 = arith.constant 0 : i32
    return %c0_i32, %c0_i32_0 : i32, i32
  }
  func.func @transform_8(%arg0: i32) -> (i32, i32, i32) {
    %c0_i32 = arith.constant 0 : i32
    %c0_i32_0 = arith.constant 0 : i32
    %c0_i32_1 = arith.constant 0 : i32
    %c0_i32_2 = arith.constant 0 : i32
    return %c0_i32, %c0_i32_0, %c0_i32_1 : i32, i32, i32
  }
  func.func @transform_9(%arg0: i32) -> (i32, i32) {
    %c0_i32 = arith.constant 0 : i32
    %c0_i32_0 = arith.constant 0 : i32
    %c0_i32_1 = arith.constant 0 : i32
    return %c0_i32, %c0_i32_0 : i32, i32
  }
  func.func @transform_10(%arg0: i32) -> (i32, i32, i32) {
    %c0_i32 = arith.constant 0 : i32
    %c0_i32_0 = arith.constant 0 : i32
    %c0_i32_1 = arith.constant 0 : i32
    %c0_i32_2 = arith.constant 0 : i32
    return %c0_i32, %c0_i32_0, %c0_i32_1 : i32, i32, i32
  }
  func.func @transform_11(%arg0: i32) -> (i32, i32) {
    %c0_i32 = arith.constant 0 : i32
    %c0_i32_0 = arith.constant 0 : i32
    %c0_i32_1 = arith.constant 0 : i32
    return %c0_i32, %c0_i32_0 : i32, i32
  }
  func.func @transform_12(%arg0: i32) -> (i32, i32, i32) {
    %c0_i32 = arith.constant 0 : i32
    %c0_i32_0 = arith.constant 0 : i32
    %c0_i32_1 = arith.constant 0 : i32
    %c0_i32_2 = arith.constant 0 : i32
    return %c0_i32, %c0_i32_0, %c0_i32_1 : i32, i32, i32
  }
  func.func @transform_13(%arg0: i32) -> (i32, i32) {
    %c0_i32 = arith.constant 0 : i32
    %c0_i32_0 = arith.constant 0 : i32
    %c0_i32_1 = arith.constant 0 : i32
    return %c0_i32, %c0_i32_0 : i32, i32
  }
  func.func @transform_14(%arg0: i32) -> (i32, i32) {
    %c0_i32 = arith.constant 0 : i32
    %c0_i32_0 = arith.constant 0 : i32
    %c0_i32_1 = arith.constant 0 : i32
    return %c0_i32, %c0_i32_0 : i32, i32
  }
  func.func @transform_15(%arg0: i32) -> (i32, i32) {
    %c0_i32 = arith.constant 0 : i32
    %c0_i32_0 = arith.constant 0 : i32
    %c0_i32_1 = arith.constant 0 : i32
    return %c0_i32, %c0_i32_0 : i32, i32
  }
  func.func @transform_16(%arg0: i32) -> (i32, i32) {
    %c0_i32 = arith.constant 0 : i32
    %c0_i32_0 = arith.constant 0 : i32
    %c0_i32_1 = arith.constant 0 : i32
    return %c0_i32, %c0_i32_0 : i32, i32
  }
  func.func @transform_17(%arg0: i32) -> (i32, i32) {
    %c0_i32 = arith.constant 0 : i32
    %c0_i32_0 = arith.constant 0 : i32
    %c0_i32_1 = arith.constant 0 : i32
    return %c0_i32, %c0_i32_0 : i32, i32
  }
  func.func @transform_18(%arg0: i32) -> (i32, i32, i32) {
    %c0_i32 = arith.constant 0 : i32
    %c0_i32_0 = arith.constant 0 : i32
    %c0_i32_1 = arith.constant 0 : i32
    return %arg0, %c0_i32, %c0_i32_0 : i32, i32, i32
  }
}

module attributes {stable_mosaic.version = 11 : i64} {
  func.func @qa_conv_head_kernel(%arg0: i32, %arg1: memref<1x1x16xf32, #tpu.memory_space<vmem>>, %arg2: memref<1x16x32xbf16, #tpu.memory_space<vmem>>, %arg3: memref<32x32xbf16, #tpu.memory_space<vmem>>, %arg4: memref<1x32xf32, #tpu.memory_space<vmem>>, %arg5: memref<32x32xbf16, #tpu.memory_space<vmem>>, %arg6: memref<1x32xf32, #tpu.memory_space<vmem>>, %arg7: memref<32x32xbf16, #tpu.memory_space<vmem>>, %arg8: memref<1x32xf32, #tpu.memory_space<vmem>>, %arg9: memref<1x32x32xbf16, #tpu.memory_space<vmem>>, %arg10: memref<1x32xf32, #tpu.memory_space<vmem>>, %arg11: memref<3x32x32xbf16, #tpu.memory_space<vmem>>, %arg12: memref<1x32xf32, #tpu.memory_space<vmem>>, %arg13: memref<5x32x32xbf16, #tpu.memory_space<vmem>>, %arg14: memref<1x32xf32, #tpu.memory_space<vmem>>, %arg15: memref<32x128xbf16, #tpu.memory_space<vmem>>, %arg16: memref<32x128xbf16, #tpu.memory_space<vmem>>, %arg17: memref<32x128xbf16, #tpu.memory_space<vmem>>, %arg18: memref<1x128xf32, #tpu.memory_space<vmem>>, %arg19: memref<1x16x128xbf16, #tpu.memory_space<vmem>>) attributes {dimension_semantics = [#tpu.dimension_semantics<parallel>], iteration_bounds = array<i64: 2>, scalar_prefetch = 0 : i64, scratch_operands = 0 : i64, tpu.core_type = #tpu.core_type<tc>, window_params = [{transform_indices = @transform_0, window_bounds = array<i64: 1, 1, 16>}, {transform_indices = @transform_1, window_bounds = array<i64: 1, 16, 32>}, {pipeline_mode = #tpu.pipeline_mode<synchronous>, transform_indices = @transform_2, window_bounds = array<i64: 32, 32>}, {pipeline_mode = #tpu.pipeline_mode<synchronous>, transform_indices = @transform_3, window_bounds = array<i64: 1, 32>}, {pipeline_mode = #tpu.pipeline_mode<synchronous>, transform_indices = @transform_4, window_bounds = array<i64: 32, 32>}, {pipeline_mode = #tpu.pipeline_mode<synchronous>, transform_indices = @transform_5, window_bounds = array<i64: 1, 32>}, {pipeline_mode = #tpu.pipeline_mode<synchronous>, transform_indices = @transform_6, window_bounds = array<i64: 32, 32>}, {pipeline_mode = #tpu.pipeline_mode<synchronous>, transform_indices = @transform_7, window_bounds = array<i64: 1, 32>}, {pipeline_mode = #tpu.pipeline_mode<synchronous>, transform_indices = @transform_8, window_bounds = array<i64: 1, 32, 32>}, {pipeline_mode = #tpu.pipeline_mode<synchronous>, transform_indices = @transform_9, window_bounds = array<i64: 1, 32>}, {pipeline_mode = #tpu.pipeline_mode<synchronous>, transform_indices = @transform_10, window_bounds = array<i64: 3, 32, 32>}, {pipeline_mode = #tpu.pipeline_mode<synchronous>, transform_indices = @transform_11, window_bounds = array<i64: 1, 32>}, {pipeline_mode = #tpu.pipeline_mode<synchronous>, transform_indices = @transform_12, window_bounds = array<i64: 5, 32, 32>}, {pipeline_mode = #tpu.pipeline_mode<synchronous>, transform_indices = @transform_13, window_bounds = array<i64: 1, 32>}, {pipeline_mode = #tpu.pipeline_mode<synchronous>, transform_indices = @transform_14, window_bounds = array<i64: 32, 128>}, {pipeline_mode = #tpu.pipeline_mode<synchronous>, transform_indices = @transform_15, window_bounds = array<i64: 32, 128>}, {pipeline_mode = #tpu.pipeline_mode<synchronous>, transform_indices = @transform_16, window_bounds = array<i64: 32, 128>}, {pipeline_mode = #tpu.pipeline_mode<synchronous>, transform_indices = @transform_17, window_bounds = array<i64: 1, 128>}, {transform_indices = @transform_18, window_bounds = array<i64: 1, 16, 128>}]} {
    %c0 = arith.constant 0 : index
    %c0_0 = arith.constant 0 : index
    %c0_1 = arith.constant 0 : index
    %0 = vector.load %arg2[%c0, %c0_0, %c0_1] : memref<1x16x32xbf16, #tpu.memory_space<vmem>>, vector<1x16x32xbf16>
    %1 = vector.shape_cast %0 : vector<1x16x32xbf16> to vector<16x32xbf16>
    %c0_2 = arith.constant 0 : index
    %c0_3 = arith.constant 0 : index
    %c0_4 = arith.constant 0 : index
    %2 = vector.load %arg1[%c0_2, %c0_3, %c0_4] : memref<1x1x16xf32, #tpu.memory_space<vmem>>, vector<1x1x16xf32>
    %c0_5 = arith.constant 0 : index
    %c0_6 = arith.constant 0 : index
    %3 = vector.load %arg3[%c0_5, %c0_6] : memref<32x32xbf16, #tpu.memory_space<vmem>>, vector<32x32xbf16>
    %cst = arith.constant dense<0.000000e+00> : vector<16x32xf32>
    %4 = tpu.matmul %1, %3, %cst {dimension_numbers = #tpu.dot_dimension_numbers<[1], [0], [0], [1], [0, 0, 1, 1], [], []>} : vector<16x32xbf16>, vector<32x32xbf16>, vector<16x32xf32> -> vector<16x32xf32>
    %c0_7 = arith.constant 0 : index
    %c0_8 = arith.constant 0 : index
    %5 = vector.load %arg4[%c0_7, %c0_8] : memref<1x32xf32, #tpu.memory_space<vmem>>, vector<1x32xf32>
    %6 = vector.broadcast %5 : vector<1x32xf32> to vector<16x32xf32>
    %7 = arith.addf %4, %6 : vector<16x32xf32>
    %c0_9 = arith.constant 0 : index
    %c0_10 = arith.constant 0 : index
    %8 = vector.load %arg5[%c0_9, %c0_10] : memref<32x32xbf16, #tpu.memory_space<vmem>>, vector<32x32xbf16>
    %cst_11 = arith.constant dense<0.000000e+00> : vector<16x32xf32>
    %9 = tpu.matmul %1, %8, %cst_11 {dimension_numbers = #tpu.dot_dimension_numbers<[1], [0], [0], [1], [0, 0, 1, 1], [], []>} : vector<16x32xbf16>, vector<32x32xbf16>, vector<16x32xf32> -> vector<16x32xf32>
    %c0_12 = arith.constant 0 : index
    %c0_13 = arith.constant 0 : index
    %10 = vector.load %arg6[%c0_12, %c0_13] : memref<1x32xf32, #tpu.memory_space<vmem>>, vector<1x32xf32>
    %11 = vector.broadcast %10 : vector<1x32xf32> to vector<16x32xf32>
    %12 = arith.addf %9, %11 : vector<16x32xf32>
    %c0_14 = arith.constant 0 : index
    %c0_15 = arith.constant 0 : index
    %13 = vector.load %arg7[%c0_14, %c0_15] : memref<32x32xbf16, #tpu.memory_space<vmem>>, vector<32x32xbf16>
    %cst_16 = arith.constant dense<0.000000e+00> : vector<16x32xf32>
    %14 = tpu.matmul %1, %13, %cst_16 {dimension_numbers = #tpu.dot_dimension_numbers<[1], [0], [0], [1], [0, 0, 1, 1], [], []>} : vector<16x32xbf16>, vector<32x32xbf16>, vector<16x32xf32> -> vector<16x32xf32>
    %c0_17 = arith.constant 0 : index
    %c0_18 = arith.constant 0 : index
    %15 = vector.load %arg8[%c0_17, %c0_18] : memref<1x32xf32, #tpu.memory_space<vmem>>, vector<1x32xf32>
    %16 = vector.broadcast %15 : vector<1x32xf32> to vector<16x32xf32>
    %17 = arith.addf %14, %16 : vector<16x32xf32>
    %18 = vector.shape_cast %7 : vector<16x32xf32> to vector<1x16x32xf32>
    %19 = arith.truncf %18 : vector<1x16x32xf32> to vector<1x16x32xbf16>
    %20 = vector.shape_cast %12 : vector<16x32xf32> to vector<1x16x32xf32>
    %21 = arith.truncf %20 : vector<1x16x32xf32> to vector<1x16x32xbf16>
    %22 = vector.shape_cast %17 : vector<16x32xf32> to vector<1x16x32xf32>
    %23 = arith.truncf %22 : vector<1x16x32xf32> to vector<1x16x32xbf16>
    %cst_19 = arith.constant dense<0.000000e+00> : vector<1x16x16xf32>
    %24 = tpu.matmul %19, %21, %cst_19 {dimension_numbers = #tpu.dot_dimension_numbers<[2], [2], [1], [1], [0, 0, 0, 1, 1, 1], [0], [0]>} : vector<1x16x32xbf16>, vector<1x16x32xbf16>, vector<1x16x16xf32> -> vector<1x16x16xf32>
    %cst_20 = arith.constant 0.000000e+00 : f32
    %25 = vector.broadcast %cst_20 : f32 to vector<1x1x16xf32>
    %26 = arith.cmpf ogt, %2, %25 : vector<1x1x16xf32>
    %cst_21 = arith.constant -1.000000e+09 : f32
    %27 = vector.shape_cast %26 : vector<1x1x16xi1> to vector<1x1x16xi1>
    %28 = vector.broadcast %27 : vector<1x1x16xi1> to vector<1x16x16xi1>
    %29 = vector.broadcast %cst_21 : f32 to vector<1x16x16xf32>
    %30 = arith.select %28, %24, %29 : vector<1x16x16xi1>, vector<1x16x16xf32>
    %cst_22 = arith.constant dense<0xFF800000> : vector<1x16xf32>
    %31 = vector.multi_reduction <maximumf>, %30, %cst_22 [2] : vector<1x16x16xf32> to vector<1x16xf32>
    %32 = vector.shape_cast %31 : vector<1x16xf32> to vector<1x16x1xf32>
    %33 = vector.broadcast %32 : vector<1x16x1xf32> to vector<1x16x16xf32>
    %34 = arith.subf %30, %33 : vector<1x16x16xf32>
    %35 = math.exp %34 : vector<1x16x16xf32>
    %cst_23 = arith.constant dense<0.000000e+00> : vector<1x16xf32>
    %36 = vector.multi_reduction <add>, %35, %cst_23 [2] : vector<1x16x16xf32> to vector<1x16xf32>
    %37 = vector.shape_cast %36 : vector<1x16xf32> to vector<1x16x1xf32>
    %38 = tpu.reciprocal %37 {approx = true} : vector<1x16x1xf32> -> vector<1x16x1xf32>
    %39 = vector.broadcast %38 : vector<1x16x1xf32> to vector<1x16x16xf32>
    %40 = arith.mulf %35, %39 : vector<1x16x16xf32>
    %41 = arith.truncf %40 : vector<1x16x16xf32> to vector<1x16x16xbf16>
    %cst_24 = arith.constant dense<0.000000e+00> : vector<1x16x32xf32>
    %42 = tpu.matmul %41, %23, %cst_24 {dimension_numbers = #tpu.dot_dimension_numbers<[2], [1], [1], [2], [0, 0, 0, 1, 1, 2], [0], [0]>} : vector<1x16x16xbf16>, vector<1x16x32xbf16>, vector<1x16x32xf32> -> vector<1x16x32xf32>
    %43 = vector.shape_cast %42 : vector<1x16x32xf32> to vector<16x32xf32>
    %44 = arith.truncf %43 : vector<16x32xf32> to vector<16x32xbf16>
    %c0_25 = arith.constant 0 : index
    %c0_26 = arith.constant 0 : index
    %c0_27 = arith.constant 0 : index
    %45 = vector.load %arg9[%c0_25, %c0_26, %c0_27] : memref<1x32x32xbf16, #tpu.memory_space<vmem>>, vector<1x32x32xbf16>
    %46 = vector.shape_cast %45 : vector<1x32x32xbf16> to vector<32x32xbf16>
    %cst_28 = arith.constant dense<0.000000e+00> : vector<16x32xf32>
    %47 = tpu.matmul %44, %46, %cst_28 {dimension_numbers = #tpu.dot_dimension_numbers<[1], [0], [0], [1], [0, 0, 1, 1], [], []>} : vector<16x32xbf16>, vector<32x32xbf16>, vector<16x32xf32> -> vector<16x32xf32>
    %48 = vector.shape_cast %47 : vector<16x32xf32> to vector<1x16x32xf32>
    %49 = vector.shape_cast %48 : vector<1x16x32xf32> to vector<16x32xf32>
    %c0_29 = arith.constant 0 : index
    %c0_30 = arith.constant 0 : index
    %50 = vector.load %arg10[%c0_29, %c0_30] : memref<1x32xf32, #tpu.memory_space<vmem>>, vector<1x32xf32>
    %51 = vector.broadcast %50 : vector<1x32xf32> to vector<16x32xf32>
    %52 = arith.addf %49, %51 : vector<16x32xf32>
    %cst_31 = arith.constant 0.000000e+00 : f32
    %53 = vector.broadcast %cst_31 : f32 to vector<16x32xf32>
    %54 = arith.maximumf %52, %53 : vector<16x32xf32>
    %c0_32 = arith.constant 0 : index
    %c0_33 = arith.constant 0 : index
    %c0_34 = arith.constant 0 : index
    %55 = vector.load %arg11[%c0_32, %c0_33, %c0_34] : memref<3x32x32xbf16, #tpu.memory_space<vmem>>, vector<1x32x32xbf16>
    %56 = vector.shape_cast %55 : vector<1x32x32xbf16> to vector<32x32xbf16>
    %cst_35 = arith.constant dense<0.000000e+00> : vector<16x32xf32>
    %57 = tpu.matmul %44, %56, %cst_35 {dimension_numbers = #tpu.dot_dimension_numbers<[1], [0], [0], [1], [0, 0, 1, 1], [], []>} : vector<16x32xbf16>, vector<32x32xbf16>, vector<16x32xf32> -> vector<16x32xf32>
    %58 = vector.shape_cast %57 : vector<16x32xf32> to vector<1x16x32xf32>
    %cst_36 = arith.constant 0.000000e+00 : f32
    %59 = vector.broadcast %cst_36 : f32 to vector<1x1x32xf32>
    %60 = vector.extract_strided_slice %58 {offsets = [0, 0, 0], sizes = [1, 15, 32], strides = [1, 1, 1]} : vector<1x16x32xf32> to vector<1x15x32xf32>
    %61 = tpu.concatenate %59, %60 in 1 : vector<1x1x32xf32>, vector<1x15x32xf32> -> vector<1x16x32xf32>
    %c1 = arith.constant 1 : index
    %c0_37 = arith.constant 0 : index
    %c0_38 = arith.constant 0 : index
    %62 = vector.load %arg11[%c1, %c0_37, %c0_38] : memref<3x32x32xbf16, #tpu.memory_space<vmem>>, vector<1x32x32xbf16>
    %63 = vector.shape_cast %62 : vector<1x32x32xbf16> to vector<32x32xbf16>
    %cst_39 = arith.constant dense<0.000000e+00> : vector<16x32xf32>
    %64 = tpu.matmul %44, %63, %cst_39 {dimension_numbers = #tpu.dot_dimension_numbers<[1], [0], [0], [1], [0, 0, 1, 1], [], []>} : vector<16x32xbf16>, vector<32x32xbf16>, vector<16x32xf32> -> vector<16x32xf32>
    %65 = vector.shape_cast %64 : vector<16x32xf32> to vector<1x16x32xf32>
    %66 = arith.addf %61, %65 : vector<1x16x32xf32>
    %c2 = arith.constant 2 : index
    %c0_40 = arith.constant 0 : index
    %c0_41 = arith.constant 0 : index
    %67 = vector.load %arg11[%c2, %c0_40, %c0_41] : memref<3x32x32xbf16, #tpu.memory_space<vmem>>, vector<1x32x32xbf16>
    %68 = vector.shape_cast %67 : vector<1x32x32xbf16> to vector<32x32xbf16>
    %cst_42 = arith.constant dense<0.000000e+00> : vector<16x32xf32>
    %69 = tpu.matmul %44, %68, %cst_42 {dimension_numbers = #tpu.dot_dimension_numbers<[1], [0], [0], [1], [0, 0, 1, 1], [], []>} : vector<16x32xbf16>, vector<32x32xbf16>, vector<16x32xf32> -> vector<16x32xf32>
    %70 = vector.shape_cast %69 : vector<16x32xf32> to vector<1x16x32xf32>
    %cst_43 = arith.constant 0.000000e+00 : f32
    %71 = vector.broadcast %cst_43 : f32 to vector<1x1x32xf32>
    %72 = vector.extract_strided_slice %70 {offsets = [0, 1, 0], sizes = [1, 15, 32], strides = [1, 1, 1]} : vector<1x16x32xf32> to vector<1x15x32xf32>
    %73 = tpu.concatenate %72, %71 in 1 : vector<1x15x32xf32>, vector<1x1x32xf32> -> vector<1x16x32xf32>
    %74 = arith.addf %66, %73 : vector<1x16x32xf32>
    %75 = vector.shape_cast %74 : vector<1x16x32xf32> to vector<16x32xf32>
    %c0_44 = arith.constant 0 : index
    %c0_45 = arith.constant 0 : index
    %76 = vector.load %arg12[%c0_44, %c0_45] : memref<1x32xf32, #tpu.memory_space<vmem>>, vector<1x32xf32>
    %77 = vector.broadcast %76 : vector<1x32xf32> to vector<16x32xf32>
    %78 = arith.addf %75, %77 : vector<16x32xf32>
    %cst_46 = arith.constant 0.000000e+00 : f32
    %79 = vector.broadcast %cst_46 : f32 to vector<16x32xf32>
    %80 = arith.maximumf %78, %79 : vector<16x32xf32>
    %c0_47 = arith.constant 0 : index
    %c0_48 = arith.constant 0 : index
    %c0_49 = arith.constant 0 : index
    %81 = vector.load %arg13[%c0_47, %c0_48, %c0_49] : memref<5x32x32xbf16, #tpu.memory_space<vmem>>, vector<1x32x32xbf16>
    %82 = vector.shape_cast %81 : vector<1x32x32xbf16> to vector<32x32xbf16>
    %cst_50 = arith.constant dense<0.000000e+00> : vector<16x32xf32>
    %83 = tpu.matmul %44, %82, %cst_50 {dimension_numbers = #tpu.dot_dimension_numbers<[1], [0], [0], [1], [0, 0, 1, 1], [], []>} : vector<16x32xbf16>, vector<32x32xbf16>, vector<16x32xf32> -> vector<16x32xf32>
    %84 = vector.shape_cast %83 : vector<16x32xf32> to vector<1x16x32xf32>
    %cst_51 = arith.constant 0.000000e+00 : f32
    %85 = vector.broadcast %cst_51 : f32 to vector<1x2x32xf32>
    %86 = vector.extract_strided_slice %84 {offsets = [0, 0, 0], sizes = [1, 14, 32], strides = [1, 1, 1]} : vector<1x16x32xf32> to vector<1x14x32xf32>
    %87 = tpu.concatenate %85, %86 in 1 : vector<1x2x32xf32>, vector<1x14x32xf32> -> vector<1x16x32xf32>
    %c1_52 = arith.constant 1 : index
    %c0_53 = arith.constant 0 : index
    %c0_54 = arith.constant 0 : index
    %88 = vector.load %arg13[%c1_52, %c0_53, %c0_54] : memref<5x32x32xbf16, #tpu.memory_space<vmem>>, vector<1x32x32xbf16>
    %89 = vector.shape_cast %88 : vector<1x32x32xbf16> to vector<32x32xbf16>
    %cst_55 = arith.constant dense<0.000000e+00> : vector<16x32xf32>
    %90 = tpu.matmul %44, %89, %cst_55 {dimension_numbers = #tpu.dot_dimension_numbers<[1], [0], [0], [1], [0, 0, 1, 1], [], []>} : vector<16x32xbf16>, vector<32x32xbf16>, vector<16x32xf32> -> vector<16x32xf32>
    %91 = vector.shape_cast %90 : vector<16x32xf32> to vector<1x16x32xf32>
    %cst_56 = arith.constant 0.000000e+00 : f32
    %92 = vector.broadcast %cst_56 : f32 to vector<1x1x32xf32>
    %93 = vector.extract_strided_slice %91 {offsets = [0, 0, 0], sizes = [1, 15, 32], strides = [1, 1, 1]} : vector<1x16x32xf32> to vector<1x15x32xf32>
    %94 = tpu.concatenate %92, %93 in 1 : vector<1x1x32xf32>, vector<1x15x32xf32> -> vector<1x16x32xf32>
    %95 = arith.addf %87, %94 : vector<1x16x32xf32>
    %c2_57 = arith.constant 2 : index
    %c0_58 = arith.constant 0 : index
    %c0_59 = arith.constant 0 : index
    %96 = vector.load %arg13[%c2_57, %c0_58, %c0_59] : memref<5x32x32xbf16, #tpu.memory_space<vmem>>, vector<1x32x32xbf16>
    %97 = vector.shape_cast %96 : vector<1x32x32xbf16> to vector<32x32xbf16>
    %cst_60 = arith.constant dense<0.000000e+00> : vector<16x32xf32>
    %98 = tpu.matmul %44, %97, %cst_60 {dimension_numbers = #tpu.dot_dimension_numbers<[1], [0], [0], [1], [0, 0, 1, 1], [], []>} : vector<16x32xbf16>, vector<32x32xbf16>, vector<16x32xf32> -> vector<16x32xf32>
    %99 = vector.shape_cast %98 : vector<16x32xf32> to vector<1x16x32xf32>
    %100 = arith.addf %95, %99 : vector<1x16x32xf32>
    %c3 = arith.constant 3 : index
    %c0_61 = arith.constant 0 : index
    %c0_62 = arith.constant 0 : index
    %101 = vector.load %arg13[%c3, %c0_61, %c0_62] : memref<5x32x32xbf16, #tpu.memory_space<vmem>>, vector<1x32x32xbf16>
    %102 = vector.shape_cast %101 : vector<1x32x32xbf16> to vector<32x32xbf16>
    %cst_63 = arith.constant dense<0.000000e+00> : vector<16x32xf32>
    %103 = tpu.matmul %44, %102, %cst_63 {dimension_numbers = #tpu.dot_dimension_numbers<[1], [0], [0], [1], [0, 0, 1, 1], [], []>} : vector<16x32xbf16>, vector<32x32xbf16>, vector<16x32xf32> -> vector<16x32xf32>
    %104 = vector.shape_cast %103 : vector<16x32xf32> to vector<1x16x32xf32>
    %cst_64 = arith.constant 0.000000e+00 : f32
    %105 = vector.broadcast %cst_64 : f32 to vector<1x1x32xf32>
    %106 = vector.extract_strided_slice %104 {offsets = [0, 1, 0], sizes = [1, 15, 32], strides = [1, 1, 1]} : vector<1x16x32xf32> to vector<1x15x32xf32>
    %107 = tpu.concatenate %106, %105 in 1 : vector<1x15x32xf32>, vector<1x1x32xf32> -> vector<1x16x32xf32>
    %108 = arith.addf %100, %107 : vector<1x16x32xf32>
    %c4 = arith.constant 4 : index
    %c0_65 = arith.constant 0 : index
    %c0_66 = arith.constant 0 : index
    %109 = vector.load %arg13[%c4, %c0_65, %c0_66] : memref<5x32x32xbf16, #tpu.memory_space<vmem>>, vector<1x32x32xbf16>
    %110 = vector.shape_cast %109 : vector<1x32x32xbf16> to vector<32x32xbf16>
    %cst_67 = arith.constant dense<0.000000e+00> : vector<16x32xf32>
    %111 = tpu.matmul %44, %110, %cst_67 {dimension_numbers = #tpu.dot_dimension_numbers<[1], [0], [0], [1], [0, 0, 1, 1], [], []>} : vector<16x32xbf16>, vector<32x32xbf16>, vector<16x32xf32> -> vector<16x32xf32>
    %112 = vector.shape_cast %111 : vector<16x32xf32> to vector<1x16x32xf32>
    %cst_68 = arith.constant 0.000000e+00 : f32
    %113 = vector.broadcast %cst_68 : f32 to vector<1x2x32xf32>
    %114 = vector.extract_strided_slice %112 {offsets = [0, 2, 0], sizes = [1, 14, 32], strides = [1, 1, 1]} : vector<1x16x32xf32> to vector<1x14x32xf32>
    %115 = tpu.concatenate %114, %113 in 1 : vector<1x14x32xf32>, vector<1x2x32xf32> -> vector<1x16x32xf32>
    %116 = arith.addf %108, %115 : vector<1x16x32xf32>
    %117 = vector.shape_cast %116 : vector<1x16x32xf32> to vector<16x32xf32>
    %c0_69 = arith.constant 0 : index
    %c0_70 = arith.constant 0 : index
    %118 = vector.load %arg14[%c0_69, %c0_70] : memref<1x32xf32, #tpu.memory_space<vmem>>, vector<1x32xf32>
    %119 = vector.broadcast %118 : vector<1x32xf32> to vector<16x32xf32>
    %120 = arith.addf %117, %119 : vector<16x32xf32>
    %cst_71 = arith.constant 0.000000e+00 : f32
    %121 = vector.broadcast %cst_71 : f32 to vector<16x32xf32>
    %122 = arith.maximumf %120, %121 : vector<16x32xf32>
    %123 = arith.truncf %54 : vector<16x32xf32> to vector<16x32xbf16>
    %c0_72 = arith.constant 0 : index
    %c0_73 = arith.constant 0 : index
    %124 = vector.load %arg15[%c0_72, %c0_73] : memref<32x128xbf16, #tpu.memory_space<vmem>>, vector<32x128xbf16>
    %cst_74 = arith.constant dense<0.000000e+00> : vector<16x128xf32>
    %125 = tpu.matmul %123, %124, %cst_74 {dimension_numbers = #tpu.dot_dimension_numbers<[1], [0], [0], [1], [0, 0, 1, 1], [], []>} : vector<16x32xbf16>, vector<32x128xbf16>, vector<16x128xf32> -> vector<16x128xf32>
    %126 = arith.truncf %80 : vector<16x32xf32> to vector<16x32xbf16>
    %c0_75 = arith.constant 0 : index
    %c0_76 = arith.constant 0 : index
    %127 = vector.load %arg16[%c0_75, %c0_76] : memref<32x128xbf16, #tpu.memory_space<vmem>>, vector<32x128xbf16>
    %cst_77 = arith.constant dense<0.000000e+00> : vector<16x128xf32>
    %128 = tpu.matmul %126, %127, %cst_77 {dimension_numbers = #tpu.dot_dimension_numbers<[1], [0], [0], [1], [0, 0, 1, 1], [], []>} : vector<16x32xbf16>, vector<32x128xbf16>, vector<16x128xf32> -> vector<16x128xf32>
    %129 = arith.addf %125, %128 : vector<16x128xf32>
    %130 = arith.truncf %122 : vector<16x32xf32> to vector<16x32xbf16>
    %c0_78 = arith.constant 0 : index
    %c0_79 = arith.constant 0 : index
    %131 = vector.load %arg17[%c0_78, %c0_79] : memref<32x128xbf16, #tpu.memory_space<vmem>>, vector<32x128xbf16>
    %cst_80 = arith.constant dense<0.000000e+00> : vector<16x128xf32>
    %132 = tpu.matmul %130, %131, %cst_80 {dimension_numbers = #tpu.dot_dimension_numbers<[1], [0], [0], [1], [0, 0, 1, 1], [], []>} : vector<16x32xbf16>, vector<32x128xbf16>, vector<16x128xf32> -> vector<16x128xf32>
    %133 = arith.addf %129, %132 : vector<16x128xf32>
    %c0_81 = arith.constant 0 : index
    %c0_82 = arith.constant 0 : index
    %134 = vector.load %arg18[%c0_81, %c0_82] : memref<1x128xf32, #tpu.memory_space<vmem>>, vector<1x128xf32>
    %135 = vector.broadcast %134 : vector<1x128xf32> to vector<16x128xf32>
    %136 = arith.addf %133, %135 : vector<16x128xf32>
    %137 = vector.shape_cast %136 : vector<16x128xf32> to vector<1x16x128xf32>
    %138 = arith.truncf %137 : vector<1x16x128xf32> to vector<1x16x128xbf16>
    %c0_83 = arith.constant 0 : index
    %c0_84 = arith.constant 0 : index
    %c0_85 = arith.constant 0 : index
    %139 = vector.load %arg19[%c0_83, %c0_84, %c0_85] : memref<1x16x128xbf16, #tpu.memory_space<vmem>>, vector<1x16x128xbf16>
    tpu.vector_store %arg19[%c0_83, %c0_84, %c0_85], %138 {strides = array<i32>} : memref<1x16x128xbf16, #tpu.memory_space<vmem>>, vector<1x16x128xbf16>,
    return
  }
  func.func @transform_0(%arg0: i32) -> (i32, i32, i32) {
    %c0_i32 = arith.constant 0 : i32
    %c0_i32_0 = arith.constant 0 : i32
    %c0_i32_1 = arith.constant 0 : i32
    return %arg0, %c0_i32, %c0_i32_0 : i32, i32, i32
  }
  func.func @transform_1(%arg0: i32) -> (i32, i32, i32) {
    %c0_i32 = arith.constant 0 : i32
    %c0_i32_0 = arith.constant 0 : i32
    %c0_i32_1 = arith.constant 0 : i32
    return %arg0, %c0_i32, %c0_i32_0 : i32, i32, i32
  }
  func.func @transform_2(%arg0: i32) -> (i32, i32) {
    %c0_i32 = arith.constant 0 : i32
    %c0_i32_0 = arith.constant 0 : i32
    %c0_i32_1 = arith.constant 0 : i32
    return %c0_i32, %c0_i32_0 : i32, i32
  }
  func.func @transform_3(%arg0: i32) -> (i32, i32) {
    %c0_i32 = arith.constant 0 : i32
    %c0_i32_0 = arith.constant 0 : i32
    %c0_i32_1 = arith.constant 0 : i32
    return %c0_i32, %c0_i32_0 : i32, i32
  }
  func.func @transform_4(%arg0: i32) -> (i32, i32) {
    %c0_i32 = arith.constant 0 : i32
    %c0_i32_0 = arith.constant 0 : i32
    %c0_i32_1 = arith.constant 0 : i32
    return %c0_i32, %c0_i32_0 : i32, i32
  }
  func.func @transform_5(%arg0: i32) -> (i32, i32) {
    %c0_i32 = arith.constant 0 : i32
    %c0_i32_0 = arith.constant 0 : i32
    %c0_i32_1 = arith.constant 0 : i32
    return %c0_i32, %c0_i32_0 : i32, i32
  }
  func.func @transform_6(%arg0: i32) -> (i32, i32) {
    %c0_i32 = arith.constant 0 : i32
    %c0_i32_0 = arith.constant 0 : i32
    %c0_i32_1 = arith.constant 0 : i32
    return %c0_i32, %c0_i32_0 : i32, i32
  }
  func.func @transform_7(%arg0: i32) -> (i32, i32) {
    %c0_i32 = arith.constant 0 : i32
    %c0_i32_0 = arith.constant 0 : i32
    %c0_i32_1 = arith.constant 0 : i32
    return %c0_i32, %c0_i32_0 : i32, i32
  }
  func.func @transform_8(%arg0: i32) -> (i32, i32, i32) {
    %c0_i32 = arith.constant 0 : i32
    %c0_i32_0 = arith.constant 0 : i32
    %c0_i32_1 = arith.constant 0 : i32
    %c0_i32_2 = arith.constant 0 : i32
    return %c0_i32, %c0_i32_0, %c0_i32_1 : i32, i32, i32
  }
  func.func @transform_9(%arg0: i32) -> (i32, i32) {
    %c0_i32 = arith.constant 0 : i32
    %c0_i32_0 = arith.constant 0 : i32
    %c0_i32_1 = arith.constant 0 : i32
    return %c0_i32, %c0_i32_0 : i32, i32
  }
  func.func @transform_10(%arg0: i32) -> (i32, i32, i32) {
    %c0_i32 = arith.constant 0 : i32
    %c0_i32_0 = arith.constant 0 : i32
    %c0_i32_1 = arith.constant 0 : i32
    %c0_i32_2 = arith.constant 0 : i32
    return %c0_i32, %c0_i32_0, %c0_i32_1 : i32, i32, i32
  }
  func.func @transform_11(%arg0: i32) -> (i32, i32) {
    %c0_i32 = arith.constant 0 : i32
    %c0_i32_0 = arith.constant 0 : i32
    %c0_i32_1 = arith.constant 0 : i32
    return %c0_i32, %c0_i32_0 : i32, i32
  }
  func.func @transform_12(%arg0: i32) -> (i32, i32, i32) {
    %c0_i32 = arith.constant 0 : i32
    %c0_i32_0 = arith.constant 0 : i32
    %c0_i32_1 = arith.constant 0 : i32
    %c0_i32_2 = arith.constant 0 : i32
    return %c0_i32, %c0_i32_0, %c0_i32_1 : i32, i32, i32
  }
  func.func @transform_13(%arg0: i32) -> (i32, i32) {
    %c0_i32 = arith.constant 0 : i32
    %c0_i32_0 = arith.constant 0 : i32
    %c0_i32_1 = arith.constant 0 : i32
    return %c0_i32, %c0_i32_0 : i32, i32
  }
  func.func @transform_14(%arg0: i32) -> (i32, i32) {
    %c0_i32 = arith.constant 0 : i32
    %c0_i32_0 = arith.constant 0 : i32
    %c0_i32_1 = arith.constant 0 : i32
    return %c0_i32, %c0_i32_0 : i32, i32
  }
  func.func @transform_15(%arg0: i32) -> (i32, i32) {
    %c0_i32 = arith.constant 0 : i32
    %c0_i32_0 = arith.constant 0 : i32
    %c0_i32_1 = arith.constant 0 : i32
    return %c0_i32, %c0_i32_0 : i32, i32
  }
  func.func @transform_16(%arg0: i32) -> (i32, i32) {
    %c0_i32 = arith.constant 0 : i32
    %c0_i32_0 = arith.constant 0 : i32
    %c0_i32_1 = arith.constant 0 : i32
    return %c0_i32, %c0_i32_0 : i32, i32
  }
  func.func @transform_17(%arg0: i32) -> (i32, i32) {
    %c0_i32 = arith.constant 0 : i32
    %c0_i32_0 = arith.constant 0 : i32
    %c0_i32_1 = arith.constant 0 : i32
    return %c0_i32, %c0_i32_0 : i32, i32
  }
  func.func @transform_18(%arg0: i32) -> (i32, i32, i32) {
    %c0_i32 = arith.constant 0 : i32
    %c0_i32_0 = arith.constant 0 : i32
    %c0_i32_1 = arith.constant 0 : i32
    return %arg0, %c0_i32, %c0_i32_0 : i32, i32, i32
  }
}

</mosaic_0001>

<llo_original>
// kernel: tpu_custom_call.1
$region0: #{tpu_custom_call.1}
  #allocation0 [shape = 'u32[]', space=smem, size = 0x4, offset = 0x4, fixed_abs, tag = 'smem constant byte address 0x4 - core index']
  #allocation1 [shape = 'u32[72,128]{1,0:T(1,128)}', space=vmem, size = 0x9000, scoped, tag = 'internal scratch']
  %s0 = inlined_call_operand.hbm [shape: f32[2,1,16], index: 0, kind: input, shape index: {}]
  %s1 = inlined_call_operand.hbm [shape: bf16[2,16,32], index: 1, kind: input, shape index: {}]
  %s2 = inlined_call_operand.hbm [shape: bf16[32,32], index: 2, kind: input, shape index: {}]
  %s3 = inlined_call_operand.vmem [shape: f32[1,32], index: 3, kind: input, shape index: {}]
  %s4 = inlined_call_operand.hbm [shape: bf16[32,32], index: 4, kind: input, shape index: {}]
  %s5 = inlined_call_operand.vmem [shape: f32[1,32], index: 5, kind: input, shape index: {}]
  %s6 = inlined_call_operand.hbm [shape: bf16[32,32], index: 6, kind: input, shape index: {}]
  %s7 = inlined_call_operand.vmem [shape: f32[1,32], index: 7, kind: input, shape index: {}]
  %s8 = inlined_call_operand.hbm [shape: bf16[1,32,32], index: 8, kind: input, shape index: {}]
  %s9 = inlined_call_operand.vmem [shape: f32[1,32], index: 9, kind: input, shape index: {}]
  %s10 = inlined_call_operand.hbm [shape: bf16[3,32,32], index: 10, kind: input, shape index: {}]
  %s11 = inlined_call_operand.vmem [shape: f32[1,32], index: 11, kind: input, shape index: {}]
  %s12 = inlined_call_operand.hbm [shape: bf16[5,32,32], index: 12, kind: input, shape index: {}]
  %s13 = inlined_call_operand.vmem [shape: f32[1,32], index: 13, kind: input, shape index: {}]
  %s14 = inlined_call_operand.hbm [shape: bf16[32,128], index: 14, kind: input, shape index: {}]
  %s15 = inlined_call_operand.hbm [shape: bf16[32,128], index: 15, kind: input, shape index: {}]
  %s16 = inlined_call_operand.hbm [shape: bf16[32,128], index: 16, kind: input, shape index: {}]
  %s17 = inlined_call_operand.vmem [shape: f32[1,128], index: 17, kind: input, shape index: {}]
  %s18 = inlined_call_operand.hbm [shape: bf16[2,16,128], index: 18, kind: output, shape index: {}]
  %s19 = sld [smem:[#allocation0]]
  $region149: #{tpu_custom_call.1} parent=0
    _
  %s21 = ssub.s32 1, %s19
  %s22 = scalar_select 0, %s21, %s19
  $region1: #{tpu_custom_call.1} parent=0
    #allocation2 [shape = 'u8[1024]{0}', space=vmem, size = 0x400, scoped, tag = 'input window, operand 0']
    #allocation3 [shape = 's32[2]{0}', space=sflag, size = 0x8, scoped, tag = 'scoped memory for tpu_custom_call.1']
    #allocation4 [shape = 's32[2]{0}', space=sflag, size = 0x8, scoped, tag = 'scoped memory for tpu_custom_call.1']
    #allocation5 [shape = 'u8[8192]{0}', space=vmem, size = 0x2000, scoped, tag = 'input window, operand 1']
    #allocation6 [shape = 's32[2]{0}', space=sflag, size = 0x8, scoped, tag = 'scoped memory for tpu_custom_call.1']
    #allocation7 [shape = 'u8[8192]{0}', space=vmem, size = 0x2000, scoped, tag = 'input window, operand 2, single buffered']
    #allocation8 [shape = 'u8[8192]{0}', space=vmem, size = 0x2000, scoped, tag = 'input window, operand 4, single buffered']
    #allocation9 [shape = 's32[1]{0}', space=sflag, size = 0x4, scoped, tag = 'scoped memory for tpu_custom_call.1']
    #allocation10 [shape = 'u8[8192]{0}', space=vmem, size = 0x2000, scoped, tag = 'input window, operand 6, single buffered']
    #allocation11 [shape = 'u8[8192]{0}', space=vmem, size = 0x2000, scoped, tag = 'input window, operand 8, single buffered']
    #allocation12 [shape = 's32[1]{0}', space=sflag, size = 0x4, scoped, tag = 'scoped memory for tpu_custom_call.1']
    #allocation13 [shape = 'u8[24576]{0}', space=vmem, size = 0x6000, scoped, tag = 'input window, operand 10, single buffered']
    #allocation14 [shape = 'u8[40960]{0}', space=vmem, size = 0xa000, scoped, tag = 'input window, operand 12, single buffered']
    #allocation15 [shape = 's32[1]{0}', space=sflag, size = 0x4, scoped, tag = 'scoped memory for tpu_custom_call.1']
    #allocation16 [shape = 'u8[8192]{0}', space=vmem, size = 0x2000, scoped, tag = 'input window, operand 14, single buffered']
    #allocation17 [shape = 'u8[8192]{0}', space=vmem, size = 0x2000, scoped, tag = 'input window, operand 15, single buffered']
    #allocation18 [shape = 's32[1]{0}', space=sflag, size = 0x4, scoped, tag = 'scoped memory for tpu_custom_call.1']
    #allocation19 [shape = 'u8[8192]{0}', space=vmem, size = 0x2000, scoped, tag = 'input window, operand 16, single buffered']
    #allocation20 [shape = 'u8[8192]{0}', space=vmem, size = 0x2000, scoped, tag = 'output window, operand 0']
    %23 = vsyncpa [#allocation3], 0
    %s24 = scalar_lea.sflag [#allocation3], 1
    %25 = vsyncpa %s24, 0
    %26 = vsyncpa [#allocation6], 0
    %s27 = scalar_lea.sflag [#allocation6], 1
    %28 = vsyncpa %s27, 0
    %29 = vsyncpa [#allocation9], 0
    %30 = vsyncpa [#allocation12], 0
    %31 = vsyncpa [#allocation15], 0
    %32 = vsyncpa [#allocation18], 0
    %33 = vsyncpa [#allocation4], 0
    %s34 = scalar_lea.sflag [#allocation4], 1
    %35 = vsyncpa %s34, 0
    loop: start=0, step=1, limit=4
    $region2: #{tpu_custom_call.1} parent=1 // loop_pre_header
      _
    $region3: #{tpu_custom_call.1} parent=1 // loop_header
      %s37 = sphi 0, %s41
      %p38 = scmp.ge.s32.totalorder %s37, 4
      %s47 = sphi 0, %s49
      %s50 = sphi 0, %s47
      %s51 = sphi 0, %s50
      %s67 = sphi 0, %s51
      %s73 = sphi 0, %s75
      %s76 = sphi 0, %s73
      %s77 = sphi 0, %s76
      %s93 = sphi 0, %s77
      %s97 = sphi 0, %s97
      %s99 = sphi 0, %s97
      %s100 = sphi 0, %s99
      %s114 = sphi 0, %s100
      %s118 = sphi 0, %s118
      %s120 = sphi 0, %s118
      %s121 = sphi 0, %s120
      %s135 = sphi 0, %s121
      %s139 = sphi 0, %s139
      %s141 = sphi 0, %s139
      %s142 = sphi 0, %s141
      %s156 = sphi 0, %s142
      %s160 = sphi 0, %s160
      %s162 = sphi 0, %s160
      %s163 = sphi 0, %s162
      %s177 = sphi 0, %s163
      %s181 = sphi 0, %s181
      %s183 = sphi 0, %s181
      %s184 = sphi 0, %s183
      %s198 = sphi 0, %s184
      %s202 = sphi 0, %s202
      %s204 = sphi 0, %s202
      %s205 = sphi 0, %s204
      %s219 = sphi 0, %s205
      %s223 = sphi 0, %s223
      %s225 = sphi 0, %s223
      %s226 = sphi 0, %s225
      %s240 = sphi 0, %s226
      %s244 = sphi 0, %s244
      %s246 = sphi 0, %s244
      %s247 = sphi 0, %s246
      %s261 = sphi 0, %s247
      %s265 = sphi 0, %s265
      %s267 = sphi 0, %s265
      %s268 = sphi 0, %s267
      %s282 = sphi 0, %s268
      %s286 = sphi 0, %s286
      %s288 = sphi 0, %s286
      %s289 = sphi 0, %s288
      %s303 = sphi 0, %s289
      %s307 = sphi 0, %s307
      %s309 = sphi 0, %s307
      %s310 = sphi 0, %s309
      %s324 = sphi 0, %s310
      %s328 = sphi 0, %s328
      %s330 = sphi 0, %s328
      %s331 = sphi 0, %s330
      %s345 = sphi 0, %s331
      %s349 = sphi 0, %s349
      %s351 = sphi 0, %s349
      %s352 = sphi 0, %s351
      %s366 = sphi 0, %s352
      %s370 = sphi 0, %s370
      %s372 = sphi 0, %s370
      %s373 = sphi 0, %s372
      %s387 = sphi 0, %s373
      %s391 = sphi 0, %s391
      %s393 = sphi 0, %s391
      %s394 = sphi 0, %s393
      %s408 = sphi 0, %s394
      %s412 = sphi 0, %s412
      %s414 = sphi 0, %s412
      %s415 = sphi 0, %s414
      %s429 = sphi 0, %s415
      %s435 = sphi 0, %s437
      %s438 = sphi 0, %s435
      %s439 = sphi 0, %s438
      %s455 = sphi 0, %s439
    $region4: #{tpu_custom_call.1} parent=1 // loop_header_branch
      %40 = sbr.rel (%p38) target = $region8
    $region5: #{tpu_custom_call.1} parent=1 // loop_body
      %s42 = ssub.s32 %s37, 1
      %s43 = ssub.s32 %s37, 2
      %s44 = sadd.s32 %s37, 1
      %s45 = ssub.s32 %s37, %s44
      %p46 = scmp.eq.s32.totalorder %s45, 0
      %s48 = sadd.s32 %s47, 1
      %s49 = scalar_select %p46, %s47, %s48
      %p52 = pneg %p46
      %p53 = scmp.eq.s32.totalorder %s37, 1
      %p54 = por %p52, %p53
      %p55 = scmp.ne.s32.totalorder %s47, %s50
      %p56 = scmp.eq.s32.totalorder %s37, 0
      %p57 = por %p55, %p56
      %p58 = scmp.ne.s32.totalorder %s47, %s50
      %p59 = scmp.eq.s32.totalorder %s42, 1
      %p60 = por %p58, %p59
      %p61 = scmp.ne.s32.totalorder %s50, %s51
      %p62 = scmp.eq.s32.totalorder %s42, 0
      %p63 = por %p61, %p62
      %p64 = scmp.ne.s32.totalorder %s50, %s51
      %p65 = scmp.eq.s32.totalorder %s43, 1
      %p66 = por %p64, %p65
      %p68 = scmp.ne.s32.totalorder %s51, %s67
      %p69 = scmp.eq.s32.totalorder %s43, 0
      %p70 = por %p68, %p69
      %s71 = ssub.s32 %s37, %s44
      %p72 = scmp.eq.s32.totalorder %s71, 0
      %s74 = sadd.s32 %s73, 1
      %s75 = scalar_select %p72, %s73, %s74
      %p78 = pneg %p72
      %p79 = scmp.eq.s32.totalorder %s37, 1
      %p80 = por %p78, %p79
      %p81 = scmp.ne.s32.totalorder %s73, %s76
      %p82 = scmp.eq.s32.totalorder %s37, 0
      %p83 = por %p81, %p82
      %p84 = scmp.ne.s32.totalorder %s73, %s76
      %p85 = scmp.eq.s32.totalorder %s42, 1
      %p86 = por %p84, %p85
      %p87 = scmp.ne.s32.totalorder %s76, %s77
      %p88 = scmp.eq.s32.totalorder %s42, 0
      %p89 = por %p87, %p88
      %p90 = scmp.ne.s32.totalorder %s76, %s77
      %p91 = scmp.eq.s32.totalorder %s43, 1
      %p92 = por %p90, %p91
      %p94 = scmp.ne.s32.totalorder %s77, %s93
      %p95 = scmp.eq.s32.totalorder %s43, 0
      %p96 = por %p94, %p95
      %s98 = sadd.s32 %s97, 1
      %p101 = scmp.eq.s32.totalorder %s37, 1
      %p102 = scmp.ne.s32.totalorder %s97, %s99
      %p103 = scmp.eq.s32.totalorder %s37, 0
      %p104 = por %p102, %p103
      %p105 = scmp.ne.s32.totalorder %s97, %s99
      %p106 = scmp.eq.s32.totalorder %s42, 1
      %p107 = por %p105, %p106
      %p108 = scmp.ne.s32.totalorder %s99, %s100
      %p109 = scmp.eq.s32.totalorder %s42, 0
      %p110 = por %p108, %p109
      %p111 = scmp.ne.s32.totalorder %s99, %s100
      %p112 = scmp.eq.s32.totalorder %s43, 1
      %p113 = por %p111, %p112
      %p115 = scmp.ne.s32.totalorder %s100, %s114
      %p116 = scmp.eq.s32.totalorder %s43, 0
      %p117 = por %p115, %p116
      %s119 = sadd.s32 %s118, 1
      %p122 = scmp.eq.s32.totalorder %s37, 1
      %p123 = scmp.ne.s32.totalorder %s118, %s120
      %p124 = scmp.eq.s32.totalorder %s37, 0
      %p125 = por %p123, %p124
      %p126 = scmp.ne.s32.totalorder %s118, %s120
      %p127 = scmp.eq.s32.totalorder %s42, 1
      %p128 = por %p126, %p127
      %p129 = scmp.ne.s32.totalorder %s120, %s121
      %p130 = scmp.eq.s32.totalorder %s42, 0
      %p131 = por %p129, %p130
      %p132 = scmp.ne.s32.totalorder %s120, %s121
      %p133 = scmp.eq.s32.totalorder %s43, 1
      %p134 = por %p132, %p133
      %p136 = scmp.ne.s32.totalorder %s121, %s135
      %p137 = scmp.eq.s32.totalorder %s43, 0
      %p138 = por %p136, %p137
      %s140 = sadd.s32 %s139, 1
      %p143 = scmp.eq.s32.totalorder %s37, 1
      %p144 = scmp.ne.s32.totalorder %s139, %s141
      %p145 = scmp.eq.s32.totalorder %s37, 0
      %p146 = por %p144, %p145
      %p147 = scmp.ne.s32.totalorder %s139, %s141
      %p148 = scmp.eq.s32.totalorder %s42, 1
      %p149 = por %p147, %p148
      %p150 = scmp.ne.s32.totalorder %s141, %s142
      %p151 = scmp.eq.s32.totalorder %s42, 0
      %p152 = por %p150, %p151
      %p153 = scmp.ne.s32.totalorder %s141, %s142
      %p154 = scmp.eq.s32.totalorder %s43, 1
      %p155 = por %p153, %p154
      %p157 = scmp.ne.s32.totalorder %s142, %s156
      %p158 = scmp.eq.s32.totalorder %s43, 0
      %p159 = por %p157, %p158
      %s161 = sadd.s32 %s160, 1
      %p164 = scmp.eq.s32.totalorder %s37, 1
      %p165 = scmp.ne.s32.totalorder %s160, %s162
      %p166 = scmp.eq.s32.totalorder %s37, 0
      %p167 = por %p165, %p166
      %p168 = scmp.ne.s32.totalorder %s160, %s162
      %p169 = scmp.eq.s32.totalorder %s42, 1
      %p170 = por %p168, %p169
      %p171 = scmp.ne.s32.totalorder %s162, %s163
      %p172 = scmp.eq.s32.totalorder %s42, 0
      %p173 = por %p171, %p172
      %p174 = scmp.ne.s32.totalorder %s162, %s163
      %p175 = scmp.eq.s32.totalorder %s43, 1
      %p176 = por %p174, %p175
      %p178 = scmp.ne.s32.totalorder %s163, %s177
      %p179 = scmp.eq.s32.totalorder %s43, 0
      %p180 = por %p178, %p179
      %s182 = sadd.s32 %s181, 1
      %p185 = scmp.eq.s32.totalorder %s37, 1
      %p186 = scmp.ne.s32.totalorder %s181, %s183
      %p187 = scmp.eq.s32.totalorder %s37, 0
      %p188 = por %p186, %p187
      %p189 = scmp.ne.s32.totalorder %s181, %s183
      %p190 = scmp.eq.s32.totalorder %s42, 1
      %p191 = por %p189, %p190
      %p192 = scmp.ne.s32.totalorder %s183, %s184
      %p193 = scmp.eq.s32.totalorder %s42, 0
      %p194 = por %p192, %p193
      %p195 = scmp.ne.s32.totalorder %s183, %s184
      %p196 = scmp.eq.s32.totalorder %s43, 1
      %p197 = por %p195, %p196
      %p199 = scmp.ne.s32.totalorder %s184, %s198
      %p200 = scmp.eq.s32.totalorder %s43, 0
      %p201 = por %p199, %p200
      %s203 = sadd.s32 %s202, 1
      %p206 = scmp.eq.s32.totalorder %s37, 1
      %p207 = scmp.ne.s32.totalorder %s202, %s204
      %p208 = scmp.eq.s32.totalorder %s37, 0
      %p209 = por %p207, %p208
      %p210 = scmp.ne.s32.totalorder %s202, %s204
      %p211 = scmp.eq.s32.totalorder %s42, 1
      %p212 = por %p210, %p211
      %p213 = scmp.ne.s32.totalorder %s204, %s205
      %p214 = scmp.eq.s32.totalorder %s42, 0
      %p215 = por %p213, %p214
      %p216 = scmp.ne.s32.totalorder %s204, %s205
      %p217 = scmp.eq.s32.totalorder %s43, 1
      %p218 = por %p216, %p217
      %p220 = scmp.ne.s32.totalorder %s205, %s219
      %p221 = scmp.eq.s32.totalorder %s43, 0
      %p222 = por %p220, %p221
      %s224 = sadd.s32 %s223, 1
      %p227 = scmp.eq.s32.totalorder %s37, 1
      %p228 = scmp.ne.s32.totalorder %s223, %s225
      %p229 = scmp.eq.s32.totalorder %s37, 0
      %p230 = por %p228, %p229
      %p231 = scmp.ne.s32.totalorder %s223, %s225
      %p232 = scmp.eq.s32.totalorder %s42, 1
      %p233 = por %p231, %p232
      %p234 = scmp.ne.s32.totalorder %s225, %s226
      %p235 = scmp.eq.s32.totalorder %s42, 0
      %p236 = por %p234, %p235
      %p237 = scmp.ne.s32.totalorder %s225, %s226
      %p238 = scmp.eq.s32.totalorder %s43, 1
      %p239 = por %p237, %p238
      %p241 = scmp.ne.s32.totalorder %s226, %s240
      %p242 = scmp.eq.s32.totalorder %s43, 0
      %p243 = por %p241, %p242
      %s245 = sadd.s32 %s244, 1
      %p248 = scmp.eq.s32.totalorder %s37, 1
      %p249 = scmp.ne.s32.totalorder %s244, %s246
      %p250 = scmp.eq.s32.totalorder %s37, 0
      %p251 = por %p249, %p250
      %p252 = scmp.ne.s32.totalorder %s244, %s246
      %p253 = scmp.eq.s32.totalorder %s42, 1
      %p254 = por %p252, %p253
      %p255 = scmp.ne.s32.totalorder %s246, %s247
      %p256 = scmp.eq.s32.totalorder %s42, 0
      %p257 = por %p255, %p256
      %p258 = scmp.ne.s32.totalorder %s246, %s247
      %p259 = scmp.eq.s32.totalorder %s43, 1
      %p260 = por %p258, %p259
      %p262 = scmp.ne.s32.totalorder %s247, %s261
      %p263 = scmp.eq.s32.totalorder %s43, 0
      %p264 = por %p262, %p263
      %s266 = sadd.s32 %s265, 1
      %p269 = scmp.eq.s32.totalorder %s37, 1
      %p270 = scmp.ne.s32.totalorder %s265, %s267
      %p271 = scmp.eq.s32.totalorder %s37, 0
      %p272 = por %p270, %p271
      %p273 = scmp.ne.s32.totalorder %s265, %s267
      %p274 = scmp.eq.s32.totalorder %s42, 1
      %p275 = por %p273, %p274
      %p276 = scmp.ne.s32.totalorder %s267, %s268
      %p277 = scmp.eq.s32.totalorder %s42, 0
      %p278 = por %p276, %p277
      %p279 = scmp.ne.s32.totalorder %s267, %s268
      %p280 = scmp.eq.s32.totalorder %s43, 1
      %p281 = por %p279, %p280
      %p283 = scmp.ne.s32.totalorder %s268, %s282
      %p284 = scmp.eq.s32.totalorder %s43, 0
      %p285 = por %p283, %p284
      %s287 = sadd.s32 %s286, 1
      %p290 = scmp.eq.s32.totalorder %s37, 1
      %p291 = scmp.ne.s32.totalorder %s286, %s288
      %p292 = scmp.eq.s32.totalorder %s37, 0
      %p293 = por %p291, %p292
      %p294 = scmp.ne.s32.totalorder %s286, %s288
      %p295 = scmp.eq.s32.totalorder %s42, 1
      %p296 = por %p294, %p295
      %p297 = scmp.ne.s32.totalorder %s288, %s289
      %p298 = scmp.eq.s32.totalorder %s42, 0
      %p299 = por %p297, %p298
      %p300 = scmp.ne.s32.totalorder %s288, %s289
      %p301 = scmp.eq.s32.totalorder %s43, 1
      %p302 = por %p300, %p301
      %p304 = scmp.ne.s32.totalorder %s289, %s303
      %p305 = scmp.eq.s32.totalorder %s43, 0
      %p306 = por %p304, %p305
      %s308 = sadd.s32 %s307, 1
      %p311 = scmp.eq.s32.totalorder %s37, 1
      %p312 = scmp.ne.s32.totalorder %s307, %s309
      %p313 = scmp.eq.s32.totalorder %s37, 0
      %p314 = por %p312, %p313
      %p315 = scmp.ne.s32.totalorder %s307, %s309
      %p316 = scmp.eq.s32.totalorder %s42, 1
      %p317 = por %p315, %p316
      %p318 = scmp.ne.s32.totalorder %s309, %s310
      %p319 = scmp.eq.s32.totalorder %s42, 0
      %p320 = por %p318, %p319
      %p321 = scmp.ne.s32.totalorder %s309, %s310
      %p322 = scmp.eq.s32.totalorder %s43, 1
      %p323 = por %p321, %p322
      %p325 = scmp.ne.s32.totalorder %s310, %s324
      %p326 = scmp.eq.s32.totalorder %s43, 0
      %p327 = por %p325, %p326
      %s329 = sadd.s32 %s328, 1
      %p332 = scmp.eq.s32.totalorder %s37, 1
      %p333 = scmp.ne.s32.totalorder %s328, %s330
      %p334 = scmp.eq.s32.totalorder %s37, 0
      %p335 = por %p333, %p334
      %p336 = scmp.ne.s32.totalorder %s328, %s330
      %p337 = scmp.eq.s32.totalorder %s42, 1
      %p338 = por %p336, %p337
      %p339 = scmp.ne.s32.totalorder %s330, %s331
      %p340 = scmp.eq.s32.totalorder %s42, 0
      %p341 = por %p339, %p340
      %p342 = scmp.ne.s32.totalorder %s330, %s331
      %p343 = scmp.eq.s32.totalorder %s43, 1
      %p344 = por %p342, %p343
      %p346 = scmp.ne.s32.totalorder %s331, %s345
      %p347 = scmp.eq.s32.totalorder %s43, 0
      %p348 = por %p346, %p347
      %s350 = sadd.s32 %s349, 1
      %p353 = scmp.eq.s32.totalorder %s37, 1
      %p354 = scmp.ne.s32.totalorder %s349, %s351
      %p355 = scmp.eq.s32.totalorder %s37, 0
      %p356 = por %p354, %p355
      %p357 = scmp.ne.s32.totalorder %s349, %s351
      %p358 = scmp.eq.s32.totalorder %s42, 1
      %p359 = por %p357, %p358
      %p360 = scmp.ne.s32.totalorder %s351, %s352
      %p361 = scmp.eq.s32.totalorder %s42, 0
      %p362 = por %p360, %p361
      %p363 = scmp.ne.s32.totalorder %s351, %s352
      %p364 = scmp.eq.s32.totalorder %s43, 1
      %p365 = por %p363, %p364
      %p367 = scmp.ne.s32.totalorder %s352, %s366
      %p368 = scmp.eq.s32.totalorder %s43, 0
      %p369 = por %p367, %p368
      %s371 = sadd.s32 %s370, 1
      %p374 = scmp.eq.s32.totalorder %s37, 1
      %p375 = scmp.ne.s32.totalorder %s370, %s372
      %p376 = scmp.eq.s32.totalorder %s37, 0
      %p377 = por %p375, %p376
      %p378 = scmp.ne.s32.totalorder %s370, %s372
      %p379 = scmp.eq.s32.totalorder %s42, 1
      %p380 = por %p378, %p379
      %p381 = scmp.ne.s32.totalorder %s372, %s373
      %p382 = scmp.eq.s32.totalorder %s42, 0
      %p383 = por %p381, %p382
      %p384 = scmp.ne.s32.totalorder %s372, %s373
      %p385 = scmp.eq.s32.totalorder %s43, 1
      %p386 = por %p384, %p385
      %p388 = scmp.ne.s32.totalorder %s373, %s387
      %p389 = scmp.eq.s32.totalorder %s43, 0
      %p390 = por %p388, %p389
      %s392 = sadd.s32 %s391, 1
      %p395 = scmp.eq.s32.totalorder %s37, 1
      %p396 = scmp.ne.s32.totalorder %s391, %s393
      %p397 = scmp.eq.s32.totalorder %s37, 0
      %p398 = por %p396, %p397
      %p399 = scmp.ne.s32.totalorder %s391, %s393
      %p400 = scmp.eq.s32.totalorder %s42, 1
      %p401 = por %p399, %p400
      %p402 = scmp.ne.s32.totalorder %s393, %s394
      %p403 = scmp.eq.s32.totalorder %s42, 0
      %p404 = por %p402, %p403
      %p405 = scmp.ne.s32.totalorder %s393, %s394
      %p406 = scmp.eq.s32.totalorder %s43, 1
      %p407 = por %p405, %p406
      %p409 = scmp.ne.s32.totalorder %s394, %s408
      %p410 = scmp.eq.s32.totalorder %s43, 0
      %p411 = por %p409, %p410
      %s413 = sadd.s32 %s412, 1
      %p416 = scmp.eq.s32.totalorder %s37, 1
      %p417 = scmp.ne.s32.totalorder %s412, %s414
      %p418 = scmp.eq.s32.totalorder %s37, 0
      %p419 = por %p417, %p418
      %p420 = scmp.ne.s32.totalorder %s412, %s414
      %p421 = scmp.eq.s32.totalorder %s42, 1
      %p422 = por %p420, %p421
      %p423 = scmp.ne.s32.totalorder %s414, %s415
      %p424 = scmp.eq.s32.totalorder %s42, 0
      %p425 = por %p423, %p424
      %p426 = scmp.ne.s32.totalorder %s414, %s415
      %p427 = scmp.eq.s32.totalorder %s43, 1
      %p428 = por %p426, %p427
      %p430 = scmp.ne.s32.totalorder %s415, %s429
      %p431 = scmp.eq.s32.totalorder %s43, 0
      %p432 = por %p430, %p431
      %s433 = ssub.s32 %s37, %s44
      %p434 = scmp.eq.s32.totalorder %s433, 0
      %s436 = sadd.s32 %s435, 1
      %s437 = scalar_select %p434, %s435, %s436
      %p440 = pneg %p434
      %p441 = scmp.eq.s32.totalorder %s37, 1
      %p442 = por %p440, %p441
      %p443 = scmp.ne.s32.totalorder %s435, %s438
      %p444 = scmp.eq.s32.totalorder %s37, 0
      %p445 = por %p443, %p444
      %p446 = scmp.ne.s32.totalorder %s435, %s438
      %p447 = scmp.eq.s32.totalorder %s42, 1
      %p448 = por %p446, %p447
      %p449 = scmp.ne.s32.totalorder %s438, %s439
      %p450 = scmp.eq.s32.totalorder %s42, 0
      %p451 = por %p449, %p450
      %p452 = scmp.ne.s32.totalorder %s438, %s439
      %p453 = scmp.eq.s32.totalorder %s43, 1
      %p454 = por %p452, %p453
      %p456 = scmp.ne.s32.totalorder %s439, %s455
      %p457 = scmp.eq.s32.totalorder %s43, 0
      %p458 = por %p456, %p457
      %p459 = scmp.le.s32.totalorder 1, %s37
      %p460 = scmp.lt.s32.totalorder %s37, 3
      %p461 = pnand %p459, %p460
      %p462 = pneg %p461
      // Predicated region
      $region9: #{tpu_custom_call.1} parent=5 // pred_check
        _
      $region10: #{tpu_custom_call.1} parent=5 // pred_check_branch
        %464 = sbr.rel (%p461) target = $region12
      $region11: #{tpu_custom_call.1} parent=5 // pred_region
        %s465 = ssub.s32 %s37, 1
        // Predicated region
        $region13: #{tpu_custom_call.1} parent=11 // pred_check
          %p466 = pneg %p110
        $region14: #{tpu_custom_call.1} parent=11 // pred_check_branch
          %468 = sbr.rel (%p466) target = $region16
        $region15: #{tpu_custom_call.1} parent=11 // pred_region
          %470 = vsyncadd [#allocation6], 0
          %s471 = sshll.u32 %s2, 4
          %s472 = int_to_ptr.hbm [resolvable:$true] %s471
          %s473 = sshll.u32 [#allocation7], 4
          %s474 = int_to_ptr.vmem [resolvable:$true] %s473
          %479 = dma.hbm_to_vmem [thread:$0]  %s472, 256, %s474, [#allocation6], 64, 64, 4
        $region16: #{tpu_custom_call.1} parent=11 // pred_fallthru
          _
        // Predicated region
        $region17: #{tpu_custom_call.1} parent=11 // pred_check
          %p480 = pneg %p131
        $region18: #{tpu_custom_call.1} parent=11 // pred_check_branch
          %482 = sbr.rel (%p480) target = $region20
        $region19: #{tpu_custom_call.1} parent=11 // pred_region
          _
        $region20: #{tpu_custom_call.1} parent=11 // pred_fallthru
          _
        // Predicated region
        $region21: #{tpu_custom_call.1} parent=11 // pred_check
          %p483 = pneg %p152
        $region22: #{tpu_custom_call.1} parent=11 // pred_check_branch
          %485 = sbr.rel (%p483) target = $region24
        $region23: #{tpu_custom_call.1} parent=11 // pred_region
          %487 = vsyncadd [#allocation9], 0
          %s488 = sshll.u32 %s4, 4
          %s489 = int_to_ptr.hbm [resolvable:$true] %s488
          %s490 = sshll.u32 [#allocation8], 4
          %s491 = int_to_ptr.vmem [resolvable:$true] %s490
          %496 = dma.hbm_to_vmem [thread:$0]  %s489, 256, %s491, [#allocation9], 64, 64, 4
        $region24: #{tpu_custom_call.1} parent=11 // pred_fallthru
          _
        // Predicated region
        $region25: #{tpu_custom_call.1} parent=11 // pred_check
          %p497 = pneg %p173
        $region26: #{tpu_custom_call.1} parent=11 // pred_check_branch
          %499 = sbr.rel (%p497) target = $region28
        $region27: #{tpu_custom_call.1} parent=11 // pred_region
          _
        $region28: #{tpu_custom_call.1} parent=11 // pred_fallthru
          _
        // Predicated region
        $region29: #{tpu_custom_call.1} parent=11 // pred_check
          %p500 = pneg %p194
        $region30: #{tpu_custom_call.1} parent=11 // pred_check_branch
          %502 = sbr.rel (%p500) target = $region32
        $region31: #{tpu_custom_call.1} parent=11 // pred_region
          %504 = vsyncadd [#allocation9], 0
          %s505 = sshll.u32 %s6, 4
          %s506 = int_to_ptr.hbm [resolvable:$true] %s505
          %s507 = sshll.u32 [#allocation10], 4
          %s508 = int_to_ptr.vmem [resolvable:$true] %s507
          %513 = dma.hbm_to_vmem [thread:$0]  %s506, 256, %s508, [#allocation9], 64, 64, 4
        $region32: #{tpu_custom_call.1} parent=11 // pred_fallthru
          _
        // Predicated region
        $region33: #{tpu_custom_call.1} parent=11 // pred_check
          %p514 = pneg %p215
        $region34: #{tpu_custom_call.1} parent=11 // pred_check_branch
          %516 = sbr.rel (%p514) target = $region36
        $region35: #{tpu_custom_call.1} parent=11 // pred_region
          _
        $region36: #{tpu_custom_call.1} parent=11 // pred_fallthru
          _
        // Predicated region
        $region37: #{tpu_custom_call.1} parent=11 // pred_check
          %p517 = pneg %p236
        $region38: #{tpu_custom_call.1} parent=11 // pred_check_branch
          %519 = sbr.rel (%p517) target = $region40
        $region39: #{tpu_custom_call.1} parent=11 // pred_region
          %521 = vsyncadd [#allocation12], 0
          %s522 = sshll.u32 %s8, 4
          %s523 = int_to_ptr.hbm [resolvable:$true] %s522
          %s524 = sshll.u32 [#allocation11], 4
          %s525 = int_to_ptr.vmem [resolvable:$true] %s524
          %530 = dma.hbm_to_vmem [thread:$0]  %s523, 256, %s525, [#allocation12], 64, 64, 4
        $region40: #{tpu_custom_call.1} parent=11 // pred_fallthru
          _
        // Predicated region
        $region41: #{tpu_custom_call.1} parent=11 // pred_check
          %p531 = pneg %p257
        $region42: #{tpu_custom_call.1} parent=11 // pred_check_branch
          %533 = sbr.rel (%p531) target = $region44
        $region43: #{tpu_custom_call.1} parent=11 // pred_region
          _
        $region44: #{tpu_custom_call.1} parent=11 // pred_fallthru
          _
        // Predicated region
        $region45: #{tpu_custom_call.1} parent=11 // pred_check
          %p534 = pneg %p278
        $region46: #{tpu_custom_call.1} parent=11 // pred_check_branch
          %536 = sbr.rel (%p534) target = $region48
        $region47: #{tpu_custom_call.1} parent=11 // pred_region
          %538 = vsyncadd [#allocation12], 0
          %s539 = sshll.u32 %s10, 4
          %s540 = int_to_ptr.hbm [resolvable:$true] %s539
          %s541 = sshll.u32 [#allocation13], 4
          %s542 = int_to_ptr.vmem [resolvable:$true] %s541
          %547 = dma.hbm_to_vmem [thread:$0]  %s540, 768, %s542, [#allocation12], 64, 64, 4
        $region48: #{tpu_custom_call.1} parent=11 // pred_fallthru
          _
        // Predicated region
        $region49: #{tpu_custom_call.1} parent=11 // pred_check
          %p548 = pneg %p299
        $region50: #{tpu_custom_call.1} parent=11 // pred_check_branch
          %550 = sbr.rel (%p548) target = $region52
        $region51: #{tpu_custom_call.1} parent=11 // pred_region
          _
        $region52: #{tpu_custom_call.1} parent=11 // pred_fallthru
          _
        // Predicated region
        $region53: #{tpu_custom_call.1} parent=11 // pred_check
          %p551 = pneg %p320
        $region54: #{tpu_custom_call.1} parent=11 // pred_check_branch
          %553 = sbr.rel (%p551) target = $region56
        $region55: #{tpu_custom_call.1} parent=11 // pred_region
          %555 = vsyncadd [#allocation15], 0
          %s556 = sshll.u32 %s12, 4
          %s557 = int_to_ptr.hbm [resolvable:$true] %s556
          %s558 = sshll.u32 [#allocation14], 4
          %s559 = int_to_ptr.vmem [resolvable:$true] %s558
          %564 = dma.hbm_to_vmem [thread:$0]  %s557, 1280, %s559, [#allocation15], 64, 64, 4
        $region56: #{tpu_custom_call.1} parent=11 // pred_fallthru
          _
        // Predicated region
        $region57: #{tpu_custom_call.1} parent=11 // pred_check
          %p565 = pneg %p341
        $region58: #{tpu_custom_call.1} parent=11 // pred_check_branch
          %567 = sbr.rel (%p565) target = $region60
        $region59: #{tpu_custom_call.1} parent=11 // pred_region
          _
        $region60: #{tpu_custom_call.1} parent=11 // pred_fallthru
          _
        // Predicated region
        $region61: #{tpu_custom_call.1} parent=11 // pred_check
          %p568 = pneg %p362
        $region62: #{tpu_custom_call.1} parent=11 // pred_check_branch
          %570 = sbr.rel (%p568) target = $region64
        $region63: #{tpu_custom_call.1} parent=11 // pred_region
          %572 = vsyncadd [#allocation15], 0
          %s573 = sshll.u32 %s14, 4
          %s574 = int_to_ptr.hbm [resolvable:$true] %s573
          %s575 = sshll.u32 [#allocation16], 4
          %s576 = int_to_ptr.vmem [resolvable:$true] %s575
          %581 = dma.hbm_to_vmem [thread:$0]  %s574, 256, %s576, [#allocation15], 64, 64, 4
        $region64: #{tpu_custom_call.1} parent=11 // pred_fallthru
          _
        // Predicated region
        $region65: #{tpu_custom_call.1} parent=11 // pred_check
          %p582 = pneg %p383
        $region66: #{tpu_custom_call.1} parent=11 // pred_check_branch
          %584 = sbr.rel (%p582) target = $region68
        $region67: #{tpu_custom_call.1} parent=11 // pred_region
          %586 = vsyncadd [#allocation18], 0
          %s587 = sshll.u32 %s15, 4
          %s588 = int_to_ptr.hbm [resolvable:$true] %s587
          %s589 = sshll.u32 [#allocation17], 4
          %s590 = int_to_ptr.vmem [resolvable:$true] %s589
          %595 = dma.hbm_to_vmem [thread:$0]  %s588, 256, %s590, [#allocation18], 64, 64, 4
        $region68: #{tpu_custom_call.1} parent=11 // pred_fallthru
          _
        // Predicated region
        $region69: #{tpu_custom_call.1} parent=11 // pred_check
          %p596 = pneg %p404
        $region70: #{tpu_custom_call.1} parent=11 // pred_check_branch
          %598 = sbr.rel (%p596) target = $region72
        $region71: #{tpu_custom_call.1} parent=11 // pred_region
          %600 = vsyncadd [#allocation18], 0
          %s601 = sshll.u32 %s16, 4
          %s602 = int_to_ptr.hbm [resolvable:$true] %s601
          %s603 = sshll.u32 [#allocation19], 4
          %s604 = int_to_ptr.vmem [resolvable:$true] %s603
          %609 = dma.hbm_to_vmem [thread:$0]  %s602, 256, %s604, [#allocation18], 64, 64, 4
        $region72: #{tpu_custom_call.1} parent=11 // pred_fallthru
          _
        // Predicated region
        $region73: #{tpu_custom_call.1} parent=11 // pred_check
          %p610 = pneg %p425
        $region74: #{tpu_custom_call.1} parent=11 // pred_check_branch
          %612 = sbr.rel (%p610) target = $region76
        $region75: #{tpu_custom_call.1} parent=11 // pred_region
          _
        $region76: #{tpu_custom_call.1} parent=11 // pred_fallthru
          _
      $region12: #{tpu_custom_call.1} parent=5 // pred_fallthru
        _
      %p613 = scmp.lt.s32.totalorder %s37, 2
      // Predicated region
      $region77: #{tpu_custom_call.1} parent=5 // pred_check
        %p614 = pneg %p613
      $region78: #{tpu_custom_call.1} parent=5 // pred_check_branch
        %616 = sbr.rel (%p614) target = $region80
      $region79: #{tpu_custom_call.1} parent=5 // pred_region
        // Predicated region
        $region81: #{tpu_custom_call.1} parent=79 // pred_check
          %p617 = pneg %p57
        $region82: #{tpu_custom_call.1} parent=79 // pred_check_branch
          %619 = sbr.rel (%p617) target = $region84
        $region83: #{tpu_custom_call.1} parent=79 // pred_region
          %s620 = sand.u32 %s47, 1
          %s621 = scalar_lea.sflag [#allocation3], %s620
          %s622 = sand.u32 %s47, 1
          %s623 = scalar_lea.vmem [#allocation2], %s622
          %625 = vsyncadd %s621, 0
          %s626 = scalar_lea.hbm %s0, %s37
          %s628 = sshll.u32 %s626, 4
          %s629 = int_to_ptr.hbm [resolvable:$true] %s628
          %s630 = sshll.u32 %s623, 4
          %s631 = int_to_ptr.vmem [resolvable:$true] %s630
          %633 = dma.hbm_to_vmem [thread:$0]  %s629, 16, %s631, %s621
        $region84: #{tpu_custom_call.1} parent=79 // pred_fallthru
          _
        // Predicated region
        $region85: #{tpu_custom_call.1} parent=79 // pred_check
          %p634 = pneg %p83
        $region86: #{tpu_custom_call.1} parent=79 // pred_check_branch
          %636 = sbr.rel (%p634) target = $region88
        $region87: #{tpu_custom_call.1} parent=79 // pred_region
          %s637 = sand.u32 %s37, 1
          %s638 = scalar_lea.sflag [#allocation6], %s637
          %s639 = sand.u32 %s73, 1
          %s640 = smul.addr %s639, 8
          %s641 = scalar_lea.vmem [#allocation5], %s640
          %643 = vsyncadd %s638, 0
          %s644 = smul.addr %s37, 2
          %s645 = smul.addr %s644, 4
          %s646 = scalar_lea.hbm %s1, %s645
          %s647 = sshll.u32 %s646, 4
          %s648 = int_to_ptr.hbm [resolvable:$true] %s647
          %s649 = sshll.u32 %s641, 4
          %s650 = int_to_ptr.vmem [resolvable:$true] %s649
          %655 = dma.hbm_to_vmem [thread:$0]  %s648, 128, %s650, %s638, 64, 64, 4
        $region88: #{tpu_custom_call.1} parent=79 // pred_fallthru
          _
      $region80: #{tpu_custom_call.1} parent=5 // pred_fallthru
        _
      %p656 = scmp.le.s32.totalorder 1, %s37
      %p657 = scmp.lt.s32.totalorder %s37, 3
      %p658 = pnand %p656, %p657
      %p659 = pneg %p658
      // Predicated region
      $region89: #{tpu_custom_call.1} parent=5 // pred_check
        _
      $region90: #{tpu_custom_call.1} parent=5 // pred_check_branch
        %661 = sbr.rel (%p658) target = $region92
      $region91: #{tpu_custom_call.1} parent=5 // pred_region
        %s662 = ssub.s32 %s37, 1
        %s663 = sand.u32 %s50, 1
        %s664 = scalar_lea.sflag [#allocation3], %s663
        %s665 = sand.u32 %s50, 1
        %s666 = scalar_lea.vmem [#allocation2], %s665
        // Predicated region
        $region93: #{tpu_custom_call.1} parent=91 // pred_check
          %p667 = pneg %p63
        $region94: #{tpu_custom_call.1} parent=91 // pred_check_branch
          %669 = sbr.rel (%p667) target = $region96
        $region95: #{tpu_custom_call.1} parent=91 // pred_region
          %671 = dma.done %s664, 16
        $region96: #{tpu_custom_call.1} parent=91 // pred_fallthru
          _
        %s672 = sand.u32 %s42, 1
        %s673 = scalar_lea.sflag [#allocation6], %s672
        %s674 = sand.u32 %s76, 1
        %s675 = smul.addr %s674, 8
        %s676 = scalar_lea.vmem [#allocation5], %s675
        // Predicated region
        $region97: #{tpu_custom_call.1} parent=91 // pred_check
          %p677 = pneg %p89
        $region98: #{tpu_custom_call.1} parent=91 // pred_check_branch
          %679 = sbr.rel (%p677) target = $region100
        $region99: #{tpu_custom_call.1} parent=91 // pred_region
          %681 = dma.done %s673, 128
        $region100: #{tpu_custom_call.1} parent=91 // pred_fallthru
          _
        // Predicated region
        $region101: #{tpu_custom_call.1} parent=91 // pred_check
          %p682 = pneg %p110
        $region102: #{tpu_custom_call.1} parent=91 // pred_check_branch
          %684 = sbr.rel (%p682) target = $region104
        $region103: #{tpu_custom_call.1} parent=91 // pred_region
          %686 = dma.done [#allocation6], 256
        $region104: #{tpu_custom_call.1} parent=91 // pred_fallthru
          _
        // Predicated region
        $region105: #{tpu_custom_call.1} parent=91 // pred_check
          %p687 = pneg %p152
        $region106: #{tpu_custom_call.1} parent=91 // pred_check_branch
          %689 = sbr.rel (%p687) target = $region108
        $region107: #{tpu_custom_call.1} parent=91 // pred_region
          %691 = dma.done [#allocation9], 256
        $region108: #{tpu_custom_call.1} parent=91 // pred_fallthru
          _
        // Predicated region
        $region109: #{tpu_custom_call.1} parent=91 // pred_check
          %p692 = pneg %p194
        $region110: #{tpu_custom_call.1} parent=91 // pred_check_branch
          %694 = sbr.rel (%p692) target = $region112
        $region111: #{tpu_custom_call.1} parent=91 // pred_region
          %696 = dma.done [#allocation9], 256
        $region112: #{tpu_custom_call.1} parent=91 // pred_fallthru
          _
        // Predicated region
        $region113: #{tpu_custom_call.1} parent=91 // pred_check
          %p697 = pneg %p236
        $region114: #{tpu_custom_call.1} parent=91 // pred_check_branch
          %699 = sbr.rel (%p697) target = $region116
        $region115: #{tpu_custom_call.1} parent=91 // pred_region
          %701 = dma.done [#allocation12], 256
        $region116: #{tpu_custom_call.1} parent=91 // pred_fallthru
          _
        // Predicated region
        $region117: #{tpu_custom_call.1} parent=91 // pred_check
          %p702 = pneg %p278
        $region118: #{tpu_custom_call.1} parent=91 // pred_check_branch
          %704 = sbr.rel (%p702) target = $region120
        $region119: #{tpu_custom_call.1} parent=91 // pred_region
          %706 = dma.done [#allocation12], 768
        $region120: #{tpu_custom_call.1} parent=91 // pred_fallthru
          _
        // Predicated region
        $region121: #{tpu_custom_call.1} parent=91 // pred_check
          %p707 = pneg %p320
        $region122: #{tpu_custom_call.1} parent=91 // pred_check_branch
          %709 = sbr.rel (%p707) target = $region124
        $region123: #{tpu_custom_call.1} parent=91 // pred_region
          %711 = dma.done [#allocation15], 1280
        $region124: #{tpu_custom_call.1} parent=91 // pred_fallthru
          _
        // Predicated region
        $region125: #{tpu_custom_call.1} parent=91 // pred_check
          %p712 = pneg %p362
        $region126: #{tpu_custom_call.1} parent=91 // pred_check_branch
          %714 = sbr.rel (%p712) target = $region128
        $region127: #{tpu_custom_call.1} parent=91 // pred_region
          %716 = dma.done [#allocation15], 256
        $region128: #{tpu_custom_call.1} parent=91 // pred_fallthru
          _
        // Predicated region
        $region129: #{tpu_custom_call.1} parent=91 // pred_check
          %p717 = pneg %p383
        $region130: #{tpu_custom_call.1} parent=91 // pred_check_branch
          %719 = sbr.rel (%p717) target = $region132
        $region131: #{tpu_custom_call.1} parent=91 // pred_region
          %721 = dma.done [#allocation18], 256
        $region132: #{tpu_custom_call.1} parent=91 // pred_fallthru
          _
        // Predicated region
        $region133: #{tpu_custom_call.1} parent=91 // pred_check
          %p722 = pneg %p404
        $region134: #{tpu_custom_call.1} parent=91 // pred_check_branch
          %724 = sbr.rel (%p722) target = $region136
        $region135: #{tpu_custom_call.1} parent=91 // pred_region
          %726 = dma.done [#allocation18], 256
        $region136: #{tpu_custom_call.1} parent=91 // pred_fallthru
          _
        %s727 = sand.u32 %s50, 1
        %s728 = scalar_lea.sflag [#allocation3], %s727
        %s729 = sand.u32 %s50, 1
        %s730 = scalar_lea.vmem [#allocation2], %s729
        %p731 = pneg %p63
        %p732 = pneg %p60
        %s733 = sand.u32 %s42, 1
        %s734 = scalar_lea.sflag [#allocation6], %s733
        %s735 = sand.u32 %s76, 1
        %s736 = smul.addr %s735, 8
        %s737 = scalar_lea.vmem [#allocation5], %s736
        %p738 = pneg %p89
        %p739 = pneg %p86
        %p740 = pneg %p110
        %p741 = pneg %p107
        %p742 = pneg %p131
        %p743 = pneg %p128
        %p744 = pneg %p152
        %p745 = pneg %p149
        %p746 = pneg %p173
        %p747 = pneg %p170
        %p748 = pneg %p194
        %p749 = pneg %p191
        %p750 = pneg %p215
        %p751 = pneg %p212
        %p752 = pneg %p236
        %p753 = pneg %p233
        %p754 = pneg %p257
        %p755 = pneg %p254
        %p756 = pneg %p278
        %p757 = pneg %p275
        %p758 = pneg %p299
        %p759 = pneg %p296
        %p760 = pneg %p320
        %p761 = pneg %p317
        %p762 = pneg %p341
        %p763 = pneg %p338
        %p764 = pneg %p362
        %p765 = pneg %p359
        %p766 = pneg %p383
        %p767 = pneg %p380
        %p768 = pneg %p404
        %p769 = pneg %p401
        %p770 = pneg %p425
        %p771 = pneg %p422
        %p772 = pneg %p451
        %p773 = pneg %p448
        %s774 = sand.u32 %s438, 1
        %s775 = scalar_lea.sflag [#allocation4], %s774
        %s776 = sand.u32 %s438, 1
        %s777 = smul.addr %s776, 8
        %s778 = scalar_lea.vmem [#allocation20], %s777
        %v780 = vld [vmem:[%s676] sm:$0xf]
        %v781 = vld [vmem:[%s676 + $0x4] sm:$0xf]
        %v782 = vld [vmem:[%s666] sm:$0x1]
        %v783 = vld [vmem:[#allocation7] sm:$0xf]
        %v784 = vld [vmem:[#allocation7 + $0x4] sm:$0xf]
        %v785 = vld [vmem:[#allocation7 + $0x8] sm:$0xf]
        %v786 = vld [vmem:[#allocation7 + $0xc] sm:$0xf]
        %v787 = vld [vmem:[%s3] sm:$0x1]
        %v789 = vperm.slane %v787, 0
        %v793 = vunpack.c.l.b16 %v780
        %v794 = vunpack.c.l.b16 %v781
        %v795 = vpack.c.b16 %v794, %v793
        %v800 = vunpack.c.l.b16 %v783
        %v801 = vunpack.c.l.b16 %v784
        %v802 = vunpack.c.l.b16 %v785
        %v803 = vunpack.c.l.b16 %v786
        %v804 = vpack.c.b16 %v801, %v800
        %v805 = vpack.c.b16 %v803, %v802
        %vm808 = vcmask 261120
        %v810 = vsel %vm808, %v795, 0
        %812 = vmatpush.bf16.msra.mxu0 0
        %813 = vmatpush.bf16.msra.mxu0 0
        %814 = vmatpush.bf16.msra.mxu0 0
        %815 = vmatpush.bf16.msra.mxu0 0
        %816 = vmatpush.bf16.msra.mxu0 0
        %817 = vmatpush.bf16.msra.mxu0 0
        %818 = vmatpush.bf16.msra.mxu0 %v805
        %819 = vmatpush.bf16.msra.mxu0 %v804
        %820 = vmatmul.bf16.gmra.mxu0 %v810
        %v821 = vpop.f32.mrf.mxu0
        %v822 = vadd.f32 %v789, %v821
        %v823 = vpop.f32.mrf.mxu0
        %v824 = vadd.f32 %v789, %v823
        %825 = vdwg.mxu0
        %v826 = vld [vmem:[#allocation8] sm:$0xf]
        %v827 = vld [vmem:[#allocation8 + $0x4] sm:$0xf]
        %v828 = vld [vmem:[#allocation8 + $0x8] sm:$0xf]
        %v829 = vld [vmem:[#allocation8 + $0xc] sm:$0xf]
        %v830 = vld [vmem:[%s5] sm:$0x1]
        %v832 = vperm.slane %v830, 0
        %v838 = vunpack.c.l.b16 %v826
        %v839 = vunpack.c.l.b16 %v827
        %v840 = vunpack.c.l.b16 %v828
        %v841 = vunpack.c.l.b16 %v829
        %v842 = vpack.c.b16 %v839, %v838
        %v843 = vpack.c.b16 %v841, %v840
        %846 = vmatpush.bf16.msra.mxu0 0
        %847 = vmatpush.bf16.msra.mxu0 0
        %848 = vmatpush.bf16.msra.mxu0 0
        %849 = vmatpush.bf16.msra.mxu0 0
        %850 = vmatpush.bf16.msra.mxu0 0
        %851 = vmatpush.bf16.msra.mxu0 0
        %852 = vmatpush.bf16.msra.mxu0 %v843
        %853 = vmatpush.bf16.msra.mxu0 %v842
        %854 = vmatmul.bf16.gmra.mxu0 %v810
        %v855 = vpop.f32.mrf.mxu0
        %v856 = vadd.f32 %v832, %v855
        %v857 = vpop.f32.mrf.mxu0
        %v858 = vadd.f32 %v832, %v857
        %859 = vdwg.mxu0
        %v860 = vld [vmem:[#allocation10] sm:$0xf]
        %v861 = vld [vmem:[#allocation10 + $0x4] sm:$0xf]
        %v862 = vld [vmem:[#allocation10 + $0x8] sm:$0xf]
        %v863 = vld [vmem:[#allocation10 + $0xc] sm:$0xf]
        %v864 = vld [vmem:[%s7] sm:$0x1]
        %v866 = vperm.slane %v864, 0
        %v872 = vunpack.c.l.b16 %v860
        %v873 = vunpack.c.l.b16 %v861
        %v874 = vunpack.c.l.b16 %v862
        %v875 = vunpack.c.l.b16 %v863
        %v876 = vpack.c.b16 %v873, %v872
        %v877 = vpack.c.b16 %v875, %v874
        %880 = vmatpush.bf16.msra.mxu0 0
        %881 = vmatpush.bf16.msra.mxu0 0
        %882 = vmatpush.bf16.msra.mxu0 0
        %883 = vmatpush.bf16.msra.mxu0 0
        %884 = vmatpush.bf16.msra.mxu0 0
        %885 = vmatpush.bf16.msra.mxu0 0
        %886 = vmatpush.bf16.msra.mxu0 %v877
        %887 = vmatpush.bf16.msra.mxu0 %v876
        %888 = vmatmul.bf16.gmra.mxu0 %v810
        %v889 = vpop.f32.mrf.mxu0
        %v890 = vadd.f32 %v866, %v889
        %v891 = vpop.f32.mrf.mxu0
        %v892 = vadd.f32 %v866, %v891
        %893 = vdwg.mxu0
        %v894 = vpack.c.bf16 %v822, %v822
        %v895 = vpack.c.bf16 %v824, %v824
        %v896 = vpack.c.bf16 %v856, %v856
        %v897 = vpack.c.bf16 %v858, %v858
        %v898 = vpack.c.bf16 %v890, %v890
        %v899 = vpack.c.bf16 %v892, %v892
        %v902 = vunpack.c.l.b16 %v894
        %v903 = vunpack.c.l.b16 %v895
        %v904 = vpack.c.b16 %v903, %v902
        %v907 = vunpack.c.l.b16 %v896
        %v908 = vunpack.c.l.b16 %v897
        %v909 = vpack.c.b16 %v908, %v907
        %v911 = vsel %vm808, %v904, 0
        %v914 = vsel %vm808, %v909, 0
        %916 = vmatpush.bf16.xpose.msra.mxu0 0
        %917 = vmatpush.bf16.xpose.msra.mxu0 0
        %918 = vmatpush.bf16.xpose.msra.mxu0 0
        %919 = vmatpush.bf16.xpose.msra.mxu0 0
        %920 = vmatpush.bf16.xpose.msra.mxu0 0
        %921 = vmatpush.bf16.xpose.msra.mxu0 0
        %922 = vmatpush.bf16.xpose.msra.mxu0 0
        %923 = vmatpush.bf16.xpose.msra.mxu0 %v914
        %924 = vmatmul.bf16.gmra.mxu0 %v911
        %v925 = vpop.f32.mrf.mxu0
        %v926 = vadd.f32 0.0, %v925
        %v927 = vpop.f32.mrf.mxu0
        %v928 = vadd.f32 0.0, %v927
        %929 = vdwg.mxu0
        %vm930 = vcmp.gt.f32.partialorder %v782, 0.0
        %v931 = vsel %vm930, 1, 0
        %v932 = vperm.slane %v931, 0
        %vm933 = vcmp.eq.s32.totalorder %v932, 1
        %v934 = vsel %vm933, %v926, -1e+09
        %v935 = vsel %vm933, %v928, -1e+09
        %vm936 = vcmask 130048
        %v937 = vsel %vm936, %v934, -inf
        %938 = vmax.xlane.f32.xlu0 %v937
        %v939 = vpop.xlane.xlu0 %938
        %v940 = vsel %vm936, %v935, -inf
        %941 = vmax.xlane.f32.xlu0 %v940
        %v942 = vpop.xlane.xlu0 %941
        %v943 = vsub.f32 %v934, %v939
        %v944 = vsub.f32 %v935, %v942
        %v945 = vmul.f32 %v943, 1.442695
        %v946 = vpow.pop %v945
        %v947 = vmul.f32 %v944, 1.442695
        %v948 = vpow.pop %v947
        %v949 = vsel %vm936, %v946, 0.0
        %950 = vadd.xlane.f32.xlu0 %v949
        %v951 = vpop.xlane.xlu0 %950
        %v952 = vsel %vm936, %v948, 0.0
        %953 = vadd.xlane.f32.xlu0 %v952
        %v954 = vpop.xlane.xlu0 %953
        %v955 = vrcp.pop %v951
        %v956 = vrcp.pop %v954
        %v957 = vmul.f32 %v946, %v955
        %v958 = vmul.f32 %v948, %v956
        %v959 = vpack.c.bf16 %v957, %v957
        %v960 = vpack.c.bf16 %v958, %v958
        %v963 = vunpack.c.l.b16 %v959
        %v964 = vunpack.c.l.b16 %v960
        %v965 = vpack.c.b16 %v964, %v963
        %v968 = vunpack.c.l.b16 %v898
        %v969 = vunpack.c.l.b16 %v899
        %v970 = vpack.c.b16 %v969, %v968
        %v973 = vsel %vm936, %v965, 0
        %975 = vmatpush.bf16.msra.mxu0 0
        %976 = vmatpush.bf16.msra.mxu0 0
        %977 = vmatpush.bf16.msra.mxu0 0
        %978 = vmatpush.bf16.msra.mxu0 0
        %979 = vmatpush.bf16.msra.mxu0 0
        %980 = vmatpush.bf16.msra.mxu0 0
        %981 = vmatpush.bf16.msra.mxu0 0
        %982 = vmatpush.bf16.msra.mxu0 %v970
        %983 = vmatmul.bf16.gmra.mxu0 %v973
        %v984 = vpop.f32.mrf.mxu0
        %v985 = vadd.f32 0.0, %v984
        %v986 = vpop.f32.mrf.mxu0
        %v987 = vadd.f32 0.0, %v986
        %988 = vdwg.mxu0
        %v989 = vpack.c.bf16 %v987, %v985
        %v990 = vld [vmem:[#allocation11] sm:$0xf]
        %v991 = vld [vmem:[#allocation11 + $0x4] sm:$0xf]
        %v992 = vld [vmem:[#allocation11 + $0x8] sm:$0xf]
        %v993 = vld [vmem:[#allocation11 + $0xc] sm:$0xf]
        %v994 = vld [vmem:[%s9] sm:$0x1]
        %v996 = vperm.slane %v994, 0
        %v1002 = vunpack.c.l.b16 %v990
        %v1003 = vunpack.c.l.b16 %v991
        %v1004 = vunpack.c.l.b16 %v992
        %v1005 = vunpack.c.l.b16 %v993
        %v1006 = vpack.c.b16 %v1003, %v1002
        %v1007 = vpack.c.b16 %v1005, %v1004
        %v1011 = vsel %vm808, %v989, 0
        %1013 = vmatpush.bf16.msra.mxu0 0
        %1014 = vmatpush.bf16.msra.mxu0 0
        %1015 = vmatpush.bf16.msra.mxu0 0
        %1016 = vmatpush.bf16.msra.mxu0 0
        %1017 = vmatpush.bf16.msra.mxu0 0
        %1018 = vmatpush.bf16.msra.mxu0 0
        %1019 = vmatpush.bf16.msra.mxu0 %v1007
        %1020 = vmatpush.bf16.msra.mxu0 %v1006
        %1021 = vmatmul.bf16.gmra.mxu0 %v1011
        %v1022 = vpop.f32.mrf.mxu0
        %v1023 = vadd.f32 %v996, %v1022
        %v1024 = vpop.f32.mrf.mxu0
        %v1025 = vadd.f32 %v996, %v1024
        %1026 = vdwg.mxu0
        %v1027 = vmax.f32 %v1023, 0.0
        %v1028 = vmax.f32 %v1025, 0.0
        %v1029 = vld [vmem:[#allocation13] sm:$0xf]
        %v1030 = vld [vmem:[#allocation13 + $0x4] sm:$0xf]
        %v1031 = vld [vmem:[#allocation13 + $0x8] sm:$0xf]
        %v1032 = vld [vmem:[#allocation13 + $0xc] sm:$0xf]
        %v1037 = vunpack.c.l.b16 %v1029
        %v1038 = vunpack.c.l.b16 %v1030
        %v1039 = vunpack.c.l.b16 %v1031
        %v1040 = vunpack.c.l.b16 %v1032
        %v1041 = vpack.c.b16 %v1038, %v1037
        %v1042 = vpack.c.b16 %v1040, %v1039
        %1045 = vmatpush.bf16.msra.mxu0 0
        %1046 = vmatpush.bf16.msra.mxu0 0
        %1047 = vmatpush.bf16.msra.mxu0 0
        %1048 = vmatpush.bf16.msra.mxu0 0
        %1049 = vmatpush.bf16.msra.mxu0 0
        %1050 = vmatpush.bf16.msra.mxu0 0
        %1051 = vmatpush.bf16.msra.mxu0 %v1042
        %1052 = vmatpush.bf16.msra.mxu0 %v1041
        %1053 = vmatmul.bf16.gmra.mxu0 %v1011
        %v1054 = vpop.f32.mrf.mxu0
        %v1055 = vadd.f32 0.0, %v1054
        %v1056 = vpop.f32.mrf.mxu0
        %v1057 = vadd.f32 0.0, %v1056
        %1058 = vdwg.mxu0
        %vm1061 = vcmask 1040384
        %v1062 = vrot.slane %v1055, 7
        %v1063 = vrot.slane %v1057, 7
        %v1064 = vsel %vm1061, %v1062, %v1063
        %v1067 = vsel %vm1061, 0.0, %v1062
        %s1068 = scalar_lea.vmem [#allocation13], 16
        %v1069 = vld [vmem:[%s1068] sm:$0xf]
        %v1070 = vld [vmem:[%s1068 + $0x4] sm:$0xf]
        %v1071 = vld [vmem:[%s1068 + $0x8] sm:$0xf]
        %v1072 = vld [vmem:[%s1068 + $0xc] sm:$0xf]
        %v1077 = vunpack.c.l.b16 %v1069
        %v1078 = vunpack.c.l.b16 %v1070
        %v1079 = vunpack.c.l.b16 %v1071
        %v1080 = vunpack.c.l.b16 %v1072
        %v1081 = vpack.c.b16 %v1078, %v1077
        %v1082 = vpack.c.b16 %v1080, %v1079
        %1085 = vmatpush.bf16.msra.mxu0 0
        %1086 = vmatpush.bf16.msra.mxu0 0
        %1087 = vmatpush.bf16.msra.mxu0 0
        %1088 = vmatpush.bf16.msra.mxu0 0
        %1089 = vmatpush.bf16.msra.mxu0 0
        %1090 = vmatpush.bf16.msra.mxu0 0
        %1091 = vmatpush.bf16.msra.mxu0 %v1082
        %1092 = vmatpush.bf16.msra.mxu0 %v1081
        %1093 = vmatmul.bf16.gmra.mxu0 %v1011
        %v1094 = vpop.f32.mrf.mxu0
        %v1095 = vadd.f32 0.0, %v1094
        %v1096 = vpop.f32.mrf.mxu0
        %v1097 = vadd.f32 0.0, %v1096
        %1098 = vdwg.mxu0
        %v1099 = vadd.f32 %v1067, %v1095
        %v1100 = vadd.f32 %v1064, %v1097
        %s1101 = scalar_lea.vmem [#allocation13], 32
        %v1102 = vld [vmem:[%s1101] sm:$0xf]
        %v1103 = vld [vmem:[%s1101 + $0x4] sm:$0xf]
        %v1104 = vld [vmem:[%s1101 + $0x8] sm:$0xf]
        %v1105 = vld [vmem:[%s1101 + $0xc] sm:$0xf]
        %v1110 = vunpack.c.l.b16 %v1102
        %v1111 = vunpack.c.l.b16 %v1103
        %v1112 = vunpack.c.l.b16 %v1104
        %v1113 = vunpack.c.l.b16 %v1105
        %v1114 = vpack.c.b16 %v1111, %v1110
        %v1115 = vpack.c.b16 %v1113, %v1112
        %1118 = vmatpush.bf16.msra.mxu0 0
        %1119 = vmatpush.bf16.msra.mxu0 0
        %1120 = vmatpush.bf16.msra.mxu0 0
        %1121 = vmatpush.bf16.msra.mxu0 0
        %1122 = vmatpush.bf16.msra.mxu0 0
        %1123 = vmatpush.bf16.msra.mxu0 0
        %1124 = vmatpush.bf16.msra.mxu0 %v1115
        %1125 = vmatpush.bf16.msra.mxu0 %v1114
        %1126 = vmatmul.bf16.gmra.mxu0 %v1011
        %v1127 = vpop.f32.mrf.mxu0
        %v1128 = vadd.f32 0.0, %v1127
        %v1129 = vpop.f32.mrf.mxu0
        %v1130 = vadd.f32 0.0, %v1129
        %1131 = vdwg.mxu0
        %vm1134 = vcmask 1046528
        %v1135 = vrot.slane %v1128, 1
        %v1136 = vrot.slane %v1130, 1
        %v1137 = vsel %vm1134, %v1135, %v1136
        %v1140 = vsel %vm1134, %v1136, 0.0
        %v1141 = vadd.f32 %v1099, %v1137
        %v1142 = vadd.f32 %v1100, %v1140
        %v1143 = vld [vmem:[%s11] sm:$0x1]
        %v1145 = vperm.slane %v1143, 0
        %v1147 = vadd.f32 %v1141, %v1145
        %v1148 = vadd.f32 %v1142, %v1145
        %v1149 = vmax.f32 %v1147, 0.0
        %v1150 = vmax.f32 %v1148, 0.0
        %v1151 = vld [vmem:[#allocation14] sm:$0xf]
        %v1152 = vld [vmem:[#allocation14 + $0x4] sm:$0xf]
        %v1153 = vld [vmem:[#allocation14 + $0x8] sm:$0xf]
        %v1154 = vld [vmem:[#allocation14 + $0xc] sm:$0xf]
        %v1159 = vunpack.c.l.b16 %v1151
        %v1160 = vunpack.c.l.b16 %v1152
        %v1161 = vunpack.c.l.b16 %v1153
        %v1162 = vunpack.c.l.b16 %v1154
        %v1163 = vpack.c.b16 %v1160, %v1159
        %v1164 = vpack.c.b16 %v1162, %v1161
        %1167 = vmatpush.bf16.msra.mxu0 0
        %1168 = vmatpush.bf16.msra.mxu0 0
        %1169 = vmatpush.bf16.msra.mxu0 0
        %1170 = vmatpush.bf16.msra.mxu0 0
        %1171 = vmatpush.bf16.msra.mxu0 0
        %1172 = vmatpush.bf16.msra.mxu0 0
        %1173 = vmatpush.bf16.msra.mxu0 %v1164
        %1174 = vmatpush.bf16.msra.mxu0 %v1163
        %1175 = vmatmul.bf16.gmra.mxu0 %v1011
        %v1176 = vpop.f32.mrf.mxu0
        %v1177 = vadd.f32 0.0, %v1176
        %v1178 = vpop.f32.mrf.mxu0
        %v1179 = vadd.f32 0.0, %v1178
        %1180 = vdwg.mxu0
        %vm1183 = vcmask 1041408
        %v1184 = vrot.slane %v1177, 6
        %v1185 = vrot.slane %v1179, 6
        %v1186 = vsel %vm1183, %v1184, %v1185
        %v1189 = vsel %vm1183, 0.0, %v1184
        %s1190 = scalar_lea.vmem [#allocation14], 16
        %v1191 = vld [vmem:[%s1190] sm:$0xf]
        %v1192 = vld [vmem:[%s1190 + $0x4] sm:$0xf]
        %v1193 = vld [vmem:[%s1190 + $0x8] sm:$0xf]
        %v1194 = vld [vmem:[%s1190 + $0xc] sm:$0xf]
        %v1199 = vunpack.c.l.b16 %v1191
        %v1200 = vunpack.c.l.b16 %v1192
        %v1201 = vunpack.c.l.b16 %v1193
        %v1202 = vunpack.c.l.b16 %v1194
        %v1203 = vpack.c.b16 %v1200, %v1199
        %v1204 = vpack.c.b16 %v1202, %v1201
        %1207 = vmatpush.bf16.msra.mxu0 0
        %1208 = vmatpush.bf16.msra.mxu0 0
        %1209 = vmatpush.bf16.msra.mxu0 0
        %1210 = vmatpush.bf16.msra.mxu0 0
        %1211 = vmatpush.bf16.msra.mxu0 0
        %1212 = vmatpush.bf16.msra.mxu0 0
        %1213 = vmatpush.bf16.msra.mxu0 %v1204
        %1214 = vmatpush.bf16.msra.mxu0 %v1203
        %1215 = vmatmul.bf16.gmra.mxu0 %v1011
        %v1216 = vpop.f32.mrf.mxu0
        %v1217 = vadd.f32 0.0, %v1216
        %v1218 = vpop.f32.mrf.mxu0
        %v1219 = vadd.f32 0.0, %v1218
        %1220 = vdwg.mxu0
        %v1223 = vrot.slane %v1217, 7
        %v1224 = vrot.slane %v1219, 7
        %v1225 = vsel %vm1061, %v1223, %v1224
        %v1228 = vsel %vm1061, 0.0, %v1223
        %v1229 = vadd.f32 %v1189, %v1228
        %v1230 = vadd.f32 %v1186, %v1225
        %s1231 = scalar_lea.vmem [#allocation14], 32
        %v1232 = vld [vmem:[%s1231] sm:$0xf]
        %v1233 = vld [vmem:[%s1231 + $0x4] sm:$0xf]
        %v1234 = vld [vmem:[%s1231 + $0x8] sm:$0xf]
        %v1235 = vld [vmem:[%s1231 + $0xc] sm:$0xf]
        %v1240 = vunpack.c.l.b16 %v1232
        %v1241 = vunpack.c.l.b16 %v1233
        %v1242 = vunpack.c.l.b16 %v1234
        %v1243 = vunpack.c.l.b16 %v1235
        %v1244 = vpack.c.b16 %v1241, %v1240
        %v1245 = vpack.c.b16 %v1243, %v1242
        %1248 = vmatpush.bf16.msra.mxu0 0
        %1249 = vmatpush.bf16.msra.mxu0 0
        %1250 = vmatpush.bf16.msra.mxu0 0
        %1251 = vmatpush.bf16.msra.mxu0 0
        %1252 = vmatpush.bf16.msra.mxu0 0
        %1253 = vmatpush.bf16.msra.mxu0 0
        %1254 = vmatpush.bf16.msra.mxu0 %v1245
        %1255 = vmatpush.bf16.msra.mxu0 %v1244
        %1256 = vmatmul.bf16.gmra.mxu0 %v1011
        %v1257 = vpop.f32.mrf.mxu0
        %v1258 = vadd.f32 0.0, %v1257
        %v1259 = vpop.f32.mrf.mxu0
        %v1260 = vadd.f32 0.0, %v1259
        %1261 = vdwg.mxu0
        %v1262 = vadd.f32 %v1229, %v1258
        %v1263 = vadd.f32 %v1230, %v1260
        %s1264 = scalar_lea.vmem [#allocation14], 48
        %v1265 = vld [vmem:[%s1264] sm:$0xf]
        %v1266 = vld [vmem:[%s1264 + $0x4] sm:$0xf]
        %v1267 = vld [vmem:[%s1264 + $0x8] sm:$0xf]
        %v1268 = vld [vmem:[%s1264 + $0xc] sm:$0xf]
        %v1273 = vunpack.c.l.b16 %v1265
        %v1274 = vunpack.c.l.b16 %v1266
        %v1275 = vunpack.c.l.b16 %v1267
        %v1276 = vunpack.c.l.b16 %v1268
        %v1277 = vpack.c.b16 %v1274, %v1273
        %v1278 = vpack.c.b16 %v1276, %v1275
        %1281 = vmatpush.bf16.msra.mxu0 0
        %1282 = vmatpush.bf16.msra.mxu0 0
        %1283 = vmatpush.bf16.msra.mxu0 0
        %1284 = vmatpush.bf16.msra.mxu0 0
        %1285 = vmatpush.bf16.msra.mxu0 0
        %1286 = vmatpush.bf16.msra.mxu0 0
        %1287 = vmatpush.bf16.msra.mxu0 %v1278
        %1288 = vmatpush.bf16.msra.mxu0 %v1277
        %1289 = vmatmul.bf16.gmra.mxu0 %v1011
        %v1290 = vpop.f32.mrf.mxu0
        %v1291 = vadd.f32 0.0, %v1290
        %v1292 = vpop.f32.mrf.mxu0
        %v1293 = vadd.f32 0.0, %v1292
        %1294 = vdwg.mxu0
        %v1297 = vrot.slane %v1291, 1
        %v1298 = vrot.slane %v1293, 1
        %v1299 = vsel %vm1134, %v1297, %v1298
        %v1302 = vsel %vm1134, %v1298, 0.0
        %v1303 = vadd.f32 %v1262, %v1299
        %v1304 = vadd.f32 %v1263, %v1302
        %s1305 = scalar_lea.vmem [#allocation14], 64
        %v1306 = vld [vmem:[%s1305] sm:$0xf]
        %v1307 = vld [vmem:[%s1305 + $0x4] sm:$0xf]
        %v1308 = vld [vmem:[%s1305 + $0x8] sm:$0xf]
        %v1309 = vld [vmem:[%s1305 + $0xc] sm:$0xf]
        %v1314 = vunpack.c.l.b16 %v1306
        %v1315 = vunpack.c.l.b16 %v1307
        %v1316 = vunpack.c.l.b16 %v1308
        %v1317 = vunpack.c.l.b16 %v1309
        %v1318 = vpack.c.b16 %v1315, %v1314
        %v1319 = vpack.c.b16 %v1317, %v1316
        %1322 = vmatpush.bf16.msra.mxu0 0
        %1323 = vmatpush.bf16.msra.mxu0 0
        %1324 = vmatpush.bf16.msra.mxu0 0
        %1325 = vmatpush.bf16.msra.mxu0 0
        %1326 = vmatpush.bf16.msra.mxu0 0
        %1327 = vmatpush.bf16.msra.mxu0 0
        %1328 = vmatpush.bf16.msra.mxu0 %v1319
        %1329 = vmatpush.bf16.msra.mxu0 %v1318
        %1330 = vmatmul.bf16.gmra.mxu0 %v1011
        %v1331 = vpop.f32.mrf.mxu0
        %v1332 = vadd.f32 0.0, %v1331
        %v1333 = vpop.f32.mrf.mxu0
        %v1334 = vadd.f32 0.0, %v1333
        %1335 = vdwg.mxu0
        %vm1338 = vcmask 1045504
        %v1339 = vrot.slane %v1332, 2
        %v1340 = vrot.slane %v1334, 2
        %v1341 = vsel %vm1338, %v1339, %v1340
        %v1344 = vsel %vm1338, %v1340, 0.0
        %v1345 = vadd.f32 %v1303, %v1341
        %v1346 = vadd.f32 %v1304, %v1344
        %v1347 = vld [vmem:[%s13] sm:$0x1]
        %v1349 = vperm.slane %v1347, 0
        %v1351 = vadd.f32 %v1345, %v1349
        %v1352 = vadd.f32 %v1346, %v1349
        %v1353 = vmax.f32 %v1351, 0.0
        %v1354 = vmax.f32 %v1352, 0.0
        %v1355 = vpack.c.bf16 %v1028, %v1027
        %v1356 = vld [vmem:[#allocation16] sm:$0xf]
        %v1357 = vld [vmem:[#allocation16 + $0x4] sm:$0xf]
        %v1358 = vld [vmem:[#allocation16 + $0x8] sm:$0xf]
        %v1359 = vld [vmem:[#allocation16 + $0xc] sm:$0xf]
        %v1360 = vpack.c.bf16 %v1150, %v1149
        %v1361 = vld [vmem:[#allocation17] sm:$0xf]
        %v1362 = vld [vmem:[#allocation17 + $0x4] sm:$0xf]
        %v1363 = vld [vmem:[#allocation17 + $0x8] sm:$0xf]
        %v1364 = vld [vmem:[#allocation17 + $0xc] sm:$0xf]
        %v1369 = vunpack.c.l.b16 %v1361
        %v1370 = vunpack.c.l.b16 %v1362
        %v1371 = vunpack.c.l.b16 %v1363
        %v1372 = vunpack.c.l.b16 %v1364
        %v1373 = vpack.c.b16 %v1370, %v1369
        %v1374 = vpack.c.b16 %v1372, %v1371
        %v1378 = vsel %vm808, %v1360, 0
        %1380 = vmatpush.bf16.msra.mxu0 0
        %1381 = vmatpush.bf16.msra.mxu0 0
        %1382 = vmatpush.bf16.msra.mxu0 0
        %1383 = vmatpush.bf16.msra.mxu0 0
        %1384 = vmatpush.bf16.msra.mxu0 0
        %1385 = vmatpush.bf16.msra.mxu0 0
        %1386 = vmatpush.bf16.msra.mxu0 %v1374
        %1387 = vmatpush.bf16.msra.mxu0 %v1373
        %1388 = vmatmul.bf16.gmra.mxu0 %v1378
        %v1389 = vpop.f32.mrf.mxu0
        %v1390 = vadd.f32 0.0, %v1389
        %v1391 = vpop.f32.mrf.mxu0
        %v1392 = vadd.f32 0.0, %v1391
        %1393 = vdwg.mxu0
        %v1398 = vunpack.c.l.b16 %v1356
        %v1399 = vunpack.c.l.b16 %v1357
        %v1400 = vunpack.c.l.b16 %v1358
        %v1401 = vunpack.c.l.b16 %v1359
        %v1402 = vpack.c.b16 %v1399, %v1398
        %v1403 = vpack.c.b16 %v1401, %v1400
        %v1407 = vsel %vm808, %v1355, 0
        %1409 = vmatpush.bf16.msra.mxu0 0
        %1410 = vmatpush.bf16.msra.mxu0 0
        %1411 = vmatpush.bf16.msra.mxu0 0
        %1412 = vmatpush.bf16.msra.mxu0 0
        %1413 = vmatpush.bf16.msra.mxu0 0
        %1414 = vmatpush.bf16.msra.mxu0 0
        %1415 = vmatpush.bf16.msra.mxu0 %v1403
        %1416 = vmatpush.bf16.msra.mxu0 %v1402
        %1417 = vmatmul.bf16.gmra.mxu0 %v1407
        %v1418 = vpop.f32.mrf.mxu0
        %v1419 = vadd.f32 %v1390, %v1418
        %v1420 = vpop.f32.mrf.mxu0
        %v1421 = vadd.f32 %v1392, %v1420
        %1422 = vdwg.mxu0
        %v1423 = vpack.c.bf16 %v1354, %v1353
        %v1424 = vld [vmem:[#allocation19] sm:$0xf]
        %v1425 = vld [vmem:[#allocation19 + $0x4] sm:$0xf]
        %v1426 = vld [vmem:[#allocation19 + $0x8] sm:$0xf]
        %v1427 = vld [vmem:[#allocation19 + $0xc] sm:$0xf]
        %v1432 = vunpack.c.l.b16 %v1424
        %v1433 = vunpack.c.l.b16 %v1425
        %v1434 = vunpack.c.l.b16 %v1426
        %v1435 = vunpack.c.l.b16 %v1427
        %v1436 = vpack.c.b16 %v1433, %v1432
        %v1437 = vpack.c.b16 %v1435, %v1434
        %v1441 = vsel %vm808, %v1423, 0
        %1443 = vmatpush.bf16.msra.mxu0 0
        %1444 = vmatpush.bf16.msra.mxu0 0
        %1445 = vmatpush.bf16.msra.mxu0 0
        %1446 = vmatpush.bf16.msra.mxu0 0
        %1447 = vmatpush.bf16.msra.mxu0 0
        %1448 = vmatpush.bf16.msra.mxu0 0
        %1449 = vmatpush.bf16.msra.mxu0 %v1437
        %1450 = vmatpush.bf16.msra.mxu0 %v1436
        %1451 = vmatmul.bf16.gmra.mxu0 %v1441
        %v1452 = vpop.f32.mrf.mxu0
        %v1453 = vadd.f32 0.0, %v1452
        %v1454 = vpop.f32.mrf.mxu0
        %v1455 = vadd.f32 0.0, %v1454
        %1456 = vdwg.mxu0
        %v1457 = vadd.f32 %v1419, %v1453
        %v1458 = vadd.f32 %v1421, %v1455
        %v1459 = vld [vmem:[%s17] sm:$0x1]
        %v1461 = vperm.slane %v1459, 0
        %v1463 = vadd.f32 %v1457, %v1461
        %v1464 = vadd.f32 %v1458, %v1461
        %v1465 = vpack.c.bf16 %v1463, %v1463
        %v1466 = vpack.c.bf16 %v1464, %v1464
        %1467 = vst [vmem:[%s778] sm:$0xf] %v1465
        %1468 = vst [vmem:[%s778 + $0x4] sm:$0xf] %v1466
        %s1469 = sand.u32 %s438, 1
        %s1470 = scalar_lea.sflag [#allocation4], %s1469
        %s1471 = sand.u32 %s438, 1
        %s1472 = smul.addr %s1471, 8
        %s1473 = scalar_lea.vmem [#allocation20], %s1472
        // Predicated region
        $region137: #{tpu_custom_call.1} parent=91 // pred_check
          %p1474 = pneg %p448
        $region138: #{tpu_custom_call.1} parent=91 // pred_check_branch
          %1476 = sbr.rel (%p1474) target = $region140
        $region139: #{tpu_custom_call.1} parent=91 // pred_region
          %1478 = vsyncadd %s1470, 0
          %s1479 = smul.addr %s42, 2
          %s1480 = smul.addr %s1479, 4
          %s1481 = scalar_lea.hbm %s18, %s1480
          %s1482 = sshll.u32 %s1473, 4
          %s1483 = int_to_ptr.vmem [resolvable:$true] %s1482
          %s1484 = sshll.u32 %s1481, 4
          %s1485 = int_to_ptr.hbm [resolvable:$true] %s1484
          %1490 = dma.vmem_to_hbm [thread:$0]  %s1483, 128, %s1485, %s1470, 64, 64, 4
        $region140: #{tpu_custom_call.1} parent=91 // pred_fallthru
          _
      $region92: #{tpu_custom_call.1} parent=5 // pred_fallthru
        _
      %p1491 = scmp.le.s32.totalorder 2, %s37
      // Predicated region
      $region141: #{tpu_custom_call.1} parent=5 // pred_check
        %p1492 = pneg %p1491
      $region142: #{tpu_custom_call.1} parent=5 // pred_check_branch
        %1494 = sbr.rel (%p1492) target = $region144
      $region143: #{tpu_custom_call.1} parent=5 // pred_region
        %s1495 = ssub.s32 %s37, 2
        // Predicated region
        $region145: #{tpu_custom_call.1} parent=143 // pred_check
          %p1496 = pneg %p454
        $region146: #{tpu_custom_call.1} parent=143 // pred_check_branch
          %1498 = sbr.rel (%p1496) target = $region148
        $region147: #{tpu_custom_call.1} parent=143 // pred_region
          %s1499 = sand.u32 %s439, 1
          %s1500 = scalar_lea.sflag [#allocation4], %s1499
          %s1501 = sand.u32 %s439, 1
          %s1502 = smul.addr %s1501, 8
          %s1503 = scalar_lea.vmem [#allocation20], %s1502
          %1505 = dma.done %s1500, 128
        $region148: #{tpu_custom_call.1} parent=143 // pred_fallthru
          _
      $region144: #{tpu_custom_call.1} parent=5 // pred_fallthru
        _
    $region6: #{tpu_custom_call.1} parent=1 // loop_footer
      %s41 = sadd.s32 1, %s37
    $region7: #{tpu_custom_call.1} parent=1 // loop_footer_branch
      %36 = sbr.rel target = $region3
    $region8: #{tpu_custom_call.1} parent=1 // loop_exit
      _
    %1506 = vsyncpa [#allocation3], 1
    %s1507 = scalar_lea.sflag [#allocation3], 1
    %1508 = vsyncpa %s1507, 1
    %1509 = vsyncpa [#allocation6], 1
    %s1510 = scalar_lea.sflag [#allocation6], 1
    %1511 = vsyncpa %s1510, 1
    %1512 = vsyncpa [#allocation9], 1
    %1513 = vsyncpa [#allocation12], 1
    %1514 = vsyncpa [#allocation15], 1
    %1515 = vsyncpa [#allocation18], 1
    %1516 = vsyncpa [#allocation4], 1
    %s1517 = scalar_lea.sflag [#allocation4], 1
    %1518 = vsyncpa %s1517, 1

// kernel: tpu_custom_call.1
$region0: #{tpu_custom_call.1}
  #allocation0 [shape = 'u32[]', space=smem, size = 0x4, offset = 0x4, fixed_abs, tag = 'smem constant byte address 0x4 - core index']
  #allocation1 [shape = 'u32[72,128]{1,0:T(1,128)}', space=vmem, size = 0x9000, scoped, tag = 'internal scratch']
  %s0 = inlined_call_operand.hbm [shape: f32[2,1,16], index: 0, kind: input, shape index: {}]
  %s1 = inlined_call_operand.hbm [shape: bf16[2,16,32], index: 1, kind: input, shape index: {}]
  %s2 = inlined_call_operand.hbm [shape: bf16[32,32], index: 2, kind: input, shape index: {}]
  %s3 = inlined_call_operand.vmem [shape: f32[1,32], index: 3, kind: input, shape index: {}]
  %s4 = inlined_call_operand.hbm [shape: bf16[32,32], index: 4, kind: input, shape index: {}]
  %s5 = inlined_call_operand.vmem [shape: f32[1,32], index: 5, kind: input, shape index: {}]
  %s6 = inlined_call_operand.hbm [shape: bf16[32,32], index: 6, kind: input, shape index: {}]
  %s7 = inlined_call_operand.vmem [shape: f32[1,32], index: 7, kind: input, shape index: {}]
  %s8 = inlined_call_operand.hbm [shape: bf16[1,32,32], index: 8, kind: input, shape index: {}]
  %s9 = inlined_call_operand.vmem [shape: f32[1,32], index: 9, kind: input, shape index: {}]
  %s10 = inlined_call_operand.hbm [shape: bf16[3,32,32], index: 10, kind: input, shape index: {}]
  %s11 = inlined_call_operand.vmem [shape: f32[1,32], index: 11, kind: input, shape index: {}]
  %s12 = inlined_call_operand.hbm [shape: bf16[5,32,32], index: 12, kind: input, shape index: {}]
  %s13 = inlined_call_operand.vmem [shape: f32[1,32], index: 13, kind: input, shape index: {}]
  %s14 = inlined_call_operand.hbm [shape: bf16[32,128], index: 14, kind: input, shape index: {}]
  %s15 = inlined_call_operand.hbm [shape: bf16[32,128], index: 15, kind: input, shape index: {}]
  %s16 = inlined_call_operand.hbm [shape: bf16[32,128], index: 16, kind: input, shape index: {}]
  %s17 = inlined_call_operand.vmem [shape: f32[1,128], index: 17, kind: input, shape index: {}]
  %s18 = inlined_call_operand.hbm [shape: bf16[2,16,128], index: 18, kind: output, shape index: {}]
  %s19 = sld [smem:[#allocation0]]
  $region149: #{tpu_custom_call.1} parent=0
    _
  %s21 = ssub.s32 1, %s19
  %s22 = scalar_select 0, %s21, %s19
  $region1: #{tpu_custom_call.1} parent=0
    #allocation2 [shape = 'u8[1024]{0}', space=vmem, size = 0x400, scoped, tag = 'input window, operand 0']
    #allocation3 [shape = 's32[2]{0}', space=sflag, size = 0x8, scoped, tag = 'scoped memory for tpu_custom_call.1']
    #allocation4 [shape = 's32[2]{0}', space=sflag, size = 0x8, scoped, tag = 'scoped memory for tpu_custom_call.1']
    #allocation5 [shape = 'u8[8192]{0}', space=vmem, size = 0x2000, scoped, tag = 'input window, operand 1']
    #allocation6 [shape = 's32[2]{0}', space=sflag, size = 0x8, scoped, tag = 'scoped memory for tpu_custom_call.1']
    #allocation7 [shape = 'u8[8192]{0}', space=vmem, size = 0x2000, scoped, tag = 'input window, operand 2, single buffered']
    #allocation8 [shape = 'u8[8192]{0}', space=vmem, size = 0x2000, scoped, tag = 'input window, operand 4, single buffered']
    #allocation9 [shape = 's32[1]{0}', space=sflag, size = 0x4, scoped, tag = 'scoped memory for tpu_custom_call.1']
    #allocation10 [shape = 'u8[8192]{0}', space=vmem, size = 0x2000, scoped, tag = 'input window, operand 6, single buffered']
    #allocation11 [shape = 'u8[8192]{0}', space=vmem, size = 0x2000, scoped, tag = 'input window, operand 8, single buffered']
    #allocation12 [shape = 's32[1]{0}', space=sflag, size = 0x4, scoped, tag = 'scoped memory for tpu_custom_call.1']
    #allocation13 [shape = 'u8[24576]{0}', space=vmem, size = 0x6000, scoped, tag = 'input window, operand 10, single buffered']
    #allocation14 [shape = 'u8[40960]{0}', space=vmem, size = 0xa000, scoped, tag = 'input window, operand 12, single buffered']
    #allocation15 [shape = 's32[1]{0}', space=sflag, size = 0x4, scoped, tag = 'scoped memory for tpu_custom_call.1']
    #allocation16 [shape = 'u8[8192]{0}', space=vmem, size = 0x2000, scoped, tag = 'input window, operand 14, single buffered']
    #allocation17 [shape = 'u8[8192]{0}', space=vmem, size = 0x2000, scoped, tag = 'input window, operand 15, single buffered']
    #allocation18 [shape = 's32[1]{0}', space=sflag, size = 0x4, scoped, tag = 'scoped memory for tpu_custom_call.1']
    #allocation19 [shape = 'u8[8192]{0}', space=vmem, size = 0x2000, scoped, tag = 'input window, operand 16, single buffered']
    #allocation20 [shape = 'u8[8192]{0}', space=vmem, size = 0x2000, scoped, tag = 'output window, operand 0']
    %23 = vsyncpa [#allocation3], 0
    %s24 = scalar_lea.sflag [#allocation3], 1
    %25 = vsyncpa %s24, 0
    %26 = vsyncpa [#allocation6], 0
    %s27 = scalar_lea.sflag [#allocation6], 1
    %28 = vsyncpa %s27, 0
    %29 = vsyncpa [#allocation9], 0
    %30 = vsyncpa [#allocation12], 0
    %31 = vsyncpa [#allocation15], 0
    %32 = vsyncpa [#allocation18], 0
    %33 = vsyncpa [#allocation4], 0
    %s34 = scalar_lea.sflag [#allocation4], 1
    %35 = vsyncpa %s34, 0
    loop: start=0, step=1, limit=4
    $region2: #{tpu_custom_call.1} parent=1 // loop_pre_header
      _
    $region3: #{tpu_custom_call.1} parent=1 // loop_header
      %s37 = sphi 0, %s41
      %p38 = scmp.ge.s32.totalorder %s37, 4
      %s47 = sphi 0, %s49
      %s50 = sphi 0, %s47
      %s51 = sphi 0, %s50
      %s67 = sphi 0, %s51
      %s73 = sphi 0, %s75
      %s76 = sphi 0, %s73
      %s77 = sphi 0, %s76
      %s93 = sphi 0, %s77
      %s97 = sphi 0, %s97
      %s99 = sphi 0, %s97
      %s100 = sphi 0, %s99
      %s114 = sphi 0, %s100
      %s118 = sphi 0, %s118
      %s120 = sphi 0, %s118
      %s121 = sphi 0, %s120
      %s135 = sphi 0, %s121
      %s139 = sphi 0, %s139
      %s141 = sphi 0, %s139
      %s142 = sphi 0, %s141
      %s156 = sphi 0, %s142
      %s160 = sphi 0, %s160
      %s162 = sphi 0, %s160
      %s163 = sphi 0, %s162
      %s177 = sphi 0, %s163
      %s181 = sphi 0, %s181
      %s183 = sphi 0, %s181
      %s184 = sphi 0, %s183
      %s198 = sphi 0, %s184
      %s202 = sphi 0, %s202
      %s204 = sphi 0, %s202
      %s205 = sphi 0, %s204
      %s219 = sphi 0, %s205
      %s223 = sphi 0, %s223
      %s225 = sphi 0, %s223
      %s226 = sphi 0, %s225
      %s240 = sphi 0, %s226
      %s244 = sphi 0, %s244
      %s246 = sphi 0, %s244
      %s247 = sphi 0, %s246
      %s261 = sphi 0, %s247
      %s265 = sphi 0, %s265
      %s267 = sphi 0, %s265
      %s268 = sphi 0, %s267
      %s282 = sphi 0, %s268
      %s286 = sphi 0, %s286
      %s288 = sphi 0, %s286
      %s289 = sphi 0, %s288
      %s303 = sphi 0, %s289
      %s307 = sphi 0, %s307
      %s309 = sphi 0, %s307
      %s310 = sphi 0, %s309
      %s324 = sphi 0, %s310
      %s328 = sphi 0, %s328
      %s330 = sphi 0, %s328
      %s331 = sphi 0, %s330
      %s345 = sphi 0, %s331
      %s349 = sphi 0, %s349
      %s351 = sphi 0, %s349
      %s352 = sphi 0, %s351
      %s366 = sphi 0, %s352
      %s370 = sphi 0, %s370
      %s372 = sphi 0, %s370
      %s373 = sphi 0, %s372
      %s387 = sphi 0, %s373
      %s391 = sphi 0, %s391
      %s393 = sphi 0, %s391
      %s394 = sphi 0, %s393
      %s408 = sphi 0, %s394
      %s412 = sphi 0, %s412
      %s414 = sphi 0, %s412
      %s415 = sphi 0, %s414
      %s429 = sphi 0, %s415
      %s435 = sphi 0, %s437
      %s438 = sphi 0, %s435
      %s439 = sphi 0, %s438
      %s455 = sphi 0, %s439
    $region4: #{tpu_custom_call.1} parent=1 // loop_header_branch
      %40 = sbr.rel (%p38) target = $region8
    $region5: #{tpu_custom_call.1} parent=1 // loop_body
      %s42 = ssub.s32 %s37, 1
      %s43 = ssub.s32 %s37, 2
      %s44 = sadd.s32 %s37, 1
      %s45 = ssub.s32 %s37, %s44
      %p46 = scmp.eq.s32.totalorder %s45, 0
      %s48 = sadd.s32 %s47, 1
      %s49 = scalar_select %p46, %s47, %s48
      %p52 = pneg %p46
      %p53 = scmp.eq.s32.totalorder %s37, 1
      %p54 = por %p52, %p53
      %p55 = scmp.ne.s32.totalorder %s47, %s50
      %p56 = scmp.eq.s32.totalorder %s37, 0
      %p57 = por %p55, %p56
      %p58 = scmp.ne.s32.totalorder %s47, %s50
      %p59 = scmp.eq.s32.totalorder %s42, 1
      %p60 = por %p58, %p59
      %p61 = scmp.ne.s32.totalorder %s50, %s51
      %p62 = scmp.eq.s32.totalorder %s42, 0
      %p63 = por %p61, %p62
      %p64 = scmp.ne.s32.totalorder %s50, %s51
      %p65 = scmp.eq.s32.totalorder %s43, 1
      %p66 = por %p64, %p65
      %p68 = scmp.ne.s32.totalorder %s51, %s67
      %p69 = scmp.eq.s32.totalorder %s43, 0
      %p70 = por %p68, %p69
      %s71 = ssub.s32 %s37, %s44
      %p72 = scmp.eq.s32.totalorder %s71, 0
      %s74 = sadd.s32 %s73, 1
      %s75 = scalar_select %p72, %s73, %s74
      %p78 = pneg %p72
      %p79 = scmp.eq.s32.totalorder %s37, 1
      %p80 = por %p78, %p79
      %p81 = scmp.ne.s32.totalorder %s73, %s76
      %p82 = scmp.eq.s32.totalorder %s37, 0
      %p83 = por %p81, %p82
      %p84 = scmp.ne.s32.totalorder %s73, %s76
      %p85 = scmp.eq.s32.totalorder %s42, 1
      %p86 = por %p84, %p85
      %p87 = scmp.ne.s32.totalorder %s76, %s77
      %p88 = scmp.eq.s32.totalorder %s42, 0
      %p89 = por %p87, %p88
      %p90 = scmp.ne.s32.totalorder %s76, %s77
      %p91 = scmp.eq.s32.totalorder %s43, 1
      %p92 = por %p90, %p91
      %p94 = scmp.ne.s32.totalorder %s77, %s93
      %p95 = scmp.eq.s32.totalorder %s43, 0
      %p96 = por %p94, %p95
      %s98 = sadd.s32 %s97, 1
      %p101 = scmp.eq.s32.totalorder %s37, 1
      %p102 = scmp.ne.s32.totalorder %s97, %s99
      %p103 = scmp.eq.s32.totalorder %s37, 0
      %p104 = por %p102, %p103
      %p105 = scmp.ne.s32.totalorder %s97, %s99
      %p106 = scmp.eq.s32.totalorder %s42, 1
      %p107 = por %p105, %p106
      %p108 = scmp.ne.s32.totalorder %s99, %s100
      %p109 = scmp.eq.s32.totalorder %s42, 0
      %p110 = por %p108, %p109
      %p111 = scmp.ne.s32.totalorder %s99, %s100
      %p112 = scmp.eq.s32.totalorder %s43, 1
      %p113 = por %p111, %p112
      %p115 = scmp.ne.s32.totalorder %s100, %s114
      %p116 = scmp.eq.s32.totalorder %s43, 0
      %p117 = por %p115, %p116
      %s119 = sadd.s32 %s118, 1
      %p122 = scmp.eq.s32.totalorder %s37, 1
      %p123 = scmp.ne.s32.totalorder %s118, %s120
      %p124 = scmp.eq.s32.totalorder %s37, 0
      %p125 = por %p123, %p124
      %p126 = scmp.ne.s32.totalorder %s118, %s120
      %p127 = scmp.eq.s32.totalorder %s42, 1
      %p128 = por %p126, %p127
      %p129 = scmp.ne.s32.totalorder %s120, %s121
      %p130 = scmp.eq.s32.totalorder %s42, 0
      %p131 = por %p129, %p130
      %p132 = scmp.ne.s32.totalorder %s120, %s121
      %p133 = scmp.eq.s32.totalorder %s43, 1
      %p134 = por %p132, %p133
      %p136 = scmp.ne.s32.totalorder %s121, %s135
      %p137 = scmp.eq.s32.totalorder %s43, 0
      %p138 = por %p136, %p137
      %s140 = sadd.s32 %s139, 1
      %p143 = scmp.eq.s32.totalorder %s37, 1
      %p144 = scmp.ne.s32.totalorder %s139, %s141
      %p145 = scmp.eq.s32.totalorder %s37, 0
      %p146 = por %p144, %p145
      %p147 = scmp.ne.s32.totalorder %s139, %s141
      %p148 = scmp.eq.s32.totalorder %s42, 1
      %p149 = por %p147, %p148
      %p150 = scmp.ne.s32.totalorder %s141, %s142
      %p151 = scmp.eq.s32.totalorder %s42, 0
      %p152 = por %p150, %p151
      %p153 = scmp.ne.s32.totalorder %s141, %s142
      %p154 = scmp.eq.s32.totalorder %s43, 1
      %p155 = por %p153, %p154
      %p157 = scmp.ne.s32.totalorder %s142, %s156
      %p158 = scmp.eq.s32.totalorder %s43, 0
      %p159 = por %p157, %p158
      %s161 = sadd.s32 %s160, 1
      %p164 = scmp.eq.s32.totalorder %s37, 1
      %p165 = scmp.ne.s32.totalorder %s160, %s162
      %p166 = scmp.eq.s32.totalorder %s37, 0
      %p167 = por %p165, %p166
      %p168 = scmp.ne.s32.totalorder %s160, %s162
      %p169 = scmp.eq.s32.totalorder %s42, 1
      %p170 = por %p168, %p169
      %p171 = scmp.ne.s32.totalorder %s162, %s163
      %p172 = scmp.eq.s32.totalorder %s42, 0
      %p173 = por %p171, %p172
      %p174 = scmp.ne.s32.totalorder %s162, %s163
      %p175 = scmp.eq.s32.totalorder %s43, 1
      %p176 = por %p174, %p175
      %p178 = scmp.ne.s32.totalorder %s163, %s177
      %p179 = scmp.eq.s32.totalorder %s43, 0
      %p180 = por %p178, %p179
      %s182 = sadd.s32 %s181, 1
      %p185 = scmp.eq.s32.totalorder %s37, 1
      %p186 = scmp.ne.s32.totalorder %s181, %s183
      %p187 = scmp.eq.s32.totalorder %s37, 0
      %p188 = por %p186, %p187
      %p189 = scmp.ne.s32.totalorder %s181, %s183
      %p190 = scmp.eq.s32.totalorder %s42, 1
      %p191 = por %p189, %p190
      %p192 = scmp.ne.s32.totalorder %s183, %s184
      %p193 = scmp.eq.s32.totalorder %s42, 0
      %p194 = por %p192, %p193
      %p195 = scmp.ne.s32.totalorder %s183, %s184
      %p196 = scmp.eq.s32.totalorder %s43, 1
      %p197 = por %p195, %p196
      %p199 = scmp.ne.s32.totalorder %s184, %s198
      %p200 = scmp.eq.s32.totalorder %s43, 0
      %p201 = por %p199, %p200
      %s203 = sadd.s32 %s202, 1
      %p206 = scmp.eq.s32.totalorder %s37, 1
      %p207 = scmp.ne.s32.totalorder %s202, %s204
      %p208 = scmp.eq.s32.totalorder %s37, 0
      %p209 = por %p207, %p208
      %p210 = scmp.ne.s32.totalorder %s202, %s204
      %p211 = scmp.eq.s32.totalorder %s42, 1
      %p212 = por %p210, %p211
      %p213 = scmp.ne.s32.totalorder %s204, %s205
      %p214 = scmp.eq.s32.totalorder %s42, 0
      %p215 = por %p213, %p214
      %p216 = scmp.ne.s32.totalorder %s204, %s205
      %p217 = scmp.eq.s32.totalorder %s43, 1
      %p218 = por %p216, %p217
      %p220 = scmp.ne.s32.totalorder %s205, %s219
      %p221 = scmp.eq.s32.totalorder %s43, 0
      %p222 = por %p220, %p221
      %s224 = sadd.s32 %s223, 1
      %p227 = scmp.eq.s32.totalorder %s37, 1
      %p228 = scmp.ne.s32.totalorder %s223, %s225
      %p229 = scmp.eq.s32.totalorder %s37, 0
      %p230 = por %p228, %p229
      %p231 = scmp.ne.s32.totalorder %s223, %s225
      %p232 = scmp.eq.s32.totalorder %s42, 1
      %p233 = por %p231, %p232
      %p234 = scmp.ne.s32.totalorder %s225, %s226
      %p235 = scmp.eq.s32.totalorder %s42, 0
      %p236 = por %p234, %p235
      %p237 = scmp.ne.s32.totalorder %s225, %s226
      %p238 = scmp.eq.s32.totalorder %s43, 1
      %p239 = por %p237, %p238
      %p241 = scmp.ne.s32.totalorder %s226, %s240
      %p242 = scmp.eq.s32.totalorder %s43, 0
      %p243 = por %p241, %p242
      %s245 = sadd.s32 %s244, 1
      %p248 = scmp.eq.s32.totalorder %s37, 1
      %p249 = scmp.ne.s32.totalorder %s244, %s246
      %p250 = scmp.eq.s32.totalorder %s37, 0
      %p251 = por %p249, %p250
      %p252 = scmp.ne.s32.totalorder %s244, %s246
      %p253 = scmp.eq.s32.totalorder %s42, 1
      %p254 = por %p252, %p253
      %p255 = scmp.ne.s32.totalorder %s246, %s247
      %p256 = scmp.eq.s32.totalorder %s42, 0
      %p257 = por %p255, %p256
      %p258 = scmp.ne.s32.totalorder %s246, %s247
      %p259 = scmp.eq.s32.totalorder %s43, 1
      %p260 = por %p258, %p259
      %p262 = scmp.ne.s32.totalorder %s247, %s261
      %p263 = scmp.eq.s32.totalorder %s43, 0
      %p264 = por %p262, %p263
      %s266 = sadd.s32 %s265, 1
      %p269 = scmp.eq.s32.totalorder %s37, 1
      %p270 = scmp.ne.s32.totalorder %s265, %s267
      %p271 = scmp.eq.s32.totalorder %s37, 0
      %p272 = por %p270, %p271
      %p273 = scmp.ne.s32.totalorder %s265, %s267
      %p274 = scmp.eq.s32.totalorder %s42, 1
      %p275 = por %p273, %p274
      %p276 = scmp.ne.s32.totalorder %s267, %s268
      %p277 = scmp.eq.s32.totalorder %s42, 0
      %p278 = por %p276, %p277
      %p279 = scmp.ne.s32.totalorder %s267, %s268
      %p280 = scmp.eq.s32.totalorder %s43, 1
      %p281 = por %p279, %p280
      %p283 = scmp.ne.s32.totalorder %s268, %s282
      %p284 = scmp.eq.s32.totalorder %s43, 0
      %p285 = por %p283, %p284
      %s287 = sadd.s32 %s286, 1
      %p290 = scmp.eq.s32.totalorder %s37, 1
      %p291 = scmp.ne.s32.totalorder %s286, %s288
      %p292 = scmp.eq.s32.totalorder %s37, 0
      %p293 = por %p291, %p292
      %p294 = scmp.ne.s32.totalorder %s286, %s288
      %p295 = scmp.eq.s32.totalorder %s42, 1
      %p296 = por %p294, %p295
      %p297 = scmp.ne.s32.totalorder %s288, %s289
      %p298 = scmp.eq.s32.totalorder %s42, 0
      %p299 = por %p297, %p298
      %p300 = scmp.ne.s32.totalorder %s288, %s289
      %p301 = scmp.eq.s32.totalorder %s43, 1
      %p302 = por %p300, %p301
      %p304 = scmp.ne.s32.totalorder %s289, %s303
      %p305 = scmp.eq.s32.totalorder %s43, 0
      %p306 = por %p304, %p305
      %s308 = sadd.s32 %s307, 1
      %p311 = scmp.eq.s32.totalorder %s37, 1
      %p312 = scmp.ne.s32.totalorder %s307, %s309
      %p313 = scmp.eq.s32.totalorder %s37, 0
      %p314 = por %p312, %p313
      %p315 = scmp.ne.s32.totalorder %s307, %s309
      %p316 = scmp.eq.s32.totalorder %s42, 1
      %p317 = por %p315, %p316
      %p318 = scmp.ne.s32.totalorder %s309, %s310
      %p319 = scmp.eq.s32.totalorder %s42, 0
      %p320 = por %p318, %p319
      %p321 = scmp.ne.s32.totalorder %s309, %s310
      %p322 = scmp.eq.s32.totalorder %s43, 1
      %p323 = por %p321, %p322
      %p325 = scmp.ne.s32.totalorder %s310, %s324
      %p326 = scmp.eq.s32.totalorder %s43, 0
      %p327 = por %p325, %p326
      %s329 = sadd.s32 %s328, 1
      %p332 = scmp.eq.s32.totalorder %s37, 1
      %p333 = scmp.ne.s32.totalorder %s328, %s330
      %p334 = scmp.eq.s32.totalorder %s37, 0
      %p335 = por %p333, %p334
      %p336 = scmp.ne.s32.totalorder %s328, %s330
      %p337 = scmp.eq.s32.totalorder %s42, 1
      %p338 = por %p336, %p337
      %p339 = scmp.ne.s32.totalorder %s330, %s331
      %p340 = scmp.eq.s32.totalorder %s42, 0
      %p341 = por %p339, %p340
      %p342 = scmp.ne.s32.totalorder %s330, %s331
      %p343 = scmp.eq.s32.totalorder %s43, 1
      %p344 = por %p342, %p343
      %p346 = scmp.ne.s32.totalorder %s331, %s345
      %p347 = scmp.eq.s32.totalorder %s43, 0
      %p348 = por %p346, %p347
      %s350 = sadd.s32 %s349, 1
      %p353 = scmp.eq.s32.totalorder %s37, 1
      %p354 = scmp.ne.s32.totalorder %s349, %s351
      %p355 = scmp.eq.s32.totalorder %s37, 0
      %p356 = por %p354, %p355
      %p357 = scmp.ne.s32.totalorder %s349, %s351
      %p358 = scmp.eq.s32.totalorder %s42, 1
      %p359 = por %p357, %p358
      %p360 = scmp.ne.s32.totalorder %s351, %s352
      %p361 = scmp.eq.s32.totalorder %s42, 0
      %p362 = por %p360, %p361
      %p363 = scmp.ne.s32.totalorder %s351, %s352
      %p364 = scmp.eq.s32.totalorder %s43, 1
      %p365 = por %p363, %p364
      %p367 = scmp.ne.s32.totalorder %s352, %s366
      %p368 = scmp.eq.s32.totalorder %s43, 0
      %p369 = por %p367, %p368
      %s371 = sadd.s32 %s370, 1
      %p374 = scmp.eq.s32.totalorder %s37, 1
      %p375 = scmp.ne.s32.totalorder %s370, %s372
      %p376 = scmp.eq.s32.totalorder %s37, 0
      %p377 = por %p375, %p376
      %p378 = scmp.ne.s32.totalorder %s370, %s372
      %p379 = scmp.eq.s32.totalorder %s42, 1
      %p380 = por %p378, %p379
      %p381 = scmp.ne.s32.totalorder %s372, %s373
      %p382 = scmp.eq.s32.totalorder %s42, 0
      %p383 = por %p381, %p382
      %p384 = scmp.ne.s32.totalorder %s372, %s373
      %p385 = scmp.eq.s32.totalorder %s43, 1
      %p386 = por %p384, %p385
      %p388 = scmp.ne.s32.totalorder %s373, %s387
      %p389 = scmp.eq.s32.totalorder %s43, 0
      %p390 = por %p388, %p389
      %s392 = sadd.s32 %s391, 1
      %p395 = scmp.eq.s32.totalorder %s37, 1
      %p396 = scmp.ne.s32.totalorder %s391, %s393
      %p397 = scmp.eq.s32.totalorder %s37, 0
      %p398 = por %p396, %p397
      %p399 = scmp.ne.s32.totalorder %s391, %s393
      %p400 = scmp.eq.s32.totalorder %s42, 1
      %p401 = por %p399, %p400
      %p402 = scmp.ne.s32.totalorder %s393, %s394
      %p403 = scmp.eq.s32.totalorder %s42, 0
      %p404 = por %p402, %p403
      %p405 = scmp.ne.s32.totalorder %s393, %s394
      %p406 = scmp.eq.s32.totalorder %s43, 1
      %p407 = por %p405, %p406
      %p409 = scmp.ne.s32.totalorder %s394, %s408
      %p410 = scmp.eq.s32.totalorder %s43, 0
      %p411 = por %p409, %p410
      %s413 = sadd.s32 %s412, 1
      %p416 = scmp.eq.s32.totalorder %s37, 1
      %p417 = scmp.ne.s32.totalorder %s412, %s414
      %p418 = scmp.eq.s32.totalorder %s37, 0
      %p419 = por %p417, %p418
      %p420 = scmp.ne.s32.totalorder %s412, %s414
      %p421 = scmp.eq.s32.totalorder %s42, 1
      %p422 = por %p420, %p421
      %p423 = scmp.ne.s32.totalorder %s414, %s415
      %p424 = scmp.eq.s32.totalorder %s42, 0
      %p425 = por %p423, %p424
      %p426 = scmp.ne.s32.totalorder %s414, %s415
      %p427 = scmp.eq.s32.totalorder %s43, 1
      %p428 = por %p426, %p427
      %p430 = scmp.ne.s32.totalorder %s415, %s429
      %p431 = scmp.eq.s32.totalorder %s43, 0
      %p432 = por %p430, %p431
      %s433 = ssub.s32 %s37, %s44
      %p434 = scmp.eq.s32.totalorder %s433, 0
      %s436 = sadd.s32 %s435, 1
      %s437 = scalar_select %p434, %s435, %s436
      %p440 = pneg %p434
      %p441 = scmp.eq.s32.totalorder %s37, 1
      %p442 = por %p440, %p441
      %p443 = scmp.ne.s32.totalorder %s435, %s438
      %p444 = scmp.eq.s32.totalorder %s37, 0
      %p445 = por %p443, %p444
      %p446 = scmp.ne.s32.totalorder %s435, %s438
      %p447 = scmp.eq.s32.totalorder %s42, 1
      %p448 = por %p446, %p447
      %p449 = scmp.ne.s32.totalorder %s438, %s439
      %p450 = scmp.eq.s32.totalorder %s42, 0
      %p451 = por %p449, %p450
      %p452 = scmp.ne.s32.totalorder %s438, %s439
      %p453 = scmp.eq.s32.totalorder %s43, 1
      %p454 = por %p452, %p453
      %p456 = scmp.ne.s32.totalorder %s439, %s455
      %p457 = scmp.eq.s32.totalorder %s43, 0
      %p458 = por %p456, %p457
      %p459 = scmp.le.s32.totalorder 1, %s37
      %p460 = scmp.lt.s32.totalorder %s37, 3
      %p461 = pnand %p459, %p460
      %p462 = pneg %p461
      // Predicated region
      $region9: #{tpu_custom_call.1} parent=5 // pred_check
        _
      $region10: #{tpu_custom_call.1} parent=5 // pred_check_branch
        %464 = sbr.rel (%p461) target = $region12
      $region11: #{tpu_custom_call.1} parent=5 // pred_region
        %s465 = ssub.s32 %s37, 1
        // Predicated region
        $region13: #{tpu_custom_call.1} parent=11 // pred_check
          %p466 = pneg %p110
        $region14: #{tpu_custom_call.1} parent=11 // pred_check_branch
          %468 = sbr.rel (%p466) target = $region16
        $region15: #{tpu_custom_call.1} parent=11 // pred_region
          %470 = vsyncadd [#allocation6], 0
          %s471 = sshll.u32 %s2, 4
          %s472 = int_to_ptr.hbm [resolvable:$true] %s471
          %s473 = sshll.u32 [#allocation7], 4
          %s474 = int_to_ptr.vmem [resolvable:$true] %s473
          %479 = dma.hbm_to_vmem [thread:$0]  %s472, 256, %s474, [#allocation6], 64, 64, 4
        $region16: #{tpu_custom_call.1} parent=11 // pred_fallthru
          _
        // Predicated region
        $region17: #{tpu_custom_call.1} parent=11 // pred_check
          %p480 = pneg %p131
        $region18: #{tpu_custom_call.1} parent=11 // pred_check_branch
          %482 = sbr.rel (%p480) target = $region20
        $region19: #{tpu_custom_call.1} parent=11 // pred_region
          _
        $region20: #{tpu_custom_call.1} parent=11 // pred_fallthru
          _
        // Predicated region
        $region21: #{tpu_custom_call.1} parent=11 // pred_check
          %p483 = pneg %p152
        $region22: #{tpu_custom_call.1} parent=11 // pred_check_branch
          %485 = sbr.rel (%p483) target = $region24
        $region23: #{tpu_custom_call.1} parent=11 // pred_region
          %487 = vsyncadd [#allocation9], 0
          %s488 = sshll.u32 %s4, 4
          %s489 = int_to_ptr.hbm [resolvable:$true] %s488
          %s490 = sshll.u32 [#allocation8], 4
          %s491 = int_to_ptr.vmem [resolvable:$true] %s490
          %496 = dma.hbm_to_vmem [thread:$0]  %s489, 256, %s491, [#allocation9], 64, 64, 4
        $region24: #{tpu_custom_call.1} parent=11 // pred_fallthru
          _
        // Predicated region
        $region25: #{tpu_custom_call.1} parent=11 // pred_check
          %p497 = pneg %p173
        $region26: #{tpu_custom_call.1} parent=11 // pred_check_branch
          %499 = sbr.rel (%p497) target = $region28
        $region27: #{tpu_custom_call.1} parent=11 // pred_region
          _
        $region28: #{tpu_custom_call.1} parent=11 // pred_fallthru
          _
        // Predicated region
        $region29: #{tpu_custom_call.1} parent=11 // pred_check
          %p500 = pneg %p194
        $region30: #{tpu_custom_call.1} parent=11 // pred_check_branch
          %502 = sbr.rel (%p500) target = $region32
        $region31: #{tpu_custom_call.1} parent=11 // pred_region
          %504 = vsyncadd [#allocation9], 0
          %s505 = sshll.u32 %s6, 4
          %s506 = int_to_ptr.hbm [resolvable:$true] %s505
          %s507 = sshll.u32 [#allocation10], 4
          %s508 = int_to_ptr.vmem [resolvable:$true] %s507
          %513 = dma.hbm_to_vmem [thread:$0]  %s506, 256, %s508, [#allocation9], 64, 64, 4
        $region32: #{tpu_custom_call.1} parent=11 // pred_fallthru
          _
        // Predicated region
        $region33: #{tpu_custom_call.1} parent=11 // pred_check
          %p514 = pneg %p215
        $region34: #{tpu_custom_call.1} parent=11 // pred_check_branch
          %516 = sbr.rel (%p514) target = $region36
        $region35: #{tpu_custom_call.1} parent=11 // pred_region
          _
        $region36: #{tpu_custom_call.1} parent=11 // pred_fallthru
          _
        // Predicated region
        $region37: #{tpu_custom_call.1} parent=11 // pred_check
          %p517 = pneg %p236
        $region38: #{tpu_custom_call.1} parent=11 // pred_check_branch
          %519 = sbr.rel (%p517) target = $region40
        $region39: #{tpu_custom_call.1} parent=11 // pred_region
          %521 = vsyncadd [#allocation12], 0
          %s522 = sshll.u32 %s8, 4
          %s523 = int_to_ptr.hbm [resolvable:$true] %s522
          %s524 = sshll.u32 [#allocation11], 4
          %s525 = int_to_ptr.vmem [resolvable:$true] %s524
          %530 = dma.hbm_to_vmem [thread:$0]  %s523, 256, %s525, [#allocation12], 64, 64, 4
        $region40: #{tpu_custom_call.1} parent=11 // pred_fallthru
          _
        // Predicated region
        $region41: #{tpu_custom_call.1} parent=11 // pred_check
          %p531 = pneg %p257
        $region42: #{tpu_custom_call.1} parent=11 // pred_check_branch
          %533 = sbr.rel (%p531) target = $region44
        $region43: #{tpu_custom_call.1} parent=11 // pred_region
          _
        $region44: #{tpu_custom_call.1} parent=11 // pred_fallthru
          _
        // Predicated region
        $region45: #{tpu_custom_call.1} parent=11 // pred_check
          %p534 = pneg %p278
        $region46: #{tpu_custom_call.1} parent=11 // pred_check_branch
          %536 = sbr.rel (%p534) target = $region48
        $region47: #{tpu_custom_call.1} parent=11 // pred_region
          %538 = vsyncadd [#allocation12], 0
          %s539 = sshll.u32 %s10, 4
          %s540 = int_to_ptr.hbm [resolvable:$true] %s539
          %s541 = sshll.u32 [#allocation13], 4
          %s542 = int_to_ptr.vmem [resolvable:$true] %s541
          %547 = dma.hbm_to_vmem [thread:$0]  %s540, 768, %s542, [#allocation12], 64, 64, 4
        $region48: #{tpu_custom_call.1} parent=11 // pred_fallthru
          _
        // Predicated region
        $region49: #{tpu_custom_call.1} parent=11 // pred_check
          %p548 = pneg %p299
        $region50: #{tpu_custom_call.1} parent=11 // pred_check_branch
          %550 = sbr.rel (%p548) target = $region52
        $region51: #{tpu_custom_call.1} parent=11 // pred_region
          _
        $region52: #{tpu_custom_call.1} parent=11 // pred_fallthru
          _
        // Predicated region
        $region53: #{tpu_custom_call.1} parent=11 // pred_check
          %p551 = pneg %p320
        $region54: #{tpu_custom_call.1} parent=11 // pred_check_branch
          %553 = sbr.rel (%p551) target = $region56
        $region55: #{tpu_custom_call.1} parent=11 // pred_region
          %555 = vsyncadd [#allocation15], 0
          %s556 = sshll.u32 %s12, 4
          %s557 = int_to_ptr.hbm [resolvable:$true] %s556
          %s558 = sshll.u32 [#allocation14], 4
          %s559 = int_to_ptr.vmem [resolvable:$true] %s558
          %564 = dma.hbm_to_vmem [thread:$0]  %s557, 1280, %s559, [#allocation15], 64, 64, 4
        $region56: #{tpu_custom_call.1} parent=11 // pred_fallthru
          _
        // Predicated region
        $region57: #{tpu_custom_call.1} parent=11 // pred_check
          %p565 = pneg %p341
        $region58: #{tpu_custom_call.1} parent=11 // pred_check_branch
          %567 = sbr.rel (%p565) target = $region60
        $region59: #{tpu_custom_call.1} parent=11 // pred_region
          _
        $region60: #{tpu_custom_call.1} parent=11 // pred_fallthru
          _
        // Predicated region
        $region61: #{tpu_custom_call.1} parent=11 // pred_check
          %p568 = pneg %p362
        $region62: #{tpu_custom_call.1} parent=11 // pred_check_branch
          %570 = sbr.rel (%p568) target = $region64
        $region63: #{tpu_custom_call.1} parent=11 // pred_region
          %572 = vsyncadd [#allocation15], 0
          %s573 = sshll.u32 %s14, 4
          %s574 = int_to_ptr.hbm [resolvable:$true] %s573
          %s575 = sshll.u32 [#allocation16], 4
          %s576 = int_to_ptr.vmem [resolvable:$true] %s575
          %581 = dma.hbm_to_vmem [thread:$0]  %s574, 256, %s576, [#allocation15], 64, 64, 4
        $region64: #{tpu_custom_call.1} parent=11 // pred_fallthru
          _
        // Predicated region
        $region65: #{tpu_custom_call.1} parent=11 // pred_check
          %p582 = pneg %p383
        $region66: #{tpu_custom_call.1} parent=11 // pred_check_branch
          %584 = sbr.rel (%p582) target = $region68
        $region67: #{tpu_custom_call.1} parent=11 // pred_region
          %586 = vsyncadd [#allocation18], 0
          %s587 = sshll.u32 %s15, 4
          %s588 = int_to_ptr.hbm [resolvable:$true] %s587
          %s589 = sshll.u32 [#allocation17], 4
          %s590 = int_to_ptr.vmem [resolvable:$true] %s589
          %595 = dma.hbm_to_vmem [thread:$0]  %s588, 256, %s590, [#allocation18], 64, 64, 4
        $region68: #{tpu_custom_call.1} parent=11 // pred_fallthru
          _
        // Predicated region
        $region69: #{tpu_custom_call.1} parent=11 // pred_check
          %p596 = pneg %p404
        $region70: #{tpu_custom_call.1} parent=11 // pred_check_branch
          %598 = sbr.rel (%p596) target = $region72
        $region71: #{tpu_custom_call.1} parent=11 // pred_region
          %600 = vsyncadd [#allocation18], 0
          %s601 = sshll.u32 %s16, 4
          %s602 = int_to_ptr.hbm [resolvable:$true] %s601
          %s603 = sshll.u32 [#allocation19], 4
          %s604 = int_to_ptr.vmem [resolvable:$true] %s603
          %609 = dma.hbm_to_vmem [thread:$0]  %s602, 256, %s604, [#allocation18], 64, 64, 4
        $region72: #{tpu_custom_call.1} parent=11 // pred_fallthru
          _
        // Predicated region
        $region73: #{tpu_custom_call.1} parent=11 // pred_check
          %p610 = pneg %p425
        $region74: #{tpu_custom_call.1} parent=11 // pred_check_branch
          %612 = sbr.rel (%p610) target = $region76
        $region75: #{tpu_custom_call.1} parent=11 // pred_region
          _
        $region76: #{tpu_custom_call.1} parent=11 // pred_fallthru
          _
      $region12: #{tpu_custom_call.1} parent=5 // pred_fallthru
        _
      %p613 = scmp.lt.s32.totalorder %s37, 2
      // Predicated region
      $region77: #{tpu_custom_call.1} parent=5 // pred_check
        %p614 = pneg %p613
      $region78: #{tpu_custom_call.1} parent=5 // pred_check_branch
        %616 = sbr.rel (%p614) target = $region80
      $region79: #{tpu_custom_call.1} parent=5 // pred_region
        // Predicated region
        $region81: #{tpu_custom_call.1} parent=79 // pred_check
          %p617 = pneg %p57
        $region82: #{tpu_custom_call.1} parent=79 // pred_check_branch
          %619 = sbr.rel (%p617) target = $region84
        $region83: #{tpu_custom_call.1} parent=79 // pred_region
          %s620 = sand.u32 %s47, 1
          %s621 = scalar_lea.sflag [#allocation3], %s620
          %s622 = sand.u32 %s47, 1
          %s623 = scalar_lea.vmem [#allocation2], %s622
          %625 = vsyncadd %s621, 0
          %s626 = scalar_lea.hbm %s0, %s37
          %s628 = sshll.u32 %s626, 4
          %s629 = int_to_ptr.hbm [resolvable:$true] %s628
          %s630 = sshll.u32 %s623, 4
          %s631 = int_to_ptr.vmem [resolvable:$true] %s630
          %633 = dma.hbm_to_vmem [thread:$0]  %s629, 16, %s631, %s621
        $region84: #{tpu_custom_call.1} parent=79 // pred_fallthru
          _
        // Predicated region
        $region85: #{tpu_custom_call.1} parent=79 // pred_check
          %p634 = pneg %p83
        $region86: #{tpu_custom_call.1} parent=79 // pred_check_branch
          %636 = sbr.rel (%p634) target = $region88
        $region87: #{tpu_custom_call.1} parent=79 // pred_region
          %s637 = sand.u32 %s37, 1
          %s638 = scalar_lea.sflag [#allocation6], %s637
          %s639 = sand.u32 %s73, 1
          %s640 = smul.addr %s639, 8
          %s641 = scalar_lea.vmem [#allocation5], %s640
          %643 = vsyncadd %s638, 0
          %s644 = smul.addr %s37, 2
          %s645 = smul.addr %s644, 4
          %s646 = scalar_lea.hbm %s1, %s645
          %s647 = sshll.u32 %s646, 4
          %s648 = int_to_ptr.hbm [resolvable:$true] %s647
          %s649 = sshll.u32 %s641, 4
          %s650 = int_to_ptr.vmem [resolvable:$true] %s649
          %655 = dma.hbm_to_vmem [thread:$0]  %s648, 128, %s650, %s638, 64, 64, 4
        $region88: #{tpu_custom_call.1} parent=79 // pred_fallthru
          _
      $region80: #{tpu_custom_call.1} parent=5 // pred_fallthru
        _
      %p656 = scmp.le.s32.totalorder 1, %s37
      %p657 = scmp.lt.s32.totalorder %s37, 3
      %p658 = pnand %p656, %p657
      %p659 = pneg %p658
      // Predicated region
      $region89: #{tpu_custom_call.1} parent=5 // pred_check
        _
      $region90: #{tpu_custom_call.1} parent=5 // pred_check_branch
        %661 = sbr.rel (%p658) target = $region92
      $region91: #{tpu_custom_call.1} parent=5 // pred_region
        %s662 = ssub.s32 %s37, 1
        %s663 = sand.u32 %s50, 1
        %s664 = scalar_lea.sflag [#allocation3], %s663
        %s665 = sand.u32 %s50, 1
        %s666 = scalar_lea.vmem [#allocation2], %s665
        // Predicated region
        $region93: #{tpu_custom_call.1} parent=91 // pred_check
          %p667 = pneg %p63
        $region94: #{tpu_custom_call.1} parent=91 // pred_check_branch
          %669 = sbr.rel (%p667) target = $region96
        $region95: #{tpu_custom_call.1} parent=91 // pred_region
          %671 = dma.done %s664, 16
        $region96: #{tpu_custom_call.1} parent=91 // pred_fallthru
          _
        %s672 = sand.u32 %s42, 1
        %s673 = scalar_lea.sflag [#allocation6], %s672
        %s674 = sand.u32 %s76, 1
        %s675 = smul.addr %s674, 8
        %s676 = scalar_lea.vmem [#allocation5], %s675
        // Predicated region
        $region97: #{tpu_custom_call.1} parent=91 // pred_check
          %p677 = pneg %p89
        $region98: #{tpu_custom_call.1} parent=91 // pred_check_branch
          %679 = sbr.rel (%p677) target = $region100
        $region99: #{tpu_custom_call.1} parent=91 // pred_region
          %681 = dma.done %s673, 128
        $region100: #{tpu_custom_call.1} parent=91 // pred_fallthru
          _
        // Predicated region
        $region101: #{tpu_custom_call.1} parent=91 // pred_check
          %p682 = pneg %p110
        $region102: #{tpu_custom_call.1} parent=91 // pred_check_branch
          %684 = sbr.rel (%p682) target = $region104
        $region103: #{tpu_custom_call.1} parent=91 // pred_region
          %686 = dma.done [#allocation6], 256
        $region104: #{tpu_custom_call.1} parent=91 // pred_fallthru
          _
        // Predicated region
        $region105: #{tpu_custom_call.1} parent=91 // pred_check
          %p687 = pneg %p152
        $region106: #{tpu_custom_call.1} parent=91 // pred_check_branch
          %689 = sbr.rel (%p687) target = $region108
        $region107: #{tpu_custom_call.1} parent=91 // pred_region
          %691 = dma.done [#allocation9], 256
        $region108: #{tpu_custom_call.1} parent=91 // pred_fallthru
          _
        // Predicated region
        $region109: #{tpu_custom_call.1} parent=91 // pred_check
          %p692 = pneg %p194
        $region110: #{tpu_custom_call.1} parent=91 // pred_check_branch
          %694 = sbr.rel (%p692) target = $region112
        $region111: #{tpu_custom_call.1} parent=91 // pred_region
          %696 = dma.done [#allocation9], 256
        $region112: #{tpu_custom_call.1} parent=91 // pred_fallthru
          _
        // Predicated region
        $region113: #{tpu_custom_call.1} parent=91 // pred_check
          %p697 = pneg %p236
        $region114: #{tpu_custom_call.1} parent=91 // pred_check_branch
          %699 = sbr.rel (%p697) target = $region116
        $region115: #{tpu_custom_call.1} parent=91 // pred_region
          %701 = dma.done [#allocation12], 256
        $region116: #{tpu_custom_call.1} parent=91 // pred_fallthru
          _
        // Predicated region
        $region117: #{tpu_custom_call.1} parent=91 // pred_check
          %p702 = pneg %p278
        $region118: #{tpu_custom_call.1} parent=91 // pred_check_branch
          %704 = sbr.rel (%p702) target = $region120
        $region119: #{tpu_custom_call.1} parent=91 // pred_region
          %706 = dma.done [#allocation12], 768
        $region120: #{tpu_custom_call.1} parent=91 // pred_fallthru
          _
        // Predicated region
        $region121: #{tpu_custom_call.1} parent=91 // pred_check
          %p707 = pneg %p320
        $region122: #{tpu_custom_call.1} parent=91 // pred_check_branch
          %709 = sbr.rel (%p707) target = $region124
        $region123: #{tpu_custom_call.1} parent=91 // pred_region
          %711 = dma.done [#allocation15], 1280
        $region124: #{tpu_custom_call.1} parent=91 // pred_fallthru
          _
        // Predicated region
        $region125: #{tpu_custom_call.1} parent=91 // pred_check
          %p712 = pneg %p362
        $region126: #{tpu_custom_call.1} parent=91 // pred_check_branch
          %714 = sbr.rel (%p712) target = $region128
        $region127: #{tpu_custom_call.1} parent=91 // pred_region
          %716 = dma.done [#allocation15], 256
        $region128: #{tpu_custom_call.1} parent=91 // pred_fallthru
          _
        // Predicated region
        $region129: #{tpu_custom_call.1} parent=91 // pred_check
          %p717 = pneg %p383
        $region130: #{tpu_custom_call.1} parent=91 // pred_check_branch
          %719 = sbr.rel (%p717) target = $region132
        $region131: #{tpu_custom_call.1} parent=91 // pred_region
          %721 = dma.done [#allocation18], 256
        $region132: #{tpu_custom_call.1} parent=91 // pred_fallthru
          _
        // Predicated region
        $region133: #{tpu_custom_call.1} parent=91 // pred_check
          %p722 = pneg %p404
        $region134: #{tpu_custom_call.1} parent=91 // pred_check_branch
          %724 = sbr.rel (%p722) target = $region136
        $region135: #{tpu_custom_call.1} parent=91 // pred_region
          %726 = dma.done [#allocation18], 256
        $region136: #{tpu_custom_call.1} parent=91 // pred_fallthru
          _
        %s727 = sand.u32 %s50, 1
        %s728 = scalar_lea.sflag [#allocation3], %s727
        %s729 = sand.u32 %s50, 1
        %s730 = scalar_lea.vmem [#allocation2], %s729
        %p731 = pneg %p63
        %p732 = pneg %p60
        %s733 = sand.u32 %s42, 1
        %s734 = scalar_lea.sflag [#allocation6], %s733
        %s735 = sand.u32 %s76, 1
        %s736 = smul.addr %s735, 8
        %s737 = scalar_lea.vmem [#allocation5], %s736
        %p738 = pneg %p89
        %p739 = pneg %p86
        %p740 = pneg %p110
        %p741 = pneg %p107
        %p742 = pneg %p131
        %p743 = pneg %p128
        %p744 = pneg %p152
        %p745 = pneg %p149
        %p746 = pneg %p173
        %p747 = pneg %p170
        %p748 = pneg %p194
        %p749 = pneg %p191
        %p750 = pneg %p215
        %p751 = pneg %p212
        %p752 = pneg %p236
        %p753 = pneg %p233
        %p754 = pneg %p257
        %p755 = pneg %p254
        %p756 = pneg %p278
        %p757 = pneg %p275
        %p758 = pneg %p299
        %p759 = pneg %p296
        %p760 = pneg %p320
        %p761 = pneg %p317
        %p762 = pneg %p341
        %p763 = pneg %p338
        %p764 = pneg %p362
        %p765 = pneg %p359
        %p766 = pneg %p383
        %p767 = pneg %p380
        %p768 = pneg %p404
        %p769 = pneg %p401
        %p770 = pneg %p425
        %p771 = pneg %p422
        %p772 = pneg %p451
        %p773 = pneg %p448
        %s774 = sand.u32 %s438, 1
        %s775 = scalar_lea.sflag [#allocation4], %s774
        %s776 = sand.u32 %s438, 1
        %s777 = smul.addr %s776, 8
        %s778 = scalar_lea.vmem [#allocation20], %s777
        %v780 = vld [vmem:[%s676] sm:$0xf]
        %v781 = vld [vmem:[%s676 + $0x4] sm:$0xf]
        %v782 = vld [vmem:[%s666] sm:$0x1]
        %v783 = vld [vmem:[#allocation7] sm:$0xf]
        %v784 = vld [vmem:[#allocation7 + $0x4] sm:$0xf]
        %v785 = vld [vmem:[#allocation7 + $0x8] sm:$0xf]
        %v786 = vld [vmem:[#allocation7 + $0xc] sm:$0xf]
        %v787 = vld [vmem:[%s3] sm:$0x1]
        %v789 = vperm.slane %v787, 0
        %v793 = vunpack.c.l.b16 %v780
        %v794 = vunpack.c.l.b16 %v781
        %v795 = vpack.c.b16 %v794, %v793
        %v800 = vunpack.c.l.b16 %v783
        %v801 = vunpack.c.l.b16 %v784
        %v802 = vunpack.c.l.b16 %v785
        %v803 = vunpack.c.l.b16 %v786
        %v804 = vpack.c.b16 %v801, %v800
        %v805 = vpack.c.b16 %v803, %v802
        %vm808 = vcmask 261120
        %v810 = vsel %vm808, %v795, 0
        %812 = vmatpush.bf16.msra.mxu0 0
        %813 = vmatpush.bf16.msra.mxu0 0
        %814 = vmatpush.bf16.msra.mxu0 0
        %815 = vmatpush.bf16.msra.mxu0 0
        %816 = vmatpush.bf16.msra.mxu0 0
        %817 = vmatpush.bf16.msra.mxu0 0
        %818 = vmatpush.bf16.msra.mxu0 %v805
        %819 = vmatpush.bf16.msra.mxu0 %v804
        %820 = vmatmul.bf16.gmra.mxu0 %v810
        %v821 = vpop.f32.mrf.mxu0
        %v822 = vadd.f32 %v789, %v821
        %v823 = vpop.f32.mrf.mxu0
        %v824 = vadd.f32 %v789, %v823
        %825 = vdwg.mxu0
        %v826 = vld [vmem:[#allocation8] sm:$0xf]
        %v827 = vld [vmem:[#allocation8 + $0x4] sm:$0xf]
        %v828 = vld [vmem:[#allocation8 + $0x8] sm:$0xf]
        %v829 = vld [vmem:[#allocation8 + $0xc] sm:$0xf]
        %v830 = vld [vmem:[%s5] sm:$0x1]
        %v832 = vperm.slane %v830, 0
        %v838 = vunpack.c.l.b16 %v826
        %v839 = vunpack.c.l.b16 %v827
        %v840 = vunpack.c.l.b16 %v828
        %v841 = vunpack.c.l.b16 %v829
        %v842 = vpack.c.b16 %v839, %v838
        %v843 = vpack.c.b16 %v841, %v840
        %846 = vmatpush.bf16.msra.mxu0 0
        %847 = vmatpush.bf16.msra.mxu0 0
        %848 = vmatpush.bf16.msra.mxu0 0
        %849 = vmatpush.bf16.msra.mxu0 0
        %850 = vmatpush.bf16.msra.mxu0 0
        %851 = vmatpush.bf16.msra.mxu0 0
        %852 = vmatpush.bf16.msra.mxu0 %v843
        %853 = vmatpush.bf16.msra.mxu0 %v842
        %854 = vmatmul.bf16.gmra.mxu0 %v810
        %v855 = vpop.f32.mrf.mxu0
        %v856 = vadd.f32 %v832, %v855
        %v857 = vpop.f32.mrf.mxu0
        %v858 = vadd.f32 %v832, %v857
        %859 = vdwg.mxu0
        %v860 = vld [vmem:[#allocation10] sm:$0xf]
        %v861 = vld [vmem:[#allocation10 + $0x4] sm:$0xf]
        %v862 = vld [vmem:[#allocation10 + $0x8] sm:$0xf]
        %v863 = vld [vmem:[#allocation10 + $0xc] sm:$0xf]
        %v864 = vld [vmem:[%s7] sm:$0x1]
        %v866 = vperm.slane %v864, 0
        %v872 = vunpack.c.l.b16 %v860
        %v873 = vunpack.c.l.b16 %v861
        %v874 = vunpack.c.l.b16 %v862
        %v875 = vunpack.c.l.b16 %v863
        %v876 = vpack.c.b16 %v873, %v872
        %v877 = vpack.c.b16 %v875, %v874
        %880 = vmatpush.bf16.msra.mxu0 0
        %881 = vmatpush.bf16.msra.mxu0 0
        %882 = vmatpush.bf16.msra.mxu0 0
        %883 = vmatpush.bf16.msra.mxu0 0
        %884 = vmatpush.bf16.msra.mxu0 0
        %885 = vmatpush.bf16.msra.mxu0 0
        %886 = vmatpush.bf16.msra.mxu0 %v877
        %887 = vmatpush.bf16.msra.mxu0 %v876
        %888 = vmatmul.bf16.gmra.mxu0 %v810
        %v889 = vpop.f32.mrf.mxu0
        %v890 = vadd.f32 %v866, %v889
        %v891 = vpop.f32.mrf.mxu0
        %v892 = vadd.f32 %v866, %v891
        %893 = vdwg.mxu0
        %v894 = vpack.c.bf16 %v822, %v822
        %v895 = vpack.c.bf16 %v824, %v824
        %v896 = vpack.c.bf16 %v856, %v856
        %v897 = vpack.c.bf16 %v858, %v858
        %v898 = vpack.c.bf16 %v890, %v890
        %v899 = vpack.c.bf16 %v892, %v892
        %v902 = vunpack.c.l.b16 %v894
        %v903 = vunpack.c.l.b16 %v895
        %v904 = vpack.c.b16 %v903, %v902
        %v907 = vunpack.c.l.b16 %v896
        %v908 = vunpack.c.l.b16 %v897
        %v909 = vpack.c.b16 %v908, %v907
        %v911 = vsel %vm808, %v904, 0
        %v914 = vsel %vm808, %v909, 0
        %916 = vmatpush.bf16.xpose.msra.mxu0 0
        %917 = vmatpush.bf16.xpose.msra.mxu0 0
        %918 = vmatpush.bf16.xpose.msra.mxu0 0
        %919 = vmatpush.bf16.xpose.msra.mxu0 0
        %920 = vmatpush.bf16.xpose.msra.mxu0 0
        %921 = vmatpush.bf16.xpose.msra.mxu0 0
        %922 = vmatpush.bf16.xpose.msra.mxu0 0
        %923 = vmatpush.bf16.xpose.msra.mxu0 %v914
        %924 = vmatmul.bf16.gmra.mxu0 %v911
        %v925 = vpop.f32.mrf.mxu0
        %v926 = vadd.f32 0.0, %v925
        %v927 = vpop.f32.mrf.mxu0
        %v928 = vadd.f32 0.0, %v927
        %929 = vdwg.mxu0
        %vm930 = vcmp.gt.f32.partialorder %v782, 0.0
        %v931 = vsel %vm930, 1, 0
        %v932 = vperm.slane %v931, 0
        %vm933 = vcmp.eq.s32.totalorder %v932, 1
        %v934 = vsel %vm933, %v926, -1e+09
        %v935 = vsel %vm933, %v928, -1e+09
        %vm936 = vcmask 130048
        %v937 = vsel %vm936, %v934, -inf
        %938 = vmax.xlane.f32.xlu0 %v937
        %v939 = vpop.xlane.xlu0 %938
        %v940 = vsel %vm936, %v935, -inf
        %941 = vmax.xlane.f32.xlu0 %v940
        %v942 = vpop.xlane.xlu0 %941
        %v943 = vsub.f32 %v934, %v939
        %v944 = vsub.f32 %v935, %v942
        %v945 = vmul.f32 %v943, 1.442695
        %v946 = vpow.pop %v945
        %v947 = vmul.f32 %v944, 1.442695
        %v948 = vpow.pop %v947
        %v949 = vsel %vm936, %v946, 0.0
        %950 = vadd.xlane.f32.xlu0 %v949
        %v951 = vpop.xlane.xlu0 %950
        %v952 = vsel %vm936, %v948, 0.0
        %953 = vadd.xlane.f32.xlu0 %v952
        %v954 = vpop.xlane.xlu0 %953
        %v955 = vrcp.pop %v951
        %v956 = vrcp.pop %v954
        %v957 = vmul.f32 %v946, %v955
        %v958 = vmul.f32 %v948, %v956
        %v959 = vpack.c.bf16 %v957, %v957
        %v960 = vpack.c.bf16 %v958, %v958
        %v963 = vunpack.c.l.b16 %v959
        %v964 = vunpack.c.l.b16 %v960
        %v965 = vpack.c.b16 %v964, %v963
        %v968 = vunpack.c.l.b16 %v898
        %v969 = vunpack.c.l.b16 %v899
        %v970 = vpack.c.b16 %v969, %v968
        %v973 = vsel %vm936, %v965, 0
        %975 = vmatpush.bf16.msra.mxu0 0
        %976 = vmatpush.bf16.msra.mxu0 0
        %977 = vmatpush.bf16.msra.mxu0 0
        %978 = vmatpush.bf16.msra.mxu0 0
        %979 = vmatpush.bf16.msra.mxu0 0
        %980 = vmatpush.bf16.msra.mxu0 0
        %981 = vmatpush.bf16.msra.mxu0 0
        %982 = vmatpush.bf16.msra.mxu0 %v970
        %983 = vmatmul.bf16.gmra.mxu0 %v973
        %v984 = vpop.f32.mrf.mxu0
        %v985 = vadd.f32 0.0, %v984
        %v986 = vpop.f32.mrf.mxu0
        %v987 = vadd.f32 0.0, %v986
        %988 = vdwg.mxu0
        %v989 = vpack.c.bf16 %v987, %v985
        %v990 = vld [vmem:[#allocation11] sm:$0xf]
        %v991 = vld [vmem:[#allocation11 + $0x4] sm:$0xf]
        %v992 = vld [vmem:[#allocation11 + $0x8] sm:$0xf]
        %v993 = vld [vmem:[#allocation11 + $0xc] sm:$0xf]
        %v994 = vld [vmem:[%s9] sm:$0x1]
        %v996 = vperm.slane %v994, 0
        %v1002 = vunpack.c.l.b16 %v990
        %v1003 = vunpack.c.l.b16 %v991
        %v1004 = vunpack.c.l.b16 %v992
        %v1005 = vunpack.c.l.b16 %v993
        %v1006 = vpack.c.b16 %v1003, %v1002
        %v1007 = vpack.c.b16 %v1005, %v1004
        %v1011 = vsel %vm808, %v989, 0
        %1013 = vmatpush.bf16.msra.mxu0 0
        %1014 = vmatpush.bf16.msra.mxu0 0
        %1015 = vmatpush.bf16.msra.mxu0 0
        %1016 = vmatpush.bf16.msra.mxu0 0
        %1017 = vmatpush.bf16.msra.mxu0 0
        %1018 = vmatpush.bf16.msra.mxu0 0
        %1019 = vmatpush.bf16.msra.mxu0 %v1007
        %1020 = vmatpush.bf16.msra.mxu0 %v1006
        %1021 = vmatmul.bf16.gmra.mxu0 %v1011
        %v1022 = vpop.f32.mrf.mxu0
        %v1023 = vadd.f32 %v996, %v1022
        %v1024 = vpop.f32.mrf.mxu0
        %v1025 = vadd.f32 %v996, %v1024
        %1026 = vdwg.mxu0
        %v1027 = vmax.f32 %v1023, 0.0
        %v1028 = vmax.f32 %v1025, 0.0
        %v1029 = vld [vmem:[#allocation13] sm:$0xf]
        %v1030 = vld [vmem:[#allocation13 + $0x4] sm:$0xf]
        %v1031 = vld [vmem:[#allocation13 + $0x8] sm:$0xf]
        %v1032 = vld [vmem:[#allocation13 + $0xc] sm:$0xf]
        %v1037 = vunpack.c.l.b16 %v1029
        %v1038 = vunpack.c.l.b16 %v1030
        %v1039 = vunpack.c.l.b16 %v1031
        %v1040 = vunpack.c.l.b16 %v1032
        %v1041 = vpack.c.b16 %v1038, %v1037
        %v1042 = vpack.c.b16 %v1040, %v1039
        %1045 = vmatpush.bf16.msra.mxu0 0
        %1046 = vmatpush.bf16.msra.mxu0 0
        %1047 = vmatpush.bf16.msra.mxu0 0
        %1048 = vmatpush.bf16.msra.mxu0 0
        %1049 = vmatpush.bf16.msra.mxu0 0
        %1050 = vmatpush.bf16.msra.mxu0 0
        %1051 = vmatpush.bf16.msra.mxu0 %v1042
        %1052 = vmatpush.bf16.msra.mxu0 %v1041
        %1053 = vmatmul.bf16.gmra.mxu0 %v1011
        %v1054 = vpop.f32.mrf.mxu0
        %v1055 = vadd.f32 0.0, %v1054
        %v1056 = vpop.f32.mrf.mxu0
        %v1057 = vadd.f32 0.0, %v1056
        %1058 = vdwg.mxu0
        %vm1061 = vcmask 1040384
        %v1062 = vrot.slane %v1055, 7
        %v1063 = vrot.slane %v1057, 7
        %v1064 = vsel %vm1061, %v1062, %v1063
        %v1067 = vsel %vm1061, 0.0, %v1062
        %s1068 = scalar_lea.vmem [#allocation13], 16
        %v1069 = vld [vmem:[%s1068] sm:$0xf]
        %v1070 = vld [vmem:[%s1068 + $0x4] sm:$0xf]
        %v1071 = vld [vmem:[%s1068 + $0x8] sm:$0xf]
        %v1072 = vld [vmem:[%s1068 + $0xc] sm:$0xf]
        %v1077 = vunpack.c.l.b16 %v1069
        %v1078 = vunpack.c.l.b16 %v1070
        %v1079 = vunpack.c.l.b16 %v1071
        %v1080 = vunpack.c.l.b16 %v1072
        %v1081 = vpack.c.b16 %v1078, %v1077
        %v1082 = vpack.c.b16 %v1080, %v1079
        %1085 = vmatpush.bf16.msra.mxu0 0
        %1086 = vmatpush.bf16.msra.mxu0 0
        %1087 = vmatpush.bf16.msra.mxu0 0
        %1088 = vmatpush.bf16.msra.mxu0 0
        %1089 = vmatpush.bf16.msra.mxu0 0
        %1090 = vmatpush.bf16.msra.mxu0 0
        %1091 = vmatpush.bf16.msra.mxu0 %v1082
        %1092 = vmatpush.bf16.msra.mxu0 %v1081
        %1093 = vmatmul.bf16.gmra.mxu0 %v1011
        %v1094 = vpop.f32.mrf.mxu0
        %v1095 = vadd.f32 0.0, %v1094
        %v1096 = vpop.f32.mrf.mxu0
        %v1097 = vadd.f32 0.0, %v1096
        %1098 = vdwg.mxu0
        %v1099 = vadd.f32 %v1067, %v1095
        %v1100 = vadd.f32 %v1064, %v1097
        %s1101 = scalar_lea.vmem [#allocation13], 32
        %v1102 = vld [vmem:[%s1101] sm:$0xf]
        %v1103 = vld [vmem:[%s1101 + $0x4] sm:$0xf]
        %v1104 = vld [vmem:[%s1101 + $0x8] sm:$0xf]
        %v1105 = vld [vmem:[%s1101 + $0xc] sm:$0xf]
        %v1110 = vunpack.c.l.b16 %v1102
        %v1111 = vunpack.c.l.b16 %v1103
        %v1112 = vunpack.c.l.b16 %v1104
        %v1113 = vunpack.c.l.b16 %v1105
        %v1114 = vpack.c.b16 %v1111, %v1110
        %v1115 = vpack.c.b16 %v1113, %v1112
        %1118 = vmatpush.bf16.msra.mxu0 0
        %1119 = vmatpush.bf16.msra.mxu0 0
        %1120 = vmatpush.bf16.msra.mxu0 0
        %1121 = vmatpush.bf16.msra.mxu0 0
        %1122 = vmatpush.bf16.msra.mxu0 0
        %1123 = vmatpush.bf16.msra.mxu0 0
        %1124 = vmatpush.bf16.msra.mxu0 %v1115
        %1125 = vmatpush.bf16.msra.mxu0 %v1114
        %1126 = vmatmul.bf16.gmra.mxu0 %v1011
        %v1127 = vpop.f32.mrf.mxu0
        %v1128 = vadd.f32 0.0, %v1127
        %v1129 = vpop.f32.mrf.mxu0
        %v1130 = vadd.f32 0.0, %v1129
        %1131 = vdwg.mxu0
        %vm1134 = vcmask 1046528
        %v1135 = vrot.slane %v1128, 1
        %v1136 = vrot.slane %v1130, 1
        %v1137 = vsel %vm1134, %v1135, %v1136
        %v1140 = vsel %vm1134, %v1136, 0.0
        %v1141 = vadd.f32 %v1099, %v1137
        %v1142 = vadd.f32 %v1100, %v1140
        %v1143 = vld [vmem:[%s11] sm:$0x1]
        %v1145 = vperm.slane %v1143, 0
        %v1147 = vadd.f32 %v1141, %v1145
        %v1148 = vadd.f32 %v1142, %v1145
        %v1149 = vmax.f32 %v1147, 0.0
        %v1150 = vmax.f32 %v1148, 0.0
        %v1151 = vld [vmem:[#allocation14] sm:$0xf]
        %v1152 = vld [vmem:[#allocation14 + $0x4] sm:$0xf]
        %v1153 = vld [vmem:[#allocation14 + $0x8] sm:$0xf]
        %v1154 = vld [vmem:[#allocation14 + $0xc] sm:$0xf]
        %v1159 = vunpack.c.l.b16 %v1151
        %v1160 = vunpack.c.l.b16 %v1152
        %v1161 = vunpack.c.l.b16 %v1153
        %v1162 = vunpack.c.l.b16 %v1154
        %v1163 = vpack.c.b16 %v1160, %v1159
        %v1164 = vpack.c.b16 %v1162, %v1161
        %1167 = vmatpush.bf16.msra.mxu0 0
        %1168 = vmatpush.bf16.msra.mxu0 0
        %1169 = vmatpush.bf16.msra.mxu0 0
        %1170 = vmatpush.bf16.msra.mxu0 0
        %1171 = vmatpush.bf16.msra.mxu0 0
        %1172 = vmatpush.bf16.msra.mxu0 0
        %1173 = vmatpush.bf16.msra.mxu0 %v1164
        %1174 = vmatpush.bf16.msra.mxu0 %v1163
        %1175 = vmatmul.bf16.gmra.mxu0 %v1011
        %v1176 = vpop.f32.mrf.mxu0
        %v1177 = vadd.f32 0.0, %v1176
        %v1178 = vpop.f32.mrf.mxu0
        %v1179 = vadd.f32 0.0, %v1178
        %1180 = vdwg.mxu0
        %vm1183 = vcmask 1041408
        %v1184 = vrot.slane %v1177, 6
        %v1185 = vrot.slane %v1179, 6
        %v1186 = vsel %vm1183, %v1184, %v1185
        %v1189 = vsel %vm1183, 0.0, %v1184
        %s1190 = scalar_lea.vmem [#allocation14], 16
        %v1191 = vld [vmem:[%s1190] sm:$0xf]
        %v1192 = vld [vmem:[%s1190 + $0x4] sm:$0xf]
        %v1193 = vld [vmem:[%s1190 + $0x8] sm:$0xf]
        %v1194 = vld [vmem:[%s1190 + $0xc] sm:$0xf]
        %v1199 = vunpack.c.l.b16 %v1191
        %v1200 = vunpack.c.l.b16 %v1192
        %v1201 = vunpack.c.l.b16 %v1193
        %v1202 = vunpack.c.l.b16 %v1194
        %v1203 = vpack.c.b16 %v1200, %v1199
        %v1204 = vpack.c.b16 %v1202, %v1201
        %1207 = vmatpush.bf16.msra.mxu0 0
        %1208 = vmatpush.bf16.msra.mxu0 0
        %1209 = vmatpush.bf16.msra.mxu0 0
        %1210 = vmatpush.bf16.msra.mxu0 0
        %1211 = vmatpush.bf16.msra.mxu0 0
        %1212 = vmatpush.bf16.msra.mxu0 0
        %1213 = vmatpush.bf16.msra.mxu0 %v1204
        %1214 = vmatpush.bf16.msra.mxu0 %v1203
        %1215 = vmatmul.bf16.gmra.mxu0 %v1011
        %v1216 = vpop.f32.mrf.mxu0
        %v1217 = vadd.f32 0.0, %v1216
        %v1218 = vpop.f32.mrf.mxu0
        %v1219 = vadd.f32 0.0, %v1218
        %1220 = vdwg.mxu0
        %v1223 = vrot.slane %v1217, 7
        %v1224 = vrot.slane %v1219, 7
        %v1225 = vsel %vm1061, %v1223, %v1224
        %v1228 = vsel %vm1061, 0.0, %v1223
        %v1229 = vadd.f32 %v1189, %v1228
        %v1230 = vadd.f32 %v1186, %v1225
        %s1231 = scalar_lea.vmem [#allocation14], 32
        %v1232 = vld [vmem:[%s1231] sm:$0xf]
        %v1233 = vld [vmem:[%s1231 + $0x4] sm:$0xf]
        %v1234 = vld [vmem:[%s1231 + $0x8] sm:$0xf]
        %v1235 = vld [vmem:[%s1231 + $0xc] sm:$0xf]
        %v1240 = vunpack.c.l.b16 %v1232
        %v1241 = vunpack.c.l.b16 %v1233
        %v1242 = vunpack.c.l.b16 %v1234
        %v1243 = vunpack.c.l.b16 %v1235
        %v1244 = vpack.c.b16 %v1241, %v1240
        %v1245 = vpack.c.b16 %v1243, %v1242
        %1248 = vmatpush.bf16.msra.mxu0 0
        %1249 = vmatpush.bf16.msra.mxu0 0
        %1250 = vmatpush.bf16.msra.mxu0 0
        %1251 = vmatpush.bf16.msra.mxu0 0
        %1252 = vmatpush.bf16.msra.mxu0 0
        %1253 = vmatpush.bf16.msra.mxu0 0
        %1254 = vmatpush.bf16.msra.mxu0 %v1245
        %1255 = vmatpush.bf16.msra.mxu0 %v1244
        %1256 = vmatmul.bf16.gmra.mxu0 %v1011
        %v1257 = vpop.f32.mrf.mxu0
        %v1258 = vadd.f32 0.0, %v1257
        %v1259 = vpop.f32.mrf.mxu0
        %v1260 = vadd.f32 0.0, %v1259
        %1261 = vdwg.mxu0
        %v1262 = vadd.f32 %v1229, %v1258
        %v1263 = vadd.f32 %v1230, %v1260
        %s1264 = scalar_lea.vmem [#allocation14], 48
        %v1265 = vld [vmem:[%s1264] sm:$0xf]
        %v1266 = vld [vmem:[%s1264 + $0x4] sm:$0xf]
        %v1267 = vld [vmem:[%s1264 + $0x8] sm:$0xf]
        %v1268 = vld [vmem:[%s1264 + $0xc] sm:$0xf]
        %v1273 = vunpack.c.l.b16 %v1265
        %v1274 = vunpack.c.l.b16 %v1266
        %v1275 = vunpack.c.l.b16 %v1267
        %v1276 = vunpack.c.l.b16 %v1268
        %v1277 = vpack.c.b16 %v1274, %v1273
        %v1278 = vpack.c.b16 %v1276, %v1275
        %1281 = vmatpush.bf16.msra.mxu0 0
        %1282 = vmatpush.bf16.msra.mxu0 0
        %1283 = vmatpush.bf16.msra.mxu0 0
        %1284 = vmatpush.bf16.msra.mxu0 0
        %1285 = vmatpush.bf16.msra.mxu0 0
        %1286 = vmatpush.bf16.msra.mxu0 0
        %1287 = vmatpush.bf16.msra.mxu0 %v1278
        %1288 = vmatpush.bf16.msra.mxu0 %v1277
        %1289 = vmatmul.bf16.gmra.mxu0 %v1011
        %v1290 = vpop.f32.mrf.mxu0
        %v1291 = vadd.f32 0.0, %v1290
        %v1292 = vpop.f32.mrf.mxu0
        %v1293 = vadd.f32 0.0, %v1292
        %1294 = vdwg.mxu0
        %v1297 = vrot.slane %v1291, 1
        %v1298 = vrot.slane %v1293, 1
        %v1299 = vsel %vm1134, %v1297, %v1298
        %v1302 = vsel %vm1134, %v1298, 0.0
        %v1303 = vadd.f32 %v1262, %v1299
        %v1304 = vadd.f32 %v1263, %v1302
        %s1305 = scalar_lea.vmem [#allocation14], 64
        %v1306 = vld [vmem:[%s1305] sm:$0xf]
        %v1307 = vld [vmem:[%s1305 + $0x4] sm:$0xf]
        %v1308 = vld [vmem:[%s1305 + $0x8] sm:$0xf]
        %v1309 = vld [vmem:[%s1305 + $0xc] sm:$0xf]
        %v1314 = vunpack.c.l.b16 %v1306
        %v1315 = vunpack.c.l.b16 %v1307
        %v1316 = vunpack.c.l.b16 %v1308
        %v1317 = vunpack.c.l.b16 %v1309
        %v1318 = vpack.c.b16 %v1315, %v1314
        %v1319 = vpack.c.b16 %v1317, %v1316
        %1322 = vmatpush.bf16.msra.mxu0 0
        %1323 = vmatpush.bf16.msra.mxu0 0
        %1324 = vmatpush.bf16.msra.mxu0 0
        %1325 = vmatpush.bf16.msra.mxu0 0
        %1326 = vmatpush.bf16.msra.mxu0 0
        %1327 = vmatpush.bf16.msra.mxu0 0
        %1328 = vmatpush.bf16.msra.mxu0 %v1319
        %1329 = vmatpush.bf16.msra.mxu0 %v1318
        %1330 = vmatmul.bf16.gmra.mxu0 %v1011
        %v1331 = vpop.f32.mrf.mxu0
        %v1332 = vadd.f32 0.0, %v1331
        %v1333 = vpop.f32.mrf.mxu0
        %v1334 = vadd.f32 0.0, %v1333
        %1335 = vdwg.mxu0
        %vm1338 = vcmask 1045504
        %v1339 = vrot.slane %v1332, 2
        %v1340 = vrot.slane %v1334, 2
        %v1341 = vsel %vm1338, %v1339, %v1340
        %v1344 = vsel %vm1338, %v1340, 0.0
        %v1345 = vadd.f32 %v1303, %v1341
        %v1346 = vadd.f32 %v1304, %v1344
        %v1347 = vld [vmem:[%s13] sm:$0x1]
        %v1349 = vperm.slane %v1347, 0
        %v1351 = vadd.f32 %v1345, %v1349
        %v1352 = vadd.f32 %v1346, %v1349
        %v1353 = vmax.f32 %v1351, 0.0
        %v1354 = vmax.f32 %v1352, 0.0
        %v1355 = vpack.c.bf16 %v1028, %v1027
        %v1356 = vld [vmem:[#allocation16] sm:$0xf]
        %v1357 = vld [vmem:[#allocation16 + $0x4] sm:$0xf]
        %v1358 = vld [vmem:[#allocation16 + $0x8] sm:$0xf]
        %v1359 = vld [vmem:[#allocation16 + $0xc] sm:$0xf]
        %v1360 = vpack.c.bf16 %v1150, %v1149
        %v1361 = vld [vmem:[#allocation17] sm:$0xf]
        %v1362 = vld [vmem:[#allocation17 + $0x4] sm:$0xf]
        %v1363 = vld [vmem:[#allocation17 + $0x8] sm:$0xf]
        %v1364 = vld [vmem:[#allocation17 + $0xc] sm:$0xf]
        %v1369 = vunpack.c.l.b16 %v1361
        %v1370 = vunpack.c.l.b16 %v1362
        %v1371 = vunpack.c.l.b16 %v1363
        %v1372 = vunpack.c.l.b16 %v1364
        %v1373 = vpack.c.b16 %v1370, %v1369
        %v1374 = vpack.c.b16 %v1372, %v1371
        %v1378 = vsel %vm808, %v1360, 0
        %1380 = vmatpush.bf16.msra.mxu0 0
        %1381 = vmatpush.bf16.msra.mxu0 0
        %1382 = vmatpush.bf16.msra.mxu0 0
        %1383 = vmatpush.bf16.msra.mxu0 0
        %1384 = vmatpush.bf16.msra.mxu0 0
        %1385 = vmatpush.bf16.msra.mxu0 0
        %1386 = vmatpush.bf16.msra.mxu0 %v1374
        %1387 = vmatpush.bf16.msra.mxu0 %v1373
        %1388 = vmatmul.bf16.gmra.mxu0 %v1378
        %v1389 = vpop.f32.mrf.mxu0
        %v1390 = vadd.f32 0.0, %v1389
        %v1391 = vpop.f32.mrf.mxu0
        %v1392 = vadd.f32 0.0, %v1391
        %1393 = vdwg.mxu0
        %v1398 = vunpack.c.l.b16 %v1356
        %v1399 = vunpack.c.l.b16 %v1357
        %v1400 = vunpack.c.l.b16 %v1358
        %v1401 = vunpack.c.l.b16 %v1359
        %v1402 = vpack.c.b16 %v1399, %v1398
        %v1403 = vpack.c.b16 %v1401, %v1400
        %v1407 = vsel %vm808, %v1355, 0
        %1409 = vmatpush.bf16.msra.mxu0 0
        %1410 = vmatpush.bf16.msra.mxu0 0
        %1411 = vmatpush.bf16.msra.mxu0 0
        %1412 = vmatpush.bf16.msra.mxu0 0
        %1413 = vmatpush.bf16.msra.mxu0 0
        %1414 = vmatpush.bf16.msra.mxu0 0
        %1415 = vmatpush.bf16.msra.mxu0 %v1403
        %1416 = vmatpush.bf16.msra.mxu0 %v1402
        %1417 = vmatmul.bf16.gmra.mxu0 %v1407
        %v1418 = vpop.f32.mrf.mxu0
        %v1419 = vadd.f32 %v1390, %v1418
        %v1420 = vpop.f32.mrf.mxu0
        %v1421 = vadd.f32 %v1392, %v1420
        %1422 = vdwg.mxu0
        %v1423 = vpack.c.bf16 %v1354, %v1353
        %v1424 = vld [vmem:[#allocation19] sm:$0xf]
        %v1425 = vld [vmem:[#allocation19 + $0x4] sm:$0xf]
        %v1426 = vld [vmem:[#allocation19 + $0x8] sm:$0xf]
        %v1427 = vld [vmem:[#allocation19 + $0xc] sm:$0xf]
        %v1432 = vunpack.c.l.b16 %v1424
        %v1433 = vunpack.c.l.b16 %v1425
        %v1434 = vunpack.c.l.b16 %v1426
        %v1435 = vunpack.c.l.b16 %v1427
        %v1436 = vpack.c.b16 %v1433, %v1432
        %v1437 = vpack.c.b16 %v1435, %v1434
        %v1441 = vsel %vm808, %v1423, 0
        %1443 = vmatpush.bf16.msra.mxu0 0
        %1444 = vmatpush.bf16.msra.mxu0 0
        %1445 = vmatpush.bf16.msra.mxu0 0
        %1446 = vmatpush.bf16.msra.mxu0 0
        %1447 = vmatpush.bf16.msra.mxu0 0
        %1448 = vmatpush.bf16.msra.mxu0 0
        %1449 = vmatpush.bf16.msra.mxu0 %v1437
        %1450 = vmatpush.bf16.msra.mxu0 %v1436
        %1451 = vmatmul.bf16.gmra.mxu0 %v1441
        %v1452 = vpop.f32.mrf.mxu0
        %v1453 = vadd.f32 0.0, %v1452
        %v1454 = vpop.f32.mrf.mxu0
        %v1455 = vadd.f32 0.0, %v1454
        %1456 = vdwg.mxu0
        %v1457 = vadd.f32 %v1419, %v1453
        %v1458 = vadd.f32 %v1421, %v1455
        %v1459 = vld [vmem:[%s17] sm:$0x1]
        %v1461 = vperm.slane %v1459, 0
        %v1463 = vadd.f32 %v1457, %v1461
        %v1464 = vadd.f32 %v1458, %v1461
        %v1465 = vpack.c.bf16 %v1463, %v1463
        %v1466 = vpack.c.bf16 %v1464, %v1464
        %1467 = vst [vmem:[%s778] sm:$0xf] %v1465
        %1468 = vst [vmem:[%s778 + $0x4] sm:$0xf] %v1466
        %s1469 = sand.u32 %s438, 1
        %s1470 = scalar_lea.sflag [#allocation4], %s1469
        %s1471 = sand.u32 %s438, 1
        %s1472 = smul.addr %s1471, 8
        %s1473 = scalar_lea.vmem [#allocation20], %s1472
        // Predicated region
        $region137: #{tpu_custom_call.1} parent=91 // pred_check
          %p1474 = pneg %p448
        $region138: #{tpu_custom_call.1} parent=91 // pred_check_branch
          %1476 = sbr.rel (%p1474) target = $region140
        $region139: #{tpu_custom_call.1} parent=91 // pred_region
          %1478 = vsyncadd %s1470, 0
          %s1479 = smul.addr %s42, 2
          %s1480 = smul.addr %s1479, 4
          %s1481 = scalar_lea.hbm %s18, %s1480
          %s1482 = sshll.u32 %s1473, 4
          %s1483 = int_to_ptr.vmem [resolvable:$true] %s1482
          %s1484 = sshll.u32 %s1481, 4
          %s1485 = int_to_ptr.hbm [resolvable:$true] %s1484
          %1490 = dma.vmem_to_hbm [thread:$0]  %s1483, 128, %s1485, %s1470, 64, 64, 4
        $region140: #{tpu_custom_call.1} parent=91 // pred_fallthru
          _
      $region92: #{tpu_custom_call.1} parent=5 // pred_fallthru
        _
      %p1491 = scmp.le.s32.totalorder 2, %s37
      // Predicated region
      $region141: #{tpu_custom_call.1} parent=5 // pred_check
        %p1492 = pneg %p1491
      $region142: #{tpu_custom_call.1} parent=5 // pred_check_branch
        %1494 = sbr.rel (%p1492) target = $region144
      $region143: #{tpu_custom_call.1} parent=5 // pred_region
        %s1495 = ssub.s32 %s37, 2
        // Predicated region
        $region145: #{tpu_custom_call.1} parent=143 // pred_check
          %p1496 = pneg %p454
        $region146: #{tpu_custom_call.1} parent=143 // pred_check_branch
          %1498 = sbr.rel (%p1496) target = $region148
        $region147: #{tpu_custom_call.1} parent=143 // pred_region
          %s1499 = sand.u32 %s439, 1
          %s1500 = scalar_lea.sflag [#allocation4], %s1499
          %s1501 = sand.u32 %s439, 1
          %s1502 = smul.addr %s1501, 8
          %s1503 = scalar_lea.vmem [#allocation20], %s1502
          %1505 = dma.done %s1500, 128
        $region148: #{tpu_custom_call.1} parent=143 // pred_fallthru
          _
      $region144: #{tpu_custom_call.1} parent=5 // pred_fallthru
        _
    $region6: #{tpu_custom_call.1} parent=1 // loop_footer
      %s41 = sadd.s32 1, %s37
    $region7: #{tpu_custom_call.1} parent=1 // loop_footer_branch
      %36 = sbr.rel target = $region3
    $region8: #{tpu_custom_call.1} parent=1 // loop_exit
      _
    %1506 = vsyncpa [#allocation3], 1
    %s1507 = scalar_lea.sflag [#allocation3], 1
    %1508 = vsyncpa %s1507, 1
    %1509 = vsyncpa [#allocation6], 1
    %s1510 = scalar_lea.sflag [#allocation6], 1
    %1511 = vsyncpa %s1510, 1
    %1512 = vsyncpa [#allocation9], 1
    %1513 = vsyncpa [#allocation12], 1
    %1514 = vsyncpa [#allocation15], 1
    %1515 = vsyncpa [#allocation18], 1
    %1516 = vsyncpa [#allocation4], 1
    %s1517 = scalar_lea.sflag [#allocation4], 1
    %1518 = vsyncpa %s1517, 1

</llo_original>
